<compile_context>
chip_gen: v7x
topology: tpu7x:2x2x1
jax: 0.10.0
libtpu: 0.0.40
codegen_flags: <defaults>
</compile_context>

<pallas_src>
import functools

import jax
import jax.numpy as jnp
from jax import lax
from jax.experimental import pallas as pl
from jax.experimental.pallas import tpu as pltpu


def _leaky_relu(x, slope=0.2):
    return jnp.where(x > 0, x, slope * x)


def _network_kernel(xp_ref, w1_ref, b1_ref, w2_ref, b2_ref, w3_ref, b3_ref,
                    o_ref, *, H, W, TH, Cin, CE):
    """One (batch, row-tile) step of the fused 3-layer network.

    xp_ref: (1, H+4, W+4, Cin)  input, zero-padded by 2, channel-last
    w1_ref: (9*Cin, CE)         conv1 weights, 3x3 taps folded into K
    w2_ref: (9*CE, CE)          conv2 weights, 3x3 taps folded into K
    w3_ref: (Cout, CE)          conv3 (1x1) weights, transposed
    b1/b2 : (1, CE)   b3: (Cout, 1)
    o_ref : (1, Cout, TH*W)     channel-major, lane-dense output tile
    """
    t = pl.program_id(1)
    r0 = t * TH
    if TH % 8 == 0:
        r0 = pl.multiple_of(r0, 8)
    R2, C2 = TH + 2, W + 2            # padded intermediate tile (rows, cols)

    # Rows [r0, r0+TH+4) of the pad-2 input cover every tap needed to produce
    # TH+2 rows of the padded layer-1 activation (the tile's 1-row halo).
    xt = xp_ref[0, pl.ds(r0, TH + 4), :, :]               # (TH+4, W+4, Cin)

    # ---- layer 1: 3x3 conv as ONE im2col matmul (K = 9*Cin) ----
    p1 = jnp.concatenate(
        [xt[dy:dy + R2, dx:dx + C2, :]
         for dy in range(3) for dx in range(3)], axis=-1)  # (R2, C2, 9*Cin)
    g = lax.dot_general(p1, w1_ref[...],
                        dimension_numbers=(((2,), (0,)), ((), ())),
                        preferred_element_type=jnp.float32)
    g = _leaky_relu(g + b1_ref[...])                       # (R2, C2, CE)

    # Zero the conv "SAME" padding border of the intermediate (replaces the
    # old full-image VMEM scratch re-pad and its per-step zero fill).
    row = r0 + lax.broadcasted_iota(jnp.int32, (R2, C2, 1), 0)
    col = lax.broadcasted_iota(jnp.int32, (R2, C2, 1), 1)
    interior = (row >= 1) & (row <= H) & (col >= 1) & (col <= W)
    h1 = jnp.where(interior, g, 0.0)                       # padded h1 tile

    # ---- layer 2: 3x3 conv as ONE im2col matmul (K = 9*CE) ----
    p2 = jnp.concatenate(
        [h1[dy:dy + TH, dx:dx + W, :]
         for dy in range(3) for dx in range(3)], axis=-1)  # (TH, W, 9*CE)
    h2 = lax.dot_general(p2, w2_ref[...],
                         dimension_numbers=(((2,), (0,)), ((), ())),
                         preferred_element_type=jnp.float32)
    h2 = _leaky_relu(h2 + b2_ref[...])                     # (TH, W, CE)

    # ---- layer 3: 1x1 conv, emitted channel-major -> lane-dense store ----
    h2f = h2.reshape(TH * W, CE)                           # W % 8 == 0: cheap
    out = lax.dot_general(w3_ref[...], h2f,
                          dimension_numbers=(((1,), (1,)), ((), ())),
                          preferred_element_type=jnp.float32)  # (Cout, TH*W)
    out = out + b3_ref[...]
    o_ref[0] = out.astype(o_ref.dtype)


def network_forward(x_nchw, params, *, tile_rows=8):
    """x_nchw: (B, Cin, H, W) float32. Returns (B, Cout, H, W), Cout == Cin."""
    w1, b1, w2, b2, w3, b3 = params
    B, Cin, H, W = x_nchw.shape
    CE = w1.shape[-1]
    Cout = w3.shape[-1]

    # Row-tile size: keep the lane-dense output block (TH*W) a multiple of 128
    # (unmasked stores); otherwise fall back to a single tile per image.
    TH = tile_rows
    if H % TH != 0 or (TH != H and (TH * W) % 128 != 0):
        TH = H
    T = H // TH

    # Channel-last, pad-2 input: the extra ring of padding lets every tile
    # recompute its layer-1 halo with a plain VALID window; the in-kernel mask
    # restores the exact SAME-conv zero border.
    x_nhwc = jnp.transpose(x_nchw, (0, 2, 3, 1))
    xp = jnp.pad(x_nhwc, ((0, 0), (2, 2), (2, 2), (0, 0)))

    # Fold the 3x3 taps into the contraction dim; transpose the 1x1 weights so
    # the kernel can emit a channel-major (lane-dense) output directly.
    w1f = w1.reshape(9 * Cin, CE)
    w2f = w2.reshape(9 * CE, CE)
    w3t = w3.T                                   # (Cout, CE)
    b1r = b1.reshape(1, CE)
    b2r = b2.reshape(1, CE)
    b3r = b3.reshape(Cout, 1)

    kernel = functools.partial(_network_kernel, H=H, W=W, TH=TH, Cin=Cin, CE=CE)
    const = lambda shape: pl.BlockSpec(shape, lambda b, t: (0,) * len(shape))

    out_flat = pl.pallas_call(
        kernel,
        out_shape=jax.ShapeDtypeStruct((B, Cout, H * W), x_nchw.dtype),
        grid_spec=pltpu.PrefetchScalarGridSpec(
            num_scalar_prefetch=0,
            grid=(B, T),
            in_specs=[
                # Whole padded image per batch element (tiny for Cin=4); the
                # row-tile axis slices it in-kernel with a 2-row halo.
                pl.BlockSpec((1, H + 4, W + 4, Cin), lambda b, t: (b, 0, 0, 0)),
                const(w1f.shape), const(b1r.shape),
                const(w2f.shape), const(b2r.shape),
                const(w3t.shape), const(b3r.shape),
            ],
            out_specs=pl.BlockSpec((1, Cout, TH * W), lambda b, t: (b, 0, t)),
        ),
        compiler_params=pltpu.CompilerParams(
            dimension_semantics=("parallel", "parallel")),
    )(xp, w1f, b1r, w2f, b2r, w3t, b3r)

    # Free, contiguous reshape back to NCHW (no output transpose anymore).
    return out_flat.reshape(B, Cout, H, W)


def reference_forward(x_nchw, params):
    """Pure-JAX reference (lax.conv) for numerical verification."""
    w1, b1, w2, b2, w3, b3 = params
    x = jnp.transpose(x_nchw, (0, 2, 3, 1))
    dn = ("NHWC", "HWIO", "NHWC")

    def conv(x, w, b):
        y = lax.conv_general_dilated(x, w, (1, 1), "SAME", dimension_numbers=dn)
        return y + b.reshape(1, 1, 1, -1)

    h = _leaky_relu(conv(x, w1, b1))
    h = _leaky_relu(conv(h, w2, b2))
    w3_hwio = w3.reshape(1, 1, w3.shape[0], w3.shape[1])
    y = conv(h, w3_hwio, b3)
    return jnp.transpose(y, (0, 3, 1, 2))


def init_params(key, n_chan, chan_embed):
    k1, k2, k3, k4, k5, k6 = jax.random.split(key, 6)
    # HWIO weight layout; deterministic synthetic init.
    w1 = 0.1 * jax.random.normal(k1, (3, 3, n_chan, chan_embed), jnp.float32)
    b1 = 0.1 * jax.random.normal(k2, (chan_embed,), jnp.float32)
    w2 = 0.1 * jax.random.normal(k3, (3, 3, chan_embed, chan_embed), jnp.float32)
    b2 = 0.1 * jax.random.normal(k4, (chan_embed,), jnp.float32)
    w3 = 0.1 * jax.random.normal(k5, (chan_embed, n_chan), jnp.float32)
    b3 = 0.1 * jax.random.normal(k6, (n_chan,), jnp.float32)
    return (w1, b1, w2, b2, w3, b3)


if __name__ == "__main__":
    B, n_chan, H, W = 2, 4, 16, 16
    chan_embed = 48

    key = jax.random.PRNGKey(0)
    kx, kp = jax.random.split(key)
    x = jax.random.normal(kx, (B, n_chan, H, W), jnp.float32)   # NCHW like PyTorch
    params = init_params(kp, n_chan, chan_embed)

    out = jax.jit(network_forward)(x, params)
    out = jax.block_until_ready(out)

    ref = reference_forward(x, params)
    assert out.shape == (B, n_chan, H, W)
    assert jnp.allclose(out, ref, atol=5e-4, rtol=5e-4), "mismatch vs reference"

    print("KERNEL_OK")
</pallas_src>

<mosaic_0001>
module attributes {stable_mosaic.version = 11 : i64} {
  func.func @_network_kernel(%arg0: i32, %arg1: i32, %arg2: memref<1x20x20x4xf32, #tpu.memory_space<vmem>>, %arg3: memref<36x48xf32, #tpu.memory_space<vmem>>, %arg4: memref<1x48xf32, #tpu.memory_space<vmem>>, %arg5: memref<432x48xf32, #tpu.memory_space<vmem>>, %arg6: memref<1x48xf32, #tpu.memory_space<vmem>>, %arg7: memref<4x48xf32, #tpu.memory_space<vmem>>, %arg8: memref<4x1xf32, #tpu.memory_space<vmem>>, %arg9: memref<1x4x128xf32, #tpu.memory_space<vmem>>) attributes {dimension_semantics = [#tpu.dimension_semantics<parallel>, #tpu.dimension_semantics<parallel>], iteration_bounds = array<i64: 2, 2>, scalar_prefetch = 0 : i64, scratch_operands = 0 : i64, tpu.core_type = #tpu.core_type<tc>, window_params = [{transform_indices = @transform_0, window_bounds = array<i64: 1, 20, 20, 4>}, {pipeline_mode = #tpu.pipeline_mode<synchronous>, transform_indices = @transform_1, window_bounds = array<i64: 36, 48>}, {pipeline_mode = #tpu.pipeline_mode<synchronous>, transform_indices = @transform_2, window_bounds = array<i64: 1, 48>}, {pipeline_mode = #tpu.pipeline_mode<synchronous>, transform_indices = @transform_3, window_bounds = array<i64: 432, 48>}, {pipeline_mode = #tpu.pipeline_mode<synchronous>, transform_indices = @transform_4, window_bounds = array<i64: 1, 48>}, {pipeline_mode = #tpu.pipeline_mode<synchronous>, transform_indices = @transform_5, window_bounds = array<i64: 4, 48>}, {pipeline_mode = #tpu.pipeline_mode<synchronous>, transform_indices = @transform_6, window_bounds = array<i64: 4, 1>}, {transform_indices = @transform_7, window_bounds = array<i64: 1, 4, 128>}]} {
    %c8_i32 = arith.constant 8 : i32
    %0 = arith.muli %arg1, %c8_i32 : i32
    %1 = tpu.assume_multiple %0, 8 : i32
    %c0 = arith.constant 0 : index
    %2 = arith.index_cast %1 : i32 to index
    %c0_0 = arith.constant 0 : index
    %c0_1 = arith.constant 0 : index
    %3 = vector.load %arg2[%c0, %2, %c0_0, %c0_1] : memref<1x20x20x4xf32, #tpu.memory_space<vmem>>, vector<1x12x20x4xf32>
    %4 = vector.shape_cast %3 : vector<1x12x20x4xf32> to vector<12x20x4xf32>
    %5 = vector.extract_strided_slice %4 {offsets = [0, 0, 0], sizes = [10, 18, 4], strides = [1, 1, 1]} : vector<12x20x4xf32> to vector<10x18x4xf32>
    %6 = vector.extract_strided_slice %4 {offsets = [0, 1, 0], sizes = [10, 18, 4], strides = [1, 1, 1]} : vector<12x20x4xf32> to vector<10x18x4xf32>
    %7 = vector.extract_strided_slice %4 {offsets = [0, 2, 0], sizes = [10, 18, 4], strides = [1, 1, 1]} : vector<12x20x4xf32> to vector<10x18x4xf32>
    %8 = vector.extract_strided_slice %4 {offsets = [1, 0, 0], sizes = [10, 18, 4], strides = [1, 1, 1]} : vector<12x20x4xf32> to vector<10x18x4xf32>
    %9 = vector.extract_strided_slice %4 {offsets = [1, 1, 0], sizes = [10, 18, 4], strides = [1, 1, 1]} : vector<12x20x4xf32> to vector<10x18x4xf32>
    %10 = vector.extract_strided_slice %4 {offsets = [1, 2, 0], sizes = [10, 18, 4], strides = [1, 1, 1]} : vector<12x20x4xf32> to vector<10x18x4xf32>
    %11 = vector.extract_strided_slice %4 {offsets = [2, 0, 0], sizes = [10, 18, 4], strides = [1, 1, 1]} : vector<12x20x4xf32> to vector<10x18x4xf32>
    %12 = vector.extract_strided_slice %4 {offsets = [2, 1, 0], sizes = [10, 18, 4], strides = [1, 1, 1]} : vector<12x20x4xf32> to vector<10x18x4xf32>
    %13 = vector.extract_strided_slice %4 {offsets = [2, 2, 0], sizes = [10, 18, 4], strides = [1, 1, 1]} : vector<12x20x4xf32> to vector<10x18x4xf32>
    %14 = tpu.concatenate %5, %6, %7, %8, %9, %10, %11, %12, %13 in 2 : vector<10x18x4xf32>, vector<10x18x4xf32>, vector<10x18x4xf32>, vector<10x18x4xf32>, vector<10x18x4xf32>, vector<10x18x4xf32>, vector<10x18x4xf32>, vector<10x18x4xf32>, vector<10x18x4xf32> -> vector<10x18x36xf32>
    %c0_2 = arith.constant 0 : index
    %c0_3 = arith.constant 0 : index
    %15 = vector.load %arg3[%c0_2, %c0_3] : memref<36x48xf32, #tpu.memory_space<vmem>>, vector<36x48xf32>
    %cst = arith.constant dense<0.000000e+00> : vector<10x18x48xf32>
    %16 = tpu.matmul %14, %15, %cst {dimension_numbers = #tpu.dot_dimension_numbers<[2], [0], [0, 1], [1], [0, 0, 0, 1, 1, 1], [], []>} : vector<10x18x36xf32>, vector<36x48xf32>, vector<10x18x48xf32> -> vector<10x18x48xf32>
    %c0_4 = arith.constant 0 : index
    %c0_5 = arith.constant 0 : index
    %17 = vector.load %arg4[%c0_4, %c0_5] : memref<1x48xf32, #tpu.memory_space<vmem>>, vector<1x48xf32>
    %18 = vector.shape_cast %17 : vector<1x48xf32> to vector<1x1x48xf32>
    %19 = vector.broadcast %18 : vector<1x1x48xf32> to vector<10x18x48xf32>
    %20 = arith.addf %16, %19 : vector<10x18x48xf32>
    %cst_6 = arith.constant 0.000000e+00 : f32
    %21 = vector.broadcast %cst_6 : f32 to vector<10x18x48xf32>
    %22 = arith.cmpf ogt, %20, %21 : vector<10x18x48xf32>
    %cst_7 = arith.constant 2.000000e-01 : f32
    %23 = vector.broadcast %cst_7 : f32 to vector<10x18x48xf32>
    %24 = arith.mulf %23, %20 : vector<10x18x48xf32>
    %25 = arith.select %22, %20, %24 : vector<10x18x48xi1>, vector<10x18x48xf32>
    %26 = tpu.iota {dimensions = array<i32: 0>} : vector<10x18x1xi32>
    %27 = vector.broadcast %1 : i32 to vector<10x18x1xi32>
    %28 = arith.addi %27, %26 : vector<10x18x1xi32>
    %29 = tpu.iota {dimensions = array<i32: 1>} : vector<10x18x1xi32>
    %c1_i32 = arith.constant 1 : i32
    %30 = vector.broadcast %c1_i32 : i32 to vector<10x18x1xi32>
    %31 = arith.cmpi sge, %28, %30 : vector<10x18x1xi32>
    %c16_i32 = arith.constant 16 : i32
    %32 = vector.broadcast %c16_i32 : i32 to vector<10x18x1xi32>
    %33 = arith.cmpi sle, %28, %32 : vector<10x18x1xi32>
    %34 = arith.andi %31, %33 : vector<10x18x1xi1>
    %c1_i32_8 = arith.constant 1 : i32
    %35 = vector.broadcast %c1_i32_8 : i32 to vector<10x18x1xi32>
    %36 = arith.cmpi sge, %29, %35 : vector<10x18x1xi32>
    %37 = arith.andi %34, %36 : vector<10x18x1xi1>
    %c16_i32_9 = arith.constant 16 : i32
    %38 = vector.broadcast %c16_i32_9 : i32 to vector<10x18x1xi32>
    %39 = arith.cmpi sle, %29, %38 : vector<10x18x1xi32>
    %40 = arith.andi %37, %39 : vector<10x18x1xi1>
    %cst_10 = arith.constant 0.000000e+00 : f32
    %41 = vector.shape_cast %40 : vector<10x18x1xi1> to vector<10x18x1xi1>
    %42 = vector.broadcast %41 : vector<10x18x1xi1> to vector<10x18x48xi1>
    %43 = vector.broadcast %cst_10 : f32 to vector<10x18x48xf32>
    %44 = arith.select %42, %25, %43 : vector<10x18x48xi1>, vector<10x18x48xf32>
    %45 = vector.extract_strided_slice %44 {offsets = [0, 0, 0], sizes = [8, 16, 48], strides = [1, 1, 1]} : vector<10x18x48xf32> to vector<8x16x48xf32>
    %46 = vector.extract_strided_slice %44 {offsets = [0, 1, 0], sizes = [8, 16, 48], strides = [1, 1, 1]} : vector<10x18x48xf32> to vector<8x16x48xf32>
    %47 = vector.extract_strided_slice %44 {offsets = [0, 2, 0], sizes = [8, 16, 48], strides = [1, 1, 1]} : vector<10x18x48xf32> to vector<8x16x48xf32>
    %48 = vector.extract_strided_slice %44 {offsets = [1, 0, 0], sizes = [8, 16, 48], strides = [1, 1, 1]} : vector<10x18x48xf32> to vector<8x16x48xf32>
    %49 = vector.extract_strided_slice %44 {offsets = [1, 1, 0], sizes = [8, 16, 48], strides = [1, 1, 1]} : vector<10x18x48xf32> to vector<8x16x48xf32>
    %50 = vector.extract_strided_slice %44 {offsets = [1, 2, 0], sizes = [8, 16, 48], strides = [1, 1, 1]} : vector<10x18x48xf32> to vector<8x16x48xf32>
    %51 = vector.extract_strided_slice %44 {offsets = [2, 0, 0], sizes = [8, 16, 48], strides = [1, 1, 1]} : vector<10x18x48xf32> to vector<8x16x48xf32>
    %52 = vector.extract_strided_slice %44 {offsets = [2, 1, 0], sizes = [8, 16, 48], strides = [1, 1, 1]} : vector<10x18x48xf32> to vector<8x16x48xf32>
    %53 = vector.extract_strided_slice %44 {offsets = [2, 2, 0], sizes = [8, 16, 48], strides = [1, 1, 1]} : vector<10x18x48xf32> to vector<8x16x48xf32>
    %54 = tpu.concatenate %45, %46, %47, %48, %49, %50, %51, %52, %53 in 2 : vector<8x16x48xf32>, vector<8x16x48xf32>, vector<8x16x48xf32>, vector<8x16x48xf32>, vector<8x16x48xf32>, vector<8x16x48xf32>, vector<8x16x48xf32>, vector<8x16x48xf32>, vector<8x16x48xf32> -> vector<8x16x432xf32>
    %c0_11 = arith.constant 0 : index
    %c0_12 = arith.constant 0 : index
    %55 = vector.load %arg5[%c0_11, %c0_12] : memref<432x48xf32, #tpu.memory_space<vmem>>, vector<432x48xf32>
    %cst_13 = arith.constant dense<0.000000e+00> : vector<8x16x48xf32>
    %56 = tpu.matmul %54, %55, %cst_13 {dimension_numbers = #tpu.dot_dimension_numbers<[2], [0], [0, 1], [1], [0, 0, 0, 1, 1, 1], [], []>} : vector<8x16x432xf32>, vector<432x48xf32>, vector<8x16x48xf32> -> vector<8x16x48xf32>
    %c0_14 = arith.constant 0 : index
    %c0_15 = arith.constant 0 : index
    %57 = vector.load %arg6[%c0_14, %c0_15] : memref<1x48xf32, #tpu.memory_space<vmem>>, vector<1x48xf32>
    %58 = vector.shape_cast %57 : vector<1x48xf32> to vector<1x1x48xf32>
    %59 = vector.broadcast %58 : vector<1x1x48xf32> to vector<8x16x48xf32>
    %60 = arith.addf %56, %59 : vector<8x16x48xf32>
    %cst_16 = arith.constant 0.000000e+00 : f32
    %61 = vector.broadcast %cst_16 : f32 to vector<8x16x48xf32>
    %62 = arith.cmpf ogt, %60, %61 : vector<8x16x48xf32>
    %cst_17 = arith.constant 2.000000e-01 : f32
    %63 = vector.broadcast %cst_17 : f32 to vector<8x16x48xf32>
    %64 = arith.mulf %63, %60 : vector<8x16x48xf32>
    %65 = arith.select %62, %60, %64 : vector<8x16x48xi1>, vector<8x16x48xf32>
    %66 = vector.shape_cast %65 : vector<8x16x48xf32> to vector<128x48xf32>
    %c0_18 = arith.constant 0 : index
    %c0_19 = arith.constant 0 : index
    %67 = vector.load %arg7[%c0_18, %c0_19] : memref<4x48xf32, #tpu.memory_space<vmem>>, vector<4x48xf32>
    %cst_20 = arith.constant dense<0.000000e+00> : vector<4x128xf32>
    %68 = tpu.matmul %67, %66, %cst_20 {dimension_numbers = #tpu.dot_dimension_numbers<[1], [1], [0], [0], [0, 0, 1, 0], [], []>} : vector<4x48xf32>, vector<128x48xf32>, vector<4x128xf32> -> vector<4x128xf32>
    %c0_21 = arith.constant 0 : index
    %c0_22 = arith.constant 0 : index
    %69 = vector.load %arg8[%c0_21, %c0_22] : memref<4x1xf32, #tpu.memory_space<vmem>>, vector<4x1xf32>
    %70 = vector.broadcast %69 : vector<4x1xf32> to vector<4x128xf32>
    %71 = arith.addf %68, %70 : vector<4x128xf32>
    %c0_23 = arith.constant 0 : index
    %c0_24 = arith.constant 0 : index
    %c0_25 = arith.constant 0 : index
    %72 = vector.load %arg9[%c0_23, %c0_24, %c0_25] : memref<1x4x128xf32, #tpu.memory_space<vmem>>, vector<1x4x128xf32>
    %73 = vector.shape_cast %72 : vector<1x4x128xf32> to vector<4x128xf32>
    %74 = vector.shape_cast %71 : vector<4x128xf32> to vector<1x4x128xf32>
    tpu.vector_store %arg9[%c0_23, %c0_24, %c0_25], %74 {strides = array<i32>} : memref<1x4x128xf32, #tpu.memory_space<vmem>>, vector<1x4x128xf32>,
    return
  }
  func.func @transform_0(%arg0: i32, %arg1: i32) -> (i32, i32, i32, i32) {
    %c0_i32 = arith.constant 0 : i32
    %c0_i32_0 = arith.constant 0 : i32
    %c0_i32_1 = arith.constant 0 : i32
    %c0_i32_2 = arith.constant 0 : i32
    return %arg0, %c0_i32, %c0_i32_0, %c0_i32_1 : i32, i32, i32, i32
  }
  func.func @transform_1(%arg0: i32, %arg1: i32) -> (i32, i32) {
    %c0_i32 = arith.constant 0 : i32
    %c0_i32_0 = arith.constant 0 : i32
    %c0_i32_1 = arith.constant 0 : i32
    return %c0_i32, %c0_i32_0 : i32, i32
  }
  func.func @transform_2(%arg0: i32, %arg1: i32) -> (i32, i32) {
    %c0_i32 = arith.constant 0 : i32
    %c0_i32_0 = arith.constant 0 : i32
    %c0_i32_1 = arith.constant 0 : i32
    return %c0_i32, %c0_i32_0 : i32, i32
  }
  func.func @transform_3(%arg0: i32, %arg1: i32) -> (i32, i32) {
    %c0_i32 = arith.constant 0 : i32
    %c0_i32_0 = arith.constant 0 : i32
    %c0_i32_1 = arith.constant 0 : i32
    return %c0_i32, %c0_i32_0 : i32, i32
  }
  func.func @transform_4(%arg0: i32, %arg1: i32) -> (i32, i32) {
    %c0_i32 = arith.constant 0 : i32
    %c0_i32_0 = arith.constant 0 : i32
    %c0_i32_1 = arith.constant 0 : i32
    return %c0_i32, %c0_i32_0 : i32, i32
  }
  func.func @transform_5(%arg0: i32, %arg1: i32) -> (i32, i32) {
    %c0_i32 = arith.constant 0 : i32
    %c0_i32_0 = arith.constant 0 : i32
    %c0_i32_1 = arith.constant 0 : i32
    return %c0_i32, %c0_i32_0 : i32, i32
  }
  func.func @transform_6(%arg0: i32, %arg1: i32) -> (i32, i32) {
    %c0_i32 = arith.constant 0 : i32
    %c0_i32_0 = arith.constant 0 : i32
    %c0_i32_1 = arith.constant 0 : i32
    return %c0_i32, %c0_i32_0 : i32, i32
  }
  func.func @transform_7(%arg0: i32, %arg1: i32) -> (i32, i32, i32) {
    %c0_i32 = arith.constant 0 : i32
    %c0_i32_0 = arith.constant 0 : i32
    return %arg0, %c0_i32, %arg1 : i32, i32, i32
  }
}

</mosaic_0001>

<llo_original>
// kernel: network_forward.1
$region0: #{network_forward.1}
  #allocation0 [shape = 'u32[]', space=smem, size = 0x4, offset = 0x4, fixed_abs, tag = 'smem constant byte address 0x4 - core index']
  #allocation1 [shape = 'u32[144,128]{1,0:T(1,128)}', space=vmem, size = 0x12000, scoped, tag = 'internal scratch']
  %s0 = inlined_call_operand.vmem [shape: f32[2,20,20,4], index: 0, kind: input, shape index: {}]
  %s1 = inlined_call_operand.vmem [shape: f32[36,48], index: 1, kind: input, shape index: {}]
  %s2 = inlined_call_operand.vmem [shape: f32[1,48], index: 2, kind: input, shape index: {}]
  %s3 = inlined_call_operand.vmem [shape: f32[432,48], index: 3, kind: input, shape index: {}]
  %s4 = inlined_call_operand.vmem [shape: f32[1,48], index: 4, kind: input, shape index: {}]
  %s5 = inlined_call_operand.vmem [shape: f32[4,48], index: 5, kind: input, shape index: {}]
  %s6 = inlined_call_operand.vmem [shape: f32[4,1], index: 6, kind: input, shape index: {}]
  %s7 = inlined_call_operand.vmem [shape: f32[2,4,256], index: 7, kind: output, shape index: {}]
  %s8 = sld [smem:[#allocation0]]
  $region61: #{network_forward.1} parent=0
    _
  %s10 = ssub.s32 1, %s8
  %s11 = scalar_select 0, %s10, %s8
  loop: start=0, step=1, limit=6
  $region2: #{network_forward.1} parent=0 // loop_pre_header
    _
  $region3: #{network_forward.1} parent=0 // loop_header
    %s13 = sphi 0, %s17
    %p14 = scmp.ge.s32.totalorder %s13, 6
    %s20 = sphi 0, %s32
    %s21 = sphi 0, %s28
    %s22 = sphi 0, %s20
    %s23 = sphi 0, %s21
    %s24 = sphi 0, %s22
    %s25 = sphi 0, %s23
    %s35 = sphi 0, %s37
    %s38 = sphi 0, %s35
    %s39 = sphi 0, %s38
    %s55 = sphi 0, %s39
    %s59 = sphi 0, %s59
    %s61 = sphi 0, %s59
    %s62 = sphi 0, %s61
    %s76 = sphi 0, %s62
    %s80 = sphi 0, %s80
    %s82 = sphi 0, %s80
    %s83 = sphi 0, %s82
    %s97 = sphi 0, %s83
    %s101 = sphi 0, %s101
    %s103 = sphi 0, %s101
    %s104 = sphi 0, %s103
    %s118 = sphi 0, %s104
    %s122 = sphi 0, %s122
    %s124 = sphi 0, %s122
    %s125 = sphi 0, %s124
    %s139 = sphi 0, %s125
    %s143 = sphi 0, %s143
    %s145 = sphi 0, %s143
    %s146 = sphi 0, %s145
    %s160 = sphi 0, %s146
    %s164 = sphi 0, %s164
    %s166 = sphi 0, %s164
    %s167 = sphi 0, %s166
    %s181 = sphi 0, %s167
    %s189 = sphi 0, %s191
    %s192 = sphi 0, %s189
    %s193 = sphi 0, %s192
    %s209 = sphi 0, %s193
  $region4: #{network_forward.1} parent=0 // loop_header_branch
    %16 = sbr.rel (%p14) target = $region8
  $region5: #{network_forward.1} parent=0 // loop_body
    %s18 = ssub.s32 %s13, 1
    %s19 = ssub.s32 %s13, 2
    %s26 = sadd.s32 1, %s21
    %p27 = scmp.ge.s32.totalorder %s26, 2
    %s28 = scalar_select %p27, 0, %s26
    %s29 = sadd.s32 1, %s20
    %s30 = scalar_select %p27, %s29, %s20
    %p31 = scmp.ge.s32.totalorder %s30, 2
    %s32 = scalar_select %p31, 0, %s30
    %s33 = ssub.s32 %s20, %s32
    %p34 = scmp.eq.s32.totalorder %s33, 0
    %s36 = sadd.s32 %s35, 1
    %s37 = scalar_select %p34, %s35, %s36
    %p40 = pneg %p34
    %p41 = scmp.eq.s32.totalorder %s13, 3
    %p42 = por %p40, %p41
    %p43 = scmp.ne.s32.totalorder %s35, %s38
    %p44 = scmp.eq.s32.totalorder %s13, 0
    %p45 = por %p43, %p44
    %p46 = scmp.ne.s32.totalorder %s35, %s38
    %p47 = scmp.eq.s32.totalorder %s18, 3
    %p48 = por %p46, %p47
    %p49 = scmp.ne.s32.totalorder %s38, %s39
    %p50 = scmp.eq.s32.totalorder %s18, 0
    %p51 = por %p49, %p50
    %p52 = scmp.ne.s32.totalorder %s38, %s39
    %p53 = scmp.eq.s32.totalorder %s19, 3
    %p54 = por %p52, %p53
    %p56 = scmp.ne.s32.totalorder %s39, %s55
    %p57 = scmp.eq.s32.totalorder %s19, 0
    %p58 = por %p56, %p57
    %s60 = sadd.s32 %s59, 1
    %p63 = scmp.eq.s32.totalorder %s13, 3
    %p64 = scmp.ne.s32.totalorder %s59, %s61
    %p65 = scmp.eq.s32.totalorder %s13, 0
    %p66 = por %p64, %p65
    %p67 = scmp.ne.s32.totalorder %s59, %s61
    %p68 = scmp.eq.s32.totalorder %s18, 3
    %p69 = por %p67, %p68
    %p70 = scmp.ne.s32.totalorder %s61, %s62
    %p71 = scmp.eq.s32.totalorder %s18, 0
    %p72 = por %p70, %p71
    %p73 = scmp.ne.s32.totalorder %s61, %s62
    %p74 = scmp.eq.s32.totalorder %s19, 3
    %p75 = por %p73, %p74
    %p77 = scmp.ne.s32.totalorder %s62, %s76
    %p78 = scmp.eq.s32.totalorder %s19, 0
    %p79 = por %p77, %p78
    %s81 = sadd.s32 %s80, 1
    %p84 = scmp.eq.s32.totalorder %s13, 3
    %p85 = scmp.ne.s32.totalorder %s80, %s82
    %p86 = scmp.eq.s32.totalorder %s13, 0
    %p87 = por %p85, %p86
    %p88 = scmp.ne.s32.totalorder %s80, %s82
    %p89 = scmp.eq.s32.totalorder %s18, 3
    %p90 = por %p88, %p89
    %p91 = scmp.ne.s32.totalorder %s82, %s83
    %p92 = scmp.eq.s32.totalorder %s18, 0
    %p93 = por %p91, %p92
    %p94 = scmp.ne.s32.totalorder %s82, %s83
    %p95 = scmp.eq.s32.totalorder %s19, 3
    %p96 = por %p94, %p95
    %p98 = scmp.ne.s32.totalorder %s83, %s97
    %p99 = scmp.eq.s32.totalorder %s19, 0
    %p100 = por %p98, %p99
    %s102 = sadd.s32 %s101, 1
    %p105 = scmp.eq.s32.totalorder %s13, 3
    %p106 = scmp.ne.s32.totalorder %s101, %s103
    %p107 = scmp.eq.s32.totalorder %s13, 0
    %p108 = por %p106, %p107
    %p109 = scmp.ne.s32.totalorder %s101, %s103
    %p110 = scmp.eq.s32.totalorder %s18, 3
    %p111 = por %p109, %p110
    %p112 = scmp.ne.s32.totalorder %s103, %s104
    %p113 = scmp.eq.s32.totalorder %s18, 0
    %p114 = por %p112, %p113
    %p115 = scmp.ne.s32.totalorder %s103, %s104
    %p116 = scmp.eq.s32.totalorder %s19, 3
    %p117 = por %p115, %p116
    %p119 = scmp.ne.s32.totalorder %s104, %s118
    %p120 = scmp.eq.s32.totalorder %s19, 0
    %p121 = por %p119, %p120
    %s123 = sadd.s32 %s122, 1
    %p126 = scmp.eq.s32.totalorder %s13, 3
    %p127 = scmp.ne.s32.totalorder %s122, %s124
    %p128 = scmp.eq.s32.totalorder %s13, 0
    %p129 = por %p127, %p128
    %p130 = scmp.ne.s32.totalorder %s122, %s124
    %p131 = scmp.eq.s32.totalorder %s18, 3
    %p132 = por %p130, %p131
    %p133 = scmp.ne.s32.totalorder %s124, %s125
    %p134 = scmp.eq.s32.totalorder %s18, 0
    %p135 = por %p133, %p134
    %p136 = scmp.ne.s32.totalorder %s124, %s125
    %p137 = scmp.eq.s32.totalorder %s19, 3
    %p138 = por %p136, %p137
    %p140 = scmp.ne.s32.totalorder %s125, %s139
    %p141 = scmp.eq.s32.totalorder %s19, 0
    %p142 = por %p140, %p141
    %s144 = sadd.s32 %s143, 1
    %p147 = scmp.eq.s32.totalorder %s13, 3
    %p148 = scmp.ne.s32.totalorder %s143, %s145
    %p149 = scmp.eq.s32.totalorder %s13, 0
    %p150 = por %p148, %p149
    %p151 = scmp.ne.s32.totalorder %s143, %s145
    %p152 = scmp.eq.s32.totalorder %s18, 3
    %p153 = por %p151, %p152
    %p154 = scmp.ne.s32.totalorder %s145, %s146
    %p155 = scmp.eq.s32.totalorder %s18, 0
    %p156 = por %p154, %p155
    %p157 = scmp.ne.s32.totalorder %s145, %s146
    %p158 = scmp.eq.s32.totalorder %s19, 3
    %p159 = por %p157, %p158
    %p161 = scmp.ne.s32.totalorder %s146, %s160
    %p162 = scmp.eq.s32.totalorder %s19, 0
    %p163 = por %p161, %p162
    %s165 = sadd.s32 %s164, 1
    %p168 = scmp.eq.s32.totalorder %s13, 3
    %p169 = scmp.ne.s32.totalorder %s164, %s166
    %p170 = scmp.eq.s32.totalorder %s13, 0
    %p171 = por %p169, %p170
    %p172 = scmp.ne.s32.totalorder %s164, %s166
    %p173 = scmp.eq.s32.totalorder %s18, 3
    %p174 = por %p172, %p173
    %p175 = scmp.ne.s32.totalorder %s166, %s167
    %p176 = scmp.eq.s32.totalorder %s18, 0
    %p177 = por %p175, %p176
    %p178 = scmp.ne.s32.totalorder %s166, %s167
    %p179 = scmp.eq.s32.totalorder %s19, 3
    %p180 = por %p178, %p179
    %p182 = scmp.ne.s32.totalorder %s167, %s181
    %p183 = scmp.eq.s32.totalorder %s19, 0
    %p184 = por %p182, %p183
    %s185 = ssub.s32 %s20, %s32
    %s186 = ssub.s32 %s21, %s28
    %s187 = sor.u32 %s185, %s186
    %p188 = scmp.eq.s32.totalorder %s187, 0
    %s190 = sadd.s32 %s189, 1
    %s191 = scalar_select %p188, %s189, %s190
    %p194 = pneg %p188
    %p195 = scmp.eq.s32.totalorder %s13, 3
    %p196 = por %p194, %p195
    %p197 = scmp.ne.s32.totalorder %s189, %s192
    %p198 = scmp.eq.s32.totalorder %s13, 0
    %p199 = por %p197, %p198
    %p200 = scmp.ne.s32.totalorder %s189, %s192
    %p201 = scmp.eq.s32.totalorder %s18, 3
    %p202 = por %p200, %p201
    %p203 = scmp.ne.s32.totalorder %s192, %s193
    %p204 = scmp.eq.s32.totalorder %s18, 0
    %p205 = por %p203, %p204
    %p206 = scmp.ne.s32.totalorder %s192, %s193
    %p207 = scmp.eq.s32.totalorder %s19, 3
    %p208 = por %p206, %p207
    %p210 = scmp.ne.s32.totalorder %s193, %s209
    %p211 = scmp.eq.s32.totalorder %s19, 0
    %p212 = por %p210, %p211
    %p213 = scmp.le.s32.totalorder 1, %s13
    %p214 = scmp.lt.s32.totalorder %s13, 5
    %p215 = pnand %p213, %p214
    %p216 = pneg %p215
    // Predicated region
    $region9: #{network_forward.1} parent=5 // pred_check
      _
    $region10: #{network_forward.1} parent=5 // pred_check_branch
      %218 = sbr.rel (%p215) target = $region12
    $region11: #{network_forward.1} parent=5 // pred_region
      %s219 = ssub.s32 %s13, 1
      // Predicated region
      $region13: #{network_forward.1} parent=11 // pred_check
        %p220 = pneg %p72
      $region14: #{network_forward.1} parent=11 // pred_check_branch
        %222 = sbr.rel (%p220) target = $region16
      $region15: #{network_forward.1} parent=11 // pred_region
        _
      $region16: #{network_forward.1} parent=11 // pred_fallthru
        _
      // Predicated region
      $region17: #{network_forward.1} parent=11 // pred_check
        %p223 = pneg %p93
      $region18: #{network_forward.1} parent=11 // pred_check_branch
        %225 = sbr.rel (%p223) target = $region20
      $region19: #{network_forward.1} parent=11 // pred_region
        _
      $region20: #{network_forward.1} parent=11 // pred_fallthru
        _
      // Predicated region
      $region21: #{network_forward.1} parent=11 // pred_check
        %p226 = pneg %p114
      $region22: #{network_forward.1} parent=11 // pred_check_branch
        %228 = sbr.rel (%p226) target = $region24
      $region23: #{network_forward.1} parent=11 // pred_region
        _
      $region24: #{network_forward.1} parent=11 // pred_fallthru
        _
      // Predicated region
      $region25: #{network_forward.1} parent=11 // pred_check
        %p229 = pneg %p135
      $region26: #{network_forward.1} parent=11 // pred_check_branch
        %231 = sbr.rel (%p229) target = $region28
      $region27: #{network_forward.1} parent=11 // pred_region
        _
      $region28: #{network_forward.1} parent=11 // pred_fallthru
        _
      // Predicated region
      $region29: #{network_forward.1} parent=11 // pred_check
        %p232 = pneg %p156
      $region30: #{network_forward.1} parent=11 // pred_check_branch
        %234 = sbr.rel (%p232) target = $region32
      $region31: #{network_forward.1} parent=11 // pred_region
        _
      $region32: #{network_forward.1} parent=11 // pred_fallthru
        _
      // Predicated region
      $region33: #{network_forward.1} parent=11 // pred_check
        %p235 = pneg %p177
      $region34: #{network_forward.1} parent=11 // pred_check_branch
        %237 = sbr.rel (%p235) target = $region36
      $region35: #{network_forward.1} parent=11 // pred_region
        _
      $region36: #{network_forward.1} parent=11 // pred_fallthru
        _
    $region12: #{network_forward.1} parent=5 // pred_fallthru
      _
    %p238 = scmp.lt.s32.totalorder %s13, 4
    // Predicated region
    $region37: #{network_forward.1} parent=5 // pred_check
      %p239 = pneg %p238
    $region38: #{network_forward.1} parent=5 // pred_check_branch
      %241 = sbr.rel (%p239) target = $region40
    $region39: #{network_forward.1} parent=5 // pred_region
      // Predicated region
      $region41: #{network_forward.1} parent=39 // pred_check
        %p242 = pneg %p45
      $region42: #{network_forward.1} parent=39 // pred_check_branch
        %244 = sbr.rel (%p242) target = $region44
      $region43: #{network_forward.1} parent=39 // pred_region
        %p245 = scmp.lt.s32.totalorder %s20, 1
        %s246 = scalar_select %p245, %s20, 1
        %s247 = smul.addr %s246, 60
        %s248 = smul.addr %s247, 8
        %s249 = scalar_lea.vmem %s0, %s248
      $region44: #{network_forward.1} parent=39 // pred_fallthru
        _
    $region40: #{network_forward.1} parent=5 // pred_fallthru
      _
    %p250 = scmp.le.s32.totalorder 1, %s13
    %p251 = scmp.lt.s32.totalorder %s13, 5
    %p252 = pnand %p250, %p251
    %p253 = pneg %p252
    // Predicated region
    $region45: #{network_forward.1} parent=5 // pred_check
      _
    $region46: #{network_forward.1} parent=5 // pred_check_branch
      %255 = sbr.rel (%p252) target = $region48
    $region47: #{network_forward.1} parent=5 // pred_region
      %s256 = ssub.s32 %s13, 1
      %p257 = scmp.lt.s32.totalorder %s22, 1
      %s258 = scalar_select %p257, %s22, 1
      %s259 = smul.addr %s258, 60
      %s260 = smul.addr %s259, 8
      %s261 = scalar_lea.vmem %s0, %s260
      %p262 = pneg %p51
      %p263 = pneg %p48
      %p264 = pneg %p72
      %p265 = pneg %p69
      %p266 = pneg %p93
      %p267 = pneg %p90
      %p268 = pneg %p114
      %p269 = pneg %p111
      %p270 = pneg %p135
      %p271 = pneg %p132
      %p272 = pneg %p156
      %p273 = pneg %p153
      %p274 = pneg %p177
      %p275 = pneg %p174
      %p276 = pneg %p205
      %p277 = pneg %p202
      %p278 = scmp.lt.s32.totalorder %s22, 1
      %s279 = scalar_select %p278, %s22, 1
      %p280 = scmp.lt.s32.totalorder %s23, 1
      %s281 = scalar_select %p280, %s23, 1
      %s282 = smul.addr %s279, 2
      %s283 = sadd.s32 %s281, %s282
      %s284 = smul.addr %s283, 4
      %s285 = scalar_lea.vmem %s7, %s284
      %p286 = scmp.lt.s32.totalorder %s22, 1
      %s287 = scalar_select %p286, %s22, 1
      %s288 = smul.addr %s287, 60
      %s289 = smul.addr %s288, 8
      %s290 = scalar_lea.vmem %s0, %s289
      %p291 = scmp.lt.s32.totalorder %s22, 1
      %s292 = scalar_select %p291, %s22, 1
      %p293 = scmp.lt.s32.totalorder %s23, 1
      %s294 = scalar_select %p293, %s23, 1
      %s295 = smul.addr %s292, 2
      %s296 = sadd.s32 %s294, %s295
      %s297 = smul.addr %s296, 4
      %s298 = scalar_lea.vmem %s7, %s297
      %s299 = smul.u32 %s23, 8
      %s300 = smul.u32 %s299, 24
      %s301 = scalar_lea.vmem %s290, %s300
      %v302 = vld [vmem:[%s301] sm:$0xff]
      %v303 = vld [vmem:[%s301 + $0x8] sm:$0xff]
      %v304 = vld [vmem:[%s301 + $0x10] sm:$0xf]
      %v305 = vld [vmem:[%s301 + $0x18] sm:$0xff]
      %v306 = vld [vmem:[%s301 + $0x20] sm:$0xff]
      %v307 = vld [vmem:[%s301 + $0x28] sm:$0xf]
      %v308 = vld [vmem:[%s301 + $0x30] sm:$0xff]
      %v309 = vld [vmem:[%s301 + $0x38] sm:$0xff]
      %v310 = vld [vmem:[%s301 + $0x40] sm:$0xf]
      %v311 = vld [vmem:[%s301 + $0x48] sm:$0xff]
      %v312 = vld [vmem:[%s301 + $0x50] sm:$0xff]
      %v313 = vld [vmem:[%s301 + $0x58] sm:$0xf]
      %v314 = vld [vmem:[%s301 + $0x60] sm:$0xff]
      %v315 = vld [vmem:[%s301 + $0x68] sm:$0xff]
      %v316 = vld [vmem:[%s301 + $0x70] sm:$0xf]
      %v317 = vld [vmem:[%s301 + $0x78] sm:$0xff]
      %v318 = vld [vmem:[%s301 + $0x80] sm:$0xff]
      %v319 = vld [vmem:[%s301 + $0x88] sm:$0xf]
      %v320 = vld [vmem:[%s301 + $0x90] sm:$0xff]
      %v321 = vld [vmem:[%s301 + $0x98] sm:$0xff]
      %v322 = vld [vmem:[%s301 + $0xa0] sm:$0xf]
      %v323 = vld [vmem:[%s301 + $0xa8] sm:$0xff]
      %v324 = vld [vmem:[%s301 + $0xb0] sm:$0xff]
      %v325 = vld [vmem:[%s301 + $0xb8] sm:$0xf]
      %v326 = vld [vmem:[%s301 + $0xc0] sm:$0xff]
      %v327 = vld [vmem:[%s301 + $0xc8] sm:$0xff]
      %v328 = vld [vmem:[%s301 + $0xd0] sm:$0xf]
      %v329 = vld [vmem:[%s301 + $0xd8] sm:$0xff]
      %v330 = vld [vmem:[%s301 + $0xe0] sm:$0xff]
      %v331 = vld [vmem:[%s301 + $0xe8] sm:$0xf]
      %v332 = vld [vmem:[%s301 + $0xf0] sm:$0xff]
      %v333 = vld [vmem:[%s301 + $0xf8] sm:$0xff]
      %v334 = vld [vmem:[%s301 + $0x100] sm:$0xf]
      %v335 = vld [vmem:[%s301 + $0x108] sm:$0xff]
      %v336 = vld [vmem:[%s301 + $0x110] sm:$0xff]
      %v337 = vld [vmem:[%s301 + $0x118] sm:$0xf]
      %vm368 = vcmask 1046528
      %v369 = vrot.slane %v302, 1
      %v370 = vrot.slane %v303, 1
      %v371 = vsel %vm368, %v369, %v370
      %v372 = vrot.slane %v304, 1
      %v373 = vsel %vm368, %v370, %v372
      %v374 = vrot.slane %v305, 1
      %v375 = vrot.slane %v306, 1
      %v376 = vsel %vm368, %v374, %v375
      %v377 = vrot.slane %v307, 1
      %v378 = vsel %vm368, %v375, %v377
      %v379 = vrot.slane %v308, 1
      %v380 = vrot.slane %v309, 1
      %v381 = vsel %vm368, %v379, %v380
      %v382 = vrot.slane %v310, 1
      %v383 = vsel %vm368, %v380, %v382
      %v384 = vrot.slane %v311, 1
      %v385 = vrot.slane %v312, 1
      %v386 = vsel %vm368, %v384, %v385
      %v387 = vrot.slane %v313, 1
      %v388 = vsel %vm368, %v385, %v387
      %v389 = vrot.slane %v314, 1
      %v390 = vrot.slane %v315, 1
      %v391 = vsel %vm368, %v389, %v390
      %v392 = vrot.slane %v316, 1
      %v393 = vsel %vm368, %v390, %v392
      %v394 = vrot.slane %v317, 1
      %v395 = vrot.slane %v318, 1
      %v396 = vsel %vm368, %v394, %v395
      %v397 = vrot.slane %v319, 1
      %v398 = vsel %vm368, %v395, %v397
      %v399 = vrot.slane %v320, 1
      %v400 = vrot.slane %v321, 1
      %v401 = vsel %vm368, %v399, %v400
      %v402 = vrot.slane %v322, 1
      %v403 = vsel %vm368, %v400, %v402
      %v404 = vrot.slane %v323, 1
      %v405 = vrot.slane %v324, 1
      %v406 = vsel %vm368, %v404, %v405
      %v407 = vrot.slane %v325, 1
      %v408 = vsel %vm368, %v405, %v407
      %v409 = vrot.slane %v326, 1
      %v410 = vrot.slane %v327, 1
      %v411 = vsel %vm368, %v409, %v410
      %v412 = vrot.slane %v328, 1
      %v413 = vsel %vm368, %v410, %v412
      %v414 = vrot.slane %v329, 1
      %v415 = vrot.slane %v330, 1
      %v416 = vsel %vm368, %v414, %v415
      %v417 = vrot.slane %v331, 1
      %v418 = vsel %vm368, %v415, %v417
      %419 = vrot.lane.b32.xlu0 %v371, 4
      %v420 = vpop.permute.xlu0 %419
      %421 = vrot.lane.b32.xlu0 %v373, 4
      %v422 = vpop.permute.xlu0 %421
      %423 = vrot.lane.b32.xlu0 %v372, 4
      %v424 = vpop.permute.xlu0 %423
      %425 = vrot.lane.b32.xlu0 %v376, 4
      %v426 = vpop.permute.xlu0 %425
      %427 = vrot.lane.b32.xlu0 %v378, 4
      %v428 = vpop.permute.xlu0 %427
      %429 = vrot.lane.b32.xlu0 %v377, 4
      %v430 = vpop.permute.xlu0 %429
      %431 = vrot.lane.b32.xlu0 %v381, 4
      %v432 = vpop.permute.xlu0 %431
      %433 = vrot.lane.b32.xlu0 %v383, 4
      %v434 = vpop.permute.xlu0 %433
      %435 = vrot.lane.b32.xlu0 %v382, 4
      %v436 = vpop.permute.xlu0 %435
      %437 = vrot.lane.b32.xlu0 %v386, 4
      %v438 = vpop.permute.xlu0 %437
      %439 = vrot.lane.b32.xlu0 %v388, 4
      %v440 = vpop.permute.xlu0 %439
      %441 = vrot.lane.b32.xlu0 %v387, 4
      %v442 = vpop.permute.xlu0 %441
      %443 = vrot.lane.b32.xlu0 %v391, 4
      %v444 = vpop.permute.xlu0 %443
      %445 = vrot.lane.b32.xlu0 %v393, 4
      %v446 = vpop.permute.xlu0 %445
      %447 = vrot.lane.b32.xlu0 %v392, 4
      %v448 = vpop.permute.xlu0 %447
      %449 = vrot.lane.b32.xlu0 %v396, 4
      %v450 = vpop.permute.xlu0 %449
      %451 = vrot.lane.b32.xlu0 %v398, 4
      %v452 = vpop.permute.xlu0 %451
      %453 = vrot.lane.b32.xlu0 %v397, 4
      %v454 = vpop.permute.xlu0 %453
      %455 = vrot.lane.b32.xlu0 %v401, 4
      %v456 = vpop.permute.xlu0 %455
      %457 = vrot.lane.b32.xlu0 %v403, 4
      %v458 = vpop.permute.xlu0 %457
      %459 = vrot.lane.b32.xlu0 %v402, 4
      %v460 = vpop.permute.xlu0 %459
      %461 = vrot.lane.b32.xlu0 %v406, 4
      %v462 = vpop.permute.xlu0 %461
      %463 = vrot.lane.b32.xlu0 %v408, 4
      %v464 = vpop.permute.xlu0 %463
      %465 = vrot.lane.b32.xlu0 %v407, 4
      %v466 = vpop.permute.xlu0 %465
      %467 = vrot.lane.b32.xlu0 %v411, 4
      %v468 = vpop.permute.xlu0 %467
      %469 = vrot.lane.b32.xlu0 %v413, 4
      %v470 = vpop.permute.xlu0 %469
      %471 = vrot.lane.b32.xlu0 %v412, 4
      %v472 = vpop.permute.xlu0 %471
      %473 = vrot.lane.b32.xlu0 %v416, 4
      %v474 = vpop.permute.xlu0 %473
      %475 = vrot.lane.b32.xlu0 %v418, 4
      %v476 = vpop.permute.xlu0 %475
      %477 = vrot.lane.b32.xlu0 %v417, 4
      %v478 = vpop.permute.xlu0 %477
      %vm509 = vcmask 1045504
      %v510 = vrot.slane %v302, 2
      %v511 = vrot.slane %v303, 2
      %v512 = vsel %vm509, %v510, %v511
      %v513 = vrot.slane %v304, 2
      %v514 = vsel %vm509, %v511, %v513
      %v515 = vrot.slane %v305, 2
      %v516 = vrot.slane %v306, 2
      %v517 = vsel %vm509, %v515, %v516
      %v518 = vrot.slane %v307, 2
      %v519 = vsel %vm509, %v516, %v518
      %v520 = vrot.slane %v308, 2
      %v521 = vrot.slane %v309, 2
      %v522 = vsel %vm509, %v520, %v521
      %v523 = vrot.slane %v310, 2
      %v524 = vsel %vm509, %v521, %v523
      %v525 = vrot.slane %v311, 2
      %v526 = vrot.slane %v312, 2
      %v527 = vsel %vm509, %v525, %v526
      %v528 = vrot.slane %v313, 2
      %v529 = vsel %vm509, %v526, %v528
      %v530 = vrot.slane %v314, 2
      %v531 = vrot.slane %v315, 2
      %v532 = vsel %vm509, %v530, %v531
      %v533 = vrot.slane %v316, 2
      %v534 = vsel %vm509, %v531, %v533
      %v535 = vrot.slane %v317, 2
      %v536 = vrot.slane %v318, 2
      %v537 = vsel %vm509, %v535, %v536
      %v538 = vrot.slane %v319, 2
      %v539 = vsel %vm509, %v536, %v538
      %v540 = vrot.slane %v320, 2
      %v541 = vrot.slane %v321, 2
      %v542 = vsel %vm509, %v540, %v541
      %v543 = vrot.slane %v322, 2
      %v544 = vsel %vm509, %v541, %v543
      %v545 = vrot.slane %v323, 2
      %v546 = vrot.slane %v324, 2
      %v547 = vsel %vm509, %v545, %v546
      %v548 = vrot.slane %v325, 2
      %v549 = vsel %vm509, %v546, %v548
      %v550 = vrot.slane %v326, 2
      %v551 = vrot.slane %v327, 2
      %v552 = vsel %vm509, %v550, %v551
      %v553 = vrot.slane %v328, 2
      %v554 = vsel %vm509, %v551, %v553
      %v555 = vrot.slane %v329, 2
      %v556 = vrot.slane %v330, 2
      %v557 = vsel %vm509, %v555, %v556
      %v558 = vrot.slane %v331, 2
      %v559 = vsel %vm509, %v556, %v558
      %560 = vrot.lane.b32.xlu0 %v512, 8
      %v561 = vpop.permute.xlu0 %560
      %562 = vrot.lane.b32.xlu0 %v514, 8
      %v563 = vpop.permute.xlu0 %562
      %564 = vrot.lane.b32.xlu0 %v513, 8
      %v565 = vpop.permute.xlu0 %564
      %566 = vrot.lane.b32.xlu0 %v517, 8
      %v567 = vpop.permute.xlu0 %566
      %568 = vrot.lane.b32.xlu0 %v519, 8
      %v569 = vpop.permute.xlu0 %568
      %570 = vrot.lane.b32.xlu0 %v518, 8
      %v571 = vpop.permute.xlu0 %570
      %572 = vrot.lane.b32.xlu0 %v522, 8
      %v573 = vpop.permute.xlu0 %572
      %574 = vrot.lane.b32.xlu0 %v524, 8
      %v575 = vpop.permute.xlu0 %574
      %576 = vrot.lane.b32.xlu0 %v523, 8
      %v577 = vpop.permute.xlu0 %576
      %578 = vrot.lane.b32.xlu0 %v527, 8
      %v579 = vpop.permute.xlu0 %578
      %580 = vrot.lane.b32.xlu0 %v529, 8
      %v581 = vpop.permute.xlu0 %580
      %582 = vrot.lane.b32.xlu0 %v528, 8
      %v583 = vpop.permute.xlu0 %582
      %584 = vrot.lane.b32.xlu0 %v532, 8
      %v585 = vpop.permute.xlu0 %584
      %586 = vrot.lane.b32.xlu0 %v534, 8
      %v587 = vpop.permute.xlu0 %586
      %588 = vrot.lane.b32.xlu0 %v533, 8
      %v589 = vpop.permute.xlu0 %588
      %590 = vrot.lane.b32.xlu0 %v537, 8
      %v591 = vpop.permute.xlu0 %590
      %592 = vrot.lane.b32.xlu0 %v539, 8
      %v593 = vpop.permute.xlu0 %592
      %594 = vrot.lane.b32.xlu0 %v538, 8
      %v595 = vpop.permute.xlu0 %594
      %596 = vrot.lane.b32.xlu0 %v542, 8
      %v597 = vpop.permute.xlu0 %596
      %598 = vrot.lane.b32.xlu0 %v544, 8
      %v599 = vpop.permute.xlu0 %598
      %600 = vrot.lane.b32.xlu0 %v543, 8
      %v601 = vpop.permute.xlu0 %600
      %602 = vrot.lane.b32.xlu0 %v547, 8
      %v603 = vpop.permute.xlu0 %602
      %604 = vrot.lane.b32.xlu0 %v549, 8
      %v605 = vpop.permute.xlu0 %604
      %606 = vrot.lane.b32.xlu0 %v548, 8
      %v607 = vpop.permute.xlu0 %606
      %608 = vrot.lane.b32.xlu0 %v552, 8
      %v609 = vpop.permute.xlu0 %608
      %610 = vrot.lane.b32.xlu0 %v554, 8
      %v611 = vpop.permute.xlu0 %610
      %612 = vrot.lane.b32.xlu0 %v553, 8
      %v613 = vpop.permute.xlu0 %612
      %614 = vrot.lane.b32.xlu0 %v557, 8
      %v615 = vpop.permute.xlu0 %614
      %616 = vrot.lane.b32.xlu0 %v559, 8
      %v617 = vpop.permute.xlu0 %616
      %618 = vrot.lane.b32.xlu0 %v558, 8
      %v619 = vpop.permute.xlu0 %618
      %653 = vrot.lane.b32.xlu0 %v305, 12
      %v654 = vpop.permute.xlu0 %653
      %655 = vrot.lane.b32.xlu0 %v306, 12
      %v656 = vpop.permute.xlu0 %655
      %657 = vrot.lane.b32.xlu0 %v307, 12
      %v658 = vpop.permute.xlu0 %657
      %659 = vrot.lane.b32.xlu0 %v308, 12
      %v660 = vpop.permute.xlu0 %659
      %661 = vrot.lane.b32.xlu0 %v309, 12
      %v662 = vpop.permute.xlu0 %661
      %663 = vrot.lane.b32.xlu0 %v310, 12
      %v664 = vpop.permute.xlu0 %663
      %665 = vrot.lane.b32.xlu0 %v311, 12
      %v666 = vpop.permute.xlu0 %665
      %667 = vrot.lane.b32.xlu0 %v312, 12
      %v668 = vpop.permute.xlu0 %667
      %669 = vrot.lane.b32.xlu0 %v313, 12
      %v670 = vpop.permute.xlu0 %669
      %671 = vrot.lane.b32.xlu0 %v314, 12
      %v672 = vpop.permute.xlu0 %671
      %673 = vrot.lane.b32.xlu0 %v315, 12
      %v674 = vpop.permute.xlu0 %673
      %675 = vrot.lane.b32.xlu0 %v316, 12
      %v676 = vpop.permute.xlu0 %675
      %677 = vrot.lane.b32.xlu0 %v317, 12
      %v678 = vpop.permute.xlu0 %677
      %679 = vrot.lane.b32.xlu0 %v318, 12
      %v680 = vpop.permute.xlu0 %679
      %681 = vrot.lane.b32.xlu0 %v319, 12
      %v682 = vpop.permute.xlu0 %681
      %683 = vrot.lane.b32.xlu0 %v320, 12
      %v684 = vpop.permute.xlu0 %683
      %685 = vrot.lane.b32.xlu0 %v321, 12
      %v686 = vpop.permute.xlu0 %685
      %687 = vrot.lane.b32.xlu0 %v322, 12
      %v688 = vpop.permute.xlu0 %687
      %689 = vrot.lane.b32.xlu0 %v323, 12
      %v690 = vpop.permute.xlu0 %689
      %691 = vrot.lane.b32.xlu0 %v324, 12
      %v692 = vpop.permute.xlu0 %691
      %693 = vrot.lane.b32.xlu0 %v325, 12
      %v694 = vpop.permute.xlu0 %693
      %695 = vrot.lane.b32.xlu0 %v326, 12
      %v696 = vpop.permute.xlu0 %695
      %697 = vrot.lane.b32.xlu0 %v327, 12
      %v698 = vpop.permute.xlu0 %697
      %699 = vrot.lane.b32.xlu0 %v328, 12
      %v700 = vpop.permute.xlu0 %699
      %701 = vrot.lane.b32.xlu0 %v329, 12
      %v702 = vpop.permute.xlu0 %701
      %703 = vrot.lane.b32.xlu0 %v330, 12
      %v704 = vpop.permute.xlu0 %703
      %705 = vrot.lane.b32.xlu0 %v331, 12
      %v706 = vpop.permute.xlu0 %705
      %707 = vrot.lane.b32.xlu0 %v332, 12
      %v708 = vpop.permute.xlu0 %707
      %709 = vrot.lane.b32.xlu0 %v333, 12
      %v710 = vpop.permute.xlu0 %709
      %711 = vrot.lane.b32.xlu0 %v334, 12
      %v712 = vpop.permute.xlu0 %711
      %v743 = vrot.slane %v332, 1
      %v744 = vrot.slane %v333, 1
      %v745 = vsel %vm368, %v743, %v744
      %v746 = vrot.slane %v334, 1
      %v747 = vsel %vm368, %v744, %v746
      %748 = vrot.lane.b32.xlu0 %v376, 16
      %v749 = vpop.permute.xlu0 %748
      %750 = vrot.lane.b32.xlu0 %v378, 16
      %v751 = vpop.permute.xlu0 %750
      %752 = vrot.lane.b32.xlu0 %v377, 16
      %v753 = vpop.permute.xlu0 %752
      %754 = vrot.lane.b32.xlu0 %v381, 16
      %v755 = vpop.permute.xlu0 %754
      %756 = vrot.lane.b32.xlu0 %v383, 16
      %v757 = vpop.permute.xlu0 %756
      %758 = vrot.lane.b32.xlu0 %v382, 16
      %v759 = vpop.permute.xlu0 %758
      %760 = vrot.lane.b32.xlu0 %v386, 16
      %v761 = vpop.permute.xlu0 %760
      %762 = vrot.lane.b32.xlu0 %v388, 16
      %v763 = vpop.permute.xlu0 %762
      %764 = vrot.lane.b32.xlu0 %v387, 16
      %v765 = vpop.permute.xlu0 %764
      %766 = vrot.lane.b32.xlu0 %v391, 16
      %v767 = vpop.permute.xlu0 %766
      %768 = vrot.lane.b32.xlu0 %v393, 16
      %v769 = vpop.permute.xlu0 %768
      %770 = vrot.lane.b32.xlu0 %v392, 16
      %v771 = vpop.permute.xlu0 %770
      %772 = vrot.lane.b32.xlu0 %v396, 16
      %v773 = vpop.permute.xlu0 %772
      %774 = vrot.lane.b32.xlu0 %v398, 16
      %v775 = vpop.permute.xlu0 %774
      %776 = vrot.lane.b32.xlu0 %v397, 16
      %v777 = vpop.permute.xlu0 %776
      %778 = vrot.lane.b32.xlu0 %v401, 16
      %v779 = vpop.permute.xlu0 %778
      %780 = vrot.lane.b32.xlu0 %v403, 16
      %v781 = vpop.permute.xlu0 %780
      %782 = vrot.lane.b32.xlu0 %v402, 16
      %v783 = vpop.permute.xlu0 %782
      %784 = vrot.lane.b32.xlu0 %v406, 16
      %v785 = vpop.permute.xlu0 %784
      %786 = vrot.lane.b32.xlu0 %v408, 16
      %v787 = vpop.permute.xlu0 %786
      %788 = vrot.lane.b32.xlu0 %v407, 16
      %v789 = vpop.permute.xlu0 %788
      %790 = vrot.lane.b32.xlu0 %v411, 16
      %v791 = vpop.permute.xlu0 %790
      %792 = vrot.lane.b32.xlu0 %v413, 16
      %v793 = vpop.permute.xlu0 %792
      %794 = vrot.lane.b32.xlu0 %v412, 16
      %v795 = vpop.permute.xlu0 %794
      %796 = vrot.lane.b32.xlu0 %v416, 16
      %v797 = vpop.permute.xlu0 %796
      %798 = vrot.lane.b32.xlu0 %v418, 16
      %v799 = vpop.permute.xlu0 %798
      %800 = vrot.lane.b32.xlu0 %v417, 16
      %v801 = vpop.permute.xlu0 %800
      %802 = vrot.lane.b32.xlu0 %v745, 16
      %v803 = vpop.permute.xlu0 %802
      %804 = vrot.lane.b32.xlu0 %v747, 16
      %v805 = vpop.permute.xlu0 %804
      %806 = vrot.lane.b32.xlu0 %v746, 16
      %v807 = vpop.permute.xlu0 %806
      %v838 = vrot.slane %v332, 2
      %v839 = vrot.slane %v333, 2
      %v840 = vsel %vm509, %v838, %v839
      %v841 = vrot.slane %v334, 2
      %v842 = vsel %vm509, %v839, %v841
      %843 = vrot.lane.b32.xlu0 %v517, 20
      %v844 = vpop.permute.xlu0 %843
      %845 = vrot.lane.b32.xlu0 %v519, 20
      %v846 = vpop.permute.xlu0 %845
      %847 = vrot.lane.b32.xlu0 %v518, 20
      %v848 = vpop.permute.xlu0 %847
      %849 = vrot.lane.b32.xlu0 %v522, 20
      %v850 = vpop.permute.xlu0 %849
      %851 = vrot.lane.b32.xlu0 %v524, 20
      %v852 = vpop.permute.xlu0 %851
      %853 = vrot.lane.b32.xlu0 %v523, 20
      %v854 = vpop.permute.xlu0 %853
      %855 = vrot.lane.b32.xlu0 %v527, 20
      %v856 = vpop.permute.xlu0 %855
      %857 = vrot.lane.b32.xlu0 %v529, 20
      %v858 = vpop.permute.xlu0 %857
      %859 = vrot.lane.b32.xlu0 %v528, 20
      %v860 = vpop.permute.xlu0 %859
      %861 = vrot.lane.b32.xlu0 %v532, 20
      %v862 = vpop.permute.xlu0 %861
      %863 = vrot.lane.b32.xlu0 %v534, 20
      %v864 = vpop.permute.xlu0 %863
      %865 = vrot.lane.b32.xlu0 %v533, 20
      %v866 = vpop.permute.xlu0 %865
      %867 = vrot.lane.b32.xlu0 %v537, 20
      %v868 = vpop.permute.xlu0 %867
      %869 = vrot.lane.b32.xlu0 %v539, 20
      %v870 = vpop.permute.xlu0 %869
      %871 = vrot.lane.b32.xlu0 %v538, 20
      %v872 = vpop.permute.xlu0 %871
      %873 = vrot.lane.b32.xlu0 %v542, 20
      %v874 = vpop.permute.xlu0 %873
      %875 = vrot.lane.b32.xlu0 %v544, 20
      %v876 = vpop.permute.xlu0 %875
      %877 = vrot.lane.b32.xlu0 %v543, 20
      %v878 = vpop.permute.xlu0 %877
      %879 = vrot.lane.b32.xlu0 %v547, 20
      %v880 = vpop.permute.xlu0 %879
      %881 = vrot.lane.b32.xlu0 %v549, 20
      %v882 = vpop.permute.xlu0 %881
      %883 = vrot.lane.b32.xlu0 %v548, 20
      %v884 = vpop.permute.xlu0 %883
      %885 = vrot.lane.b32.xlu0 %v552, 20
      %v886 = vpop.permute.xlu0 %885
      %887 = vrot.lane.b32.xlu0 %v554, 20
      %v888 = vpop.permute.xlu0 %887
      %889 = vrot.lane.b32.xlu0 %v553, 20
      %v890 = vpop.permute.xlu0 %889
      %891 = vrot.lane.b32.xlu0 %v557, 20
      %v892 = vpop.permute.xlu0 %891
      %893 = vrot.lane.b32.xlu0 %v559, 20
      %v894 = vpop.permute.xlu0 %893
      %895 = vrot.lane.b32.xlu0 %v558, 20
      %v896 = vpop.permute.xlu0 %895
      %897 = vrot.lane.b32.xlu0 %v840, 20
      %v898 = vpop.permute.xlu0 %897
      %899 = vrot.lane.b32.xlu0 %v842, 20
      %v900 = vpop.permute.xlu0 %899
      %901 = vrot.lane.b32.xlu0 %v841, 20
      %v902 = vpop.permute.xlu0 %901
      %936 = vrot.lane.b32.xlu0 %v308, 24
      %v937 = vpop.permute.xlu0 %936
      %938 = vrot.lane.b32.xlu0 %v309, 24
      %v939 = vpop.permute.xlu0 %938
      %940 = vrot.lane.b32.xlu0 %v310, 24
      %v941 = vpop.permute.xlu0 %940
      %942 = vrot.lane.b32.xlu0 %v311, 24
      %v943 = vpop.permute.xlu0 %942
      %944 = vrot.lane.b32.xlu0 %v312, 24
      %v945 = vpop.permute.xlu0 %944
      %946 = vrot.lane.b32.xlu0 %v313, 24
      %v947 = vpop.permute.xlu0 %946
      %948 = vrot.lane.b32.xlu0 %v314, 24
      %v949 = vpop.permute.xlu0 %948
      %950 = vrot.lane.b32.xlu0 %v315, 24
      %v951 = vpop.permute.xlu0 %950
      %952 = vrot.lane.b32.xlu0 %v316, 24
      %v953 = vpop.permute.xlu0 %952
      %954 = vrot.lane.b32.xlu0 %v317, 24
      %v955 = vpop.permute.xlu0 %954
      %956 = vrot.lane.b32.xlu0 %v318, 24
      %v957 = vpop.permute.xlu0 %956
      %958 = vrot.lane.b32.xlu0 %v319, 24
      %v959 = vpop.permute.xlu0 %958
      %960 = vrot.lane.b32.xlu0 %v320, 24
      %v961 = vpop.permute.xlu0 %960
      %962 = vrot.lane.b32.xlu0 %v321, 24
      %v963 = vpop.permute.xlu0 %962
      %964 = vrot.lane.b32.xlu0 %v322, 24
      %v965 = vpop.permute.xlu0 %964
      %966 = vrot.lane.b32.xlu0 %v323, 24
      %v967 = vpop.permute.xlu0 %966
      %968 = vrot.lane.b32.xlu0 %v324, 24
      %v969 = vpop.permute.xlu0 %968
      %970 = vrot.lane.b32.xlu0 %v325, 24
      %v971 = vpop.permute.xlu0 %970
      %972 = vrot.lane.b32.xlu0 %v326, 24
      %v973 = vpop.permute.xlu0 %972
      %974 = vrot.lane.b32.xlu0 %v327, 24
      %v975 = vpop.permute.xlu0 %974
      %976 = vrot.lane.b32.xlu0 %v328, 24
      %v977 = vpop.permute.xlu0 %976
      %978 = vrot.lane.b32.xlu0 %v329, 24
      %v979 = vpop.permute.xlu0 %978
      %980 = vrot.lane.b32.xlu0 %v330, 24
      %v981 = vpop.permute.xlu0 %980
      %982 = vrot.lane.b32.xlu0 %v331, 24
      %v983 = vpop.permute.xlu0 %982
      %984 = vrot.lane.b32.xlu0 %v332, 24
      %v985 = vpop.permute.xlu0 %984
      %986 = vrot.lane.b32.xlu0 %v333, 24
      %v987 = vpop.permute.xlu0 %986
      %988 = vrot.lane.b32.xlu0 %v334, 24
      %v989 = vpop.permute.xlu0 %988
      %990 = vrot.lane.b32.xlu0 %v335, 24
      %v991 = vpop.permute.xlu0 %990
      %992 = vrot.lane.b32.xlu0 %v336, 24
      %v993 = vpop.permute.xlu0 %992
      %994 = vrot.lane.b32.xlu0 %v337, 24
      %v995 = vpop.permute.xlu0 %994
      %v1026 = vrot.slane %v335, 1
      %v1027 = vrot.slane %v336, 1
      %v1028 = vsel %vm368, %v1026, %v1027
      %v1029 = vrot.slane %v337, 1
      %v1030 = vsel %vm368, %v1027, %v1029
      %1031 = vrot.lane.b32.xlu0 %v381, 28
      %v1032 = vpop.permute.xlu0 %1031
      %1033 = vrot.lane.b32.xlu0 %v383, 28
      %v1034 = vpop.permute.xlu0 %1033
      %1035 = vrot.lane.b32.xlu0 %v382, 28
      %v1036 = vpop.permute.xlu0 %1035
      %1037 = vrot.lane.b32.xlu0 %v386, 28
      %v1038 = vpop.permute.xlu0 %1037
      %1039 = vrot.lane.b32.xlu0 %v388, 28
      %v1040 = vpop.permute.xlu0 %1039
      %1041 = vrot.lane.b32.xlu0 %v387, 28
      %v1042 = vpop.permute.xlu0 %1041
      %1043 = vrot.lane.b32.xlu0 %v391, 28
      %v1044 = vpop.permute.xlu0 %1043
      %1045 = vrot.lane.b32.xlu0 %v393, 28
      %v1046 = vpop.permute.xlu0 %1045
      %1047 = vrot.lane.b32.xlu0 %v392, 28
      %v1048 = vpop.permute.xlu0 %1047
      %1049 = vrot.lane.b32.xlu0 %v396, 28
      %v1050 = vpop.permute.xlu0 %1049
      %1051 = vrot.lane.b32.xlu0 %v398, 28
      %v1052 = vpop.permute.xlu0 %1051
      %1053 = vrot.lane.b32.xlu0 %v397, 28
      %v1054 = vpop.permute.xlu0 %1053
      %1055 = vrot.lane.b32.xlu0 %v401, 28
      %v1056 = vpop.permute.xlu0 %1055
      %1057 = vrot.lane.b32.xlu0 %v403, 28
      %v1058 = vpop.permute.xlu0 %1057
      %1059 = vrot.lane.b32.xlu0 %v402, 28
      %v1060 = vpop.permute.xlu0 %1059
      %1061 = vrot.lane.b32.xlu0 %v406, 28
      %v1062 = vpop.permute.xlu0 %1061
      %1063 = vrot.lane.b32.xlu0 %v408, 28
      %v1064 = vpop.permute.xlu0 %1063
      %1065 = vrot.lane.b32.xlu0 %v407, 28
      %v1066 = vpop.permute.xlu0 %1065
      %1067 = vrot.lane.b32.xlu0 %v411, 28
      %v1068 = vpop.permute.xlu0 %1067
      %1069 = vrot.lane.b32.xlu0 %v413, 28
      %v1070 = vpop.permute.xlu0 %1069
      %1071 = vrot.lane.b32.xlu0 %v412, 28
      %v1072 = vpop.permute.xlu0 %1071
      %1073 = vrot.lane.b32.xlu0 %v416, 28
      %v1074 = vpop.permute.xlu0 %1073
      %1075 = vrot.lane.b32.xlu0 %v418, 28
      %v1076 = vpop.permute.xlu0 %1075
      %1077 = vrot.lane.b32.xlu0 %v417, 28
      %v1078 = vpop.permute.xlu0 %1077
      %1079 = vrot.lane.b32.xlu0 %v745, 28
      %v1080 = vpop.permute.xlu0 %1079
      %1081 = vrot.lane.b32.xlu0 %v747, 28
      %v1082 = vpop.permute.xlu0 %1081
      %1083 = vrot.lane.b32.xlu0 %v746, 28
      %v1084 = vpop.permute.xlu0 %1083
      %1085 = vrot.lane.b32.xlu0 %v1028, 28
      %v1086 = vpop.permute.xlu0 %1085
      %1087 = vrot.lane.b32.xlu0 %v1030, 28
      %v1088 = vpop.permute.xlu0 %1087
      %1089 = vrot.lane.b32.xlu0 %v1029, 28
      %v1090 = vpop.permute.xlu0 %1089
      %v1121 = vrot.slane %v335, 2
      %v1122 = vrot.slane %v336, 2
      %v1123 = vsel %vm509, %v1121, %v1122
      %v1124 = vrot.slane %v337, 2
      %v1125 = vsel %vm509, %v1122, %v1124
      %1126 = vrot.lane.b32.xlu0 %v522, 32
      %v1127 = vpop.permute.xlu0 %1126
      %1128 = vrot.lane.b32.xlu0 %v524, 32
      %v1129 = vpop.permute.xlu0 %1128
      %1130 = vrot.lane.b32.xlu0 %v523, 32
      %v1131 = vpop.permute.xlu0 %1130
      %1132 = vrot.lane.b32.xlu0 %v527, 32
      %v1133 = vpop.permute.xlu0 %1132
      %1134 = vrot.lane.b32.xlu0 %v529, 32
      %v1135 = vpop.permute.xlu0 %1134
      %1136 = vrot.lane.b32.xlu0 %v528, 32
      %v1137 = vpop.permute.xlu0 %1136
      %1138 = vrot.lane.b32.xlu0 %v532, 32
      %v1139 = vpop.permute.xlu0 %1138
      %1140 = vrot.lane.b32.xlu0 %v534, 32
      %v1141 = vpop.permute.xlu0 %1140
      %1142 = vrot.lane.b32.xlu0 %v533, 32
      %v1143 = vpop.permute.xlu0 %1142
      %1144 = vrot.lane.b32.xlu0 %v537, 32
      %v1145 = vpop.permute.xlu0 %1144
      %1146 = vrot.lane.b32.xlu0 %v539, 32
      %v1147 = vpop.permute.xlu0 %1146
      %1148 = vrot.lane.b32.xlu0 %v538, 32
      %v1149 = vpop.permute.xlu0 %1148
      %1150 = vrot.lane.b32.xlu0 %v542, 32
      %v1151 = vpop.permute.xlu0 %1150
      %1152 = vrot.lane.b32.xlu0 %v544, 32
      %v1153 = vpop.permute.xlu0 %1152
      %1154 = vrot.lane.b32.xlu0 %v543, 32
      %v1155 = vpop.permute.xlu0 %1154
      %1156 = vrot.lane.b32.xlu0 %v547, 32
      %v1157 = vpop.permute.xlu0 %1156
      %1158 = vrot.lane.b32.xlu0 %v549, 32
      %v1159 = vpop.permute.xlu0 %1158
      %1160 = vrot.lane.b32.xlu0 %v548, 32
      %v1161 = vpop.permute.xlu0 %1160
      %1162 = vrot.lane.b32.xlu0 %v552, 32
      %v1163 = vpop.permute.xlu0 %1162
      %1164 = vrot.lane.b32.xlu0 %v554, 32
      %v1165 = vpop.permute.xlu0 %1164
      %1166 = vrot.lane.b32.xlu0 %v553, 32
      %v1167 = vpop.permute.xlu0 %1166
      %1168 = vrot.lane.b32.xlu0 %v557, 32
      %v1169 = vpop.permute.xlu0 %1168
      %1170 = vrot.lane.b32.xlu0 %v559, 32
      %v1171 = vpop.permute.xlu0 %1170
      %1172 = vrot.lane.b32.xlu0 %v558, 32
      %v1173 = vpop.permute.xlu0 %1172
      %1174 = vrot.lane.b32.xlu0 %v840, 32
      %v1175 = vpop.permute.xlu0 %1174
      %1176 = vrot.lane.b32.xlu0 %v842, 32
      %v1177 = vpop.permute.xlu0 %1176
      %1178 = vrot.lane.b32.xlu0 %v841, 32
      %v1179 = vpop.permute.xlu0 %1178
      %1180 = vrot.lane.b32.xlu0 %v1123, 32
      %v1181 = vpop.permute.xlu0 %1180
      %1182 = vrot.lane.b32.xlu0 %v1125, 32
      %v1183 = vpop.permute.xlu0 %1182
      %1184 = vrot.lane.b32.xlu0 %v1124, 32
      %v1185 = vpop.permute.xlu0 %1184
      %vm1216 = vcmask 31744
      %v1217 = vsel %vm1216, %v302, %v420
      %v1218 = vsel %vm1216, %v303, %v422
      %v1219 = vsel %vm1216, %v304, %v424
      %v1220 = vsel %vm1216, %v305, %v426
      %v1221 = vsel %vm1216, %v306, %v428
      %v1222 = vsel %vm1216, %v307, %v430
      %v1223 = vsel %vm1216, %v308, %v432
      %v1224 = vsel %vm1216, %v309, %v434
      %v1225 = vsel %vm1216, %v310, %v436
      %v1226 = vsel %vm1216, %v311, %v438
      %v1227 = vsel %vm1216, %v312, %v440
      %v1228 = vsel %vm1216, %v313, %v442
      %v1229 = vsel %vm1216, %v314, %v444
      %v1230 = vsel %vm1216, %v315, %v446
      %v1231 = vsel %vm1216, %v316, %v448
      %v1232 = vsel %vm1216, %v317, %v450
      %v1233 = vsel %vm1216, %v318, %v452
      %v1234 = vsel %vm1216, %v319, %v454
      %v1235 = vsel %vm1216, %v320, %v456
      %v1236 = vsel %vm1216, %v321, %v458
      %v1237 = vsel %vm1216, %v322, %v460
      %v1238 = vsel %vm1216, %v323, %v462
      %v1239 = vsel %vm1216, %v324, %v464
      %v1240 = vsel %vm1216, %v325, %v466
      %v1241 = vsel %vm1216, %v326, %v468
      %v1242 = vsel %vm1216, %v327, %v470
      %v1243 = vsel %vm1216, %v328, %v472
      %v1244 = vsel %vm1216, %v329, %v474
      %v1245 = vsel %vm1216, %v330, %v476
      %v1246 = vsel %vm1216, %v331, %v478
      %vm1247 = vcmask 64512
      %v1248 = vsel %vm1247, %v1217, %v561
      %v1249 = vsel %vm1247, %v1218, %v563
      %v1250 = vsel %vm1247, %v1219, %v565
      %v1251 = vsel %vm1247, %v1220, %v567
      %v1252 = vsel %vm1247, %v1221, %v569
      %v1253 = vsel %vm1247, %v1222, %v571
      %v1254 = vsel %vm1247, %v1223, %v573
      %v1255 = vsel %vm1247, %v1224, %v575
      %v1256 = vsel %vm1247, %v1225, %v577
      %v1257 = vsel %vm1247, %v1226, %v579
      %v1258 = vsel %vm1247, %v1227, %v581
      %v1259 = vsel %vm1247, %v1228, %v583
      %v1260 = vsel %vm1247, %v1229, %v585
      %v1261 = vsel %vm1247, %v1230, %v587
      %v1262 = vsel %vm1247, %v1231, %v589
      %v1263 = vsel %vm1247, %v1232, %v591
      %v1264 = vsel %vm1247, %v1233, %v593
      %v1265 = vsel %vm1247, %v1234, %v595
      %v1266 = vsel %vm1247, %v1235, %v597
      %v1267 = vsel %vm1247, %v1236, %v599
      %v1268 = vsel %vm1247, %v1237, %v601
      %v1269 = vsel %vm1247, %v1238, %v603
      %v1270 = vsel %vm1247, %v1239, %v605
      %v1271 = vsel %vm1247, %v1240, %v607
      %v1272 = vsel %vm1247, %v1241, %v609
      %v1273 = vsel %vm1247, %v1242, %v611
      %v1274 = vsel %vm1247, %v1243, %v613
      %v1275 = vsel %vm1247, %v1244, %v615
      %v1276 = vsel %vm1247, %v1245, %v617
      %v1277 = vsel %vm1247, %v1246, %v619
      %vm1278 = vcmask 97280
      %v1279 = vsel %vm1278, %v1248, %v654
      %v1280 = vsel %vm1278, %v1249, %v656
      %v1281 = vsel %vm1278, %v1250, %v658
      %v1282 = vsel %vm1278, %v1251, %v660
      %v1283 = vsel %vm1278, %v1252, %v662
      %v1284 = vsel %vm1278, %v1253, %v664
      %v1285 = vsel %vm1278, %v1254, %v666
      %v1286 = vsel %vm1278, %v1255, %v668
      %v1287 = vsel %vm1278, %v1256, %v670
      %v1288 = vsel %vm1278, %v1257, %v672
      %v1289 = vsel %vm1278, %v1258, %v674
      %v1290 = vsel %vm1278, %v1259, %v676
      %v1291 = vsel %vm1278, %v1260, %v678
      %v1292 = vsel %vm1278, %v1261, %v680
      %v1293 = vsel %vm1278, %v1262, %v682
      %v1294 = vsel %vm1278, %v1263, %v684
      %v1295 = vsel %vm1278, %v1264, %v686
      %v1296 = vsel %vm1278, %v1265, %v688
      %v1297 = vsel %vm1278, %v1266, %v690
      %v1298 = vsel %vm1278, %v1267, %v692
      %v1299 = vsel %vm1278, %v1268, %v694
      %v1300 = vsel %vm1278, %v1269, %v696
      %v1301 = vsel %vm1278, %v1270, %v698
      %v1302 = vsel %vm1278, %v1271, %v700
      %v1303 = vsel %vm1278, %v1272, %v702
      %v1304 = vsel %vm1278, %v1273, %v704
      %v1305 = vsel %vm1278, %v1274, %v706
      %v1306 = vsel %vm1278, %v1275, %v708
      %v1307 = vsel %vm1278, %v1276, %v710
      %v1308 = vsel %vm1278, %v1277, %v712
      %vm1309 = vcmask 130048
      %v1310 = vsel %vm1309, %v1279, %v749
      %v1311 = vsel %vm1309, %v1280, %v751
      %v1312 = vsel %vm1309, %v1281, %v753
      %v1313 = vsel %vm1309, %v1282, %v755
      %v1314 = vsel %vm1309, %v1283, %v757
      %v1315 = vsel %vm1309, %v1284, %v759
      %v1316 = vsel %vm1309, %v1285, %v761
      %v1317 = vsel %vm1309, %v1286, %v763
      %v1318 = vsel %vm1309, %v1287, %v765
      %v1319 = vsel %vm1309, %v1288, %v767
      %v1320 = vsel %vm1309, %v1289, %v769
      %v1321 = vsel %vm1309, %v1290, %v771
      %v1322 = vsel %vm1309, %v1291, %v773
      %v1323 = vsel %vm1309, %v1292, %v775
      %v1324 = vsel %vm1309, %v1293, %v777
      %v1325 = vsel %vm1309, %v1294, %v779
      %v1326 = vsel %vm1309, %v1295, %v781
      %v1327 = vsel %vm1309, %v1296, %v783
      %v1328 = vsel %vm1309, %v1297, %v785
      %v1329 = vsel %vm1309, %v1298, %v787
      %v1330 = vsel %vm1309, %v1299, %v789
      %v1331 = vsel %vm1309, %v1300, %v791
      %v1332 = vsel %vm1309, %v1301, %v793
      %v1333 = vsel %vm1309, %v1302, %v795
      %v1334 = vsel %vm1309, %v1303, %v797
      %v1335 = vsel %vm1309, %v1304, %v799
      %v1336 = vsel %vm1309, %v1305, %v801
      %v1337 = vsel %vm1309, %v1306, %v803
      %v1338 = vsel %vm1309, %v1307, %v805
      %v1339 = vsel %vm1309, %v1308, %v807
      %vm1340 = vcmask 162816
      %v1341 = vsel %vm1340, %v1310, %v844
      %v1342 = vsel %vm1340, %v1311, %v846
      %v1343 = vsel %vm1340, %v1312, %v848
      %v1344 = vsel %vm1340, %v1313, %v850
      %v1345 = vsel %vm1340, %v1314, %v852
      %v1346 = vsel %vm1340, %v1315, %v854
      %v1347 = vsel %vm1340, %v1316, %v856
      %v1348 = vsel %vm1340, %v1317, %v858
      %v1349 = vsel %vm1340, %v1318, %v860
      %v1350 = vsel %vm1340, %v1319, %v862
      %v1351 = vsel %vm1340, %v1320, %v864
      %v1352 = vsel %vm1340, %v1321, %v866
      %v1353 = vsel %vm1340, %v1322, %v868
      %v1354 = vsel %vm1340, %v1323, %v870
      %v1355 = vsel %vm1340, %v1324, %v872
      %v1356 = vsel %vm1340, %v1325, %v874
      %v1357 = vsel %vm1340, %v1326, %v876
      %v1358 = vsel %vm1340, %v1327, %v878
      %v1359 = vsel %vm1340, %v1328, %v880
      %v1360 = vsel %vm1340, %v1329, %v882
      %v1361 = vsel %vm1340, %v1330, %v884
      %v1362 = vsel %vm1340, %v1331, %v886
      %v1363 = vsel %vm1340, %v1332, %v888
      %v1364 = vsel %vm1340, %v1333, %v890
      %v1365 = vsel %vm1340, %v1334, %v892
      %v1366 = vsel %vm1340, %v1335, %v894
      %v1367 = vsel %vm1340, %v1336, %v896
      %v1368 = vsel %vm1340, %v1337, %v898
      %v1369 = vsel %vm1340, %v1338, %v900
      %v1370 = vsel %vm1340, %v1339, %v902
      %vm1371 = vcmask 195584
      %v1372 = vsel %vm1371, %v1341, %v937
      %v1373 = vsel %vm1371, %v1342, %v939
      %v1374 = vsel %vm1371, %v1343, %v941
      %v1375 = vsel %vm1371, %v1344, %v943
      %v1376 = vsel %vm1371, %v1345, %v945
      %v1377 = vsel %vm1371, %v1346, %v947
      %v1378 = vsel %vm1371, %v1347, %v949
      %v1379 = vsel %vm1371, %v1348, %v951
      %v1380 = vsel %vm1371, %v1349, %v953
      %v1381 = vsel %vm1371, %v1350, %v955
      %v1382 = vsel %vm1371, %v1351, %v957
      %v1383 = vsel %vm1371, %v1352, %v959
      %v1384 = vsel %vm1371, %v1353, %v961
      %v1385 = vsel %vm1371, %v1354, %v963
      %v1386 = vsel %vm1371, %v1355, %v965
      %v1387 = vsel %vm1371, %v1356, %v967
      %v1388 = vsel %vm1371, %v1357, %v969
      %v1389 = vsel %vm1371, %v1358, %v971
      %v1390 = vsel %vm1371, %v1359, %v973
      %v1391 = vsel %vm1371, %v1360, %v975
      %v1392 = vsel %vm1371, %v1361, %v977
      %v1393 = vsel %vm1371, %v1362, %v979
      %v1394 = vsel %vm1371, %v1363, %v981
      %v1395 = vsel %vm1371, %v1364, %v983
      %v1396 = vsel %vm1371, %v1365, %v985
      %v1397 = vsel %vm1371, %v1366, %v987
      %v1398 = vsel %vm1371, %v1367, %v989
      %v1399 = vsel %vm1371, %v1368, %v991
      %v1400 = vsel %vm1371, %v1369, %v993
      %v1401 = vsel %vm1371, %v1370, %v995
      %vm1402 = vcmask 228352
      %v1403 = vsel %vm1402, %v1372, %v1032
      %v1404 = vsel %vm1402, %v1373, %v1034
      %v1405 = vsel %vm1402, %v1374, %v1036
      %v1406 = vsel %vm1402, %v1375, %v1038
      %v1407 = vsel %vm1402, %v1376, %v1040
      %v1408 = vsel %vm1402, %v1377, %v1042
      %v1409 = vsel %vm1402, %v1378, %v1044
      %v1410 = vsel %vm1402, %v1379, %v1046
      %v1411 = vsel %vm1402, %v1380, %v1048
      %v1412 = vsel %vm1402, %v1381, %v1050
      %v1413 = vsel %vm1402, %v1382, %v1052
      %v1414 = vsel %vm1402, %v1383, %v1054
      %v1415 = vsel %vm1402, %v1384, %v1056
      %v1416 = vsel %vm1402, %v1385, %v1058
      %v1417 = vsel %vm1402, %v1386, %v1060
      %v1418 = vsel %vm1402, %v1387, %v1062
      %v1419 = vsel %vm1402, %v1388, %v1064
      %v1420 = vsel %vm1402, %v1389, %v1066
      %v1421 = vsel %vm1402, %v1390, %v1068
      %v1422 = vsel %vm1402, %v1391, %v1070
      %v1423 = vsel %vm1402, %v1392, %v1072
      %v1424 = vsel %vm1402, %v1393, %v1074
      %v1425 = vsel %vm1402, %v1394, %v1076
      %v1426 = vsel %vm1402, %v1395, %v1078
      %v1427 = vsel %vm1402, %v1396, %v1080
      %v1428 = vsel %vm1402, %v1397, %v1082
      %v1429 = vsel %vm1402, %v1398, %v1084
      %v1430 = vsel %vm1402, %v1399, %v1086
      %v1431 = vsel %vm1402, %v1400, %v1088
      %v1432 = vsel %vm1402, %v1401, %v1090
      %vm1433 = vcmask 261120
      %v1434 = vsel %vm1433, %v1403, %v1127
      %v1435 = vsel %vm1433, %v1404, %v1129
      %v1436 = vsel %vm1433, %v1405, %v1131
      %v1437 = vsel %vm1433, %v1406, %v1133
      %v1438 = vsel %vm1433, %v1407, %v1135
      %v1439 = vsel %vm1433, %v1408, %v1137
      %v1440 = vsel %vm1433, %v1409, %v1139
      %v1441 = vsel %vm1433, %v1410, %v1141
      %v1442 = vsel %vm1433, %v1411, %v1143
      %v1443 = vsel %vm1433, %v1412, %v1145
      %v1444 = vsel %vm1433, %v1413, %v1147
      %v1445 = vsel %vm1433, %v1414, %v1149
      %v1446 = vsel %vm1433, %v1415, %v1151
      %v1447 = vsel %vm1433, %v1416, %v1153
      %v1448 = vsel %vm1433, %v1417, %v1155
      %v1449 = vsel %vm1433, %v1418, %v1157
      %v1450 = vsel %vm1433, %v1419, %v1159
      %v1451 = vsel %vm1433, %v1420, %v1161
      %v1452 = vsel %vm1433, %v1421, %v1163
      %v1453 = vsel %vm1433, %v1422, %v1165
      %v1454 = vsel %vm1433, %v1423, %v1167
      %v1455 = vsel %vm1433, %v1424, %v1169
      %v1456 = vsel %vm1433, %v1425, %v1171
      %v1457 = vsel %vm1433, %v1426, %v1173
      %v1458 = vsel %vm1433, %v1427, %v1175
      %v1459 = vsel %vm1433, %v1428, %v1177
      %v1460 = vsel %vm1433, %v1429, %v1179
      %v1461 = vsel %vm1433, %v1430, %v1181
      %v1462 = vsel %vm1433, %v1431, %v1183
      %v1463 = vsel %vm1433, %v1432, %v1185
      %v1464 = vld [vmem:[%s1] sm:$0xff]
      %v1465 = vld [vmem:[%s1 + $0x8] sm:$0xff]
      %v1466 = vld [vmem:[%s1 + $0x10] sm:$0xff]
      %v1467 = vld [vmem:[%s1 + $0x18] sm:$0xff]
      %v1468 = vld [vmem:[%s1 + $0x20] sm:$0xf]
      %v1469 = vld [vmem:[%s2] sm:$0x1]
      %v1471 = vlaneseq
      %v1472 = vshrl.u32 %v1471, 7
      %v1473 = vsub.s32 0, %v1472
      %v1474 = vrot.slane %v1469, %v1473
      %v1505 = vcombine.high %v1434, %v1434
      %v1507 = vunpack.c.l.s4 1983009808
      %v1508 = vunpack.c.0.s8 %v1507
      %v1509 = vlaneseq
      %v1510 = vshrl.u32 %v1509, 7
      %v1511 = vsub.s32 %v1508, %v1510
      %v1512 = vrot.slane %v1434, %v1511
      %v1514 = vunpack.c.l.s4 1983009808
      %v1515 = vunpack.c.0.s8 %v1514
      %v1516 = vlaneseq
      %v1517 = vshrl.u32 %v1516, 7
      %v1518 = vsub.s32 %v1515, %v1517
      %v1519 = vrot.slane %v1505, %v1518
      %v1520 = vcombine.high %v1512, %v1512
      %v1521 = vcombine.high %v1519, %v1519
      %v1522 = vcombine.high %v1435, %v1435
      %v1524 = vunpack.c.l.s4 1983009808
      %v1525 = vunpack.c.0.s8 %v1524
      %v1526 = vlaneseq
      %v1527 = vshrl.u32 %v1526, 7
      %v1528 = vsub.s32 %v1525, %v1527
      %v1529 = vrot.slane %v1435, %v1528
      %v1531 = vunpack.c.l.s4 1983009808
      %v1532 = vunpack.c.0.s8 %v1531
      %v1533 = vlaneseq
      %v1534 = vshrl.u32 %v1533, 7
      %v1535 = vsub.s32 %v1532, %v1534
      %v1536 = vrot.slane %v1522, %v1535
      %v1537 = vcombine.high %v1529, %v1529
      %v1538 = vcombine.high %v1536, %v1536
      %v1540 = vunpack.c.l.s4 1983009808
      %v1541 = vunpack.c.0.s8 %v1540
      %v1542 = vlaneseq
      %v1543 = vshrl.u32 %v1542, 7
      %v1544 = vsub.s32 %v1541, %v1543
      %v1545 = vrot.slane %v1436, %v1544
      %v1546 = vcombine.high %v1437, %v1437
      %v1548 = vunpack.c.l.s4 1983009808
      %v1549 = vunpack.c.0.s8 %v1548
      %v1550 = vlaneseq
      %v1551 = vshrl.u32 %v1550, 7
      %v1552 = vsub.s32 %v1549, %v1551
      %v1553 = vrot.slane %v1437, %v1552
      %v1555 = vunpack.c.l.s4 1983009808
      %v1556 = vunpack.c.0.s8 %v1555
      %v1557 = vlaneseq
      %v1558 = vshrl.u32 %v1557, 7
      %v1559 = vsub.s32 %v1556, %v1558
      %v1560 = vrot.slane %v1546, %v1559
      %v1561 = vcombine.high %v1553, %v1553
      %v1562 = vcombine.high %v1560, %v1560
      %v1563 = vcombine.high %v1438, %v1438
      %v1565 = vunpack.c.l.s4 1983009808
      %v1566 = vunpack.c.0.s8 %v1565
      %v1567 = vlaneseq
      %v1568 = vshrl.u32 %v1567, 7
      %v1569 = vsub.s32 %v1566, %v1568
      %v1570 = vrot.slane %v1438, %v1569
      %v1572 = vunpack.c.l.s4 1983009808
      %v1573 = vunpack.c.0.s8 %v1572
      %v1574 = vlaneseq
      %v1575 = vshrl.u32 %v1574, 7
      %v1576 = vsub.s32 %v1573, %v1575
      %v1577 = vrot.slane %v1563, %v1576
      %v1578 = vcombine.high %v1570, %v1570
      %v1579 = vcombine.high %v1577, %v1577
      %v1581 = vunpack.c.l.s4 1983009808
      %v1582 = vunpack.c.0.s8 %v1581
      %v1583 = vlaneseq
      %v1584 = vshrl.u32 %v1583, 7
      %v1585 = vsub.s32 %v1582, %v1584
      %v1586 = vrot.slane %v1439, %v1585
      %v1587 = vcombine.high %v1440, %v1440
      %v1589 = vunpack.c.l.s4 1983009808
      %v1590 = vunpack.c.0.s8 %v1589
      %v1591 = vlaneseq
      %v1592 = vshrl.u32 %v1591, 7
      %v1593 = vsub.s32 %v1590, %v1592
      %v1594 = vrot.slane %v1440, %v1593
      %v1596 = vunpack.c.l.s4 1983009808
      %v1597 = vunpack.c.0.s8 %v1596
      %v1598 = vlaneseq
      %v1599 = vshrl.u32 %v1598, 7
      %v1600 = vsub.s32 %v1597, %v1599
      %v1601 = vrot.slane %v1587, %v1600
      %v1602 = vcombine.high %v1594, %v1594
      %v1603 = vcombine.high %v1601, %v1601
      %v1604 = vcombine.high %v1441, %v1441
      %v1606 = vunpack.c.l.s4 1983009808
      %v1607 = vunpack.c.0.s8 %v1606
      %v1608 = vlaneseq
      %v1609 = vshrl.u32 %v1608, 7
      %v1610 = vsub.s32 %v1607, %v1609
      %v1611 = vrot.slane %v1441, %v1610
      %v1613 = vunpack.c.l.s4 1983009808
      %v1614 = vunpack.c.0.s8 %v1613
      %v1615 = vlaneseq
      %v1616 = vshrl.u32 %v1615, 7
      %v1617 = vsub.s32 %v1614, %v1616
      %v1618 = vrot.slane %v1604, %v1617
      %v1619 = vcombine.high %v1611, %v1611
      %v1620 = vcombine.high %v1618, %v1618
      %v1622 = vunpack.c.l.s4 1983009808
      %v1623 = vunpack.c.0.s8 %v1622
      %v1624 = vlaneseq
      %v1625 = vshrl.u32 %v1624, 7
      %v1626 = vsub.s32 %v1623, %v1625
      %v1627 = vrot.slane %v1442, %v1626
      %v1628 = vcombine.high %v1443, %v1443
      %v1630 = vunpack.c.l.s4 1983009808
      %v1631 = vunpack.c.0.s8 %v1630
      %v1632 = vlaneseq
      %v1633 = vshrl.u32 %v1632, 7
      %v1634 = vsub.s32 %v1631, %v1633
      %v1635 = vrot.slane %v1443, %v1634
      %v1637 = vunpack.c.l.s4 1983009808
      %v1638 = vunpack.c.0.s8 %v1637
      %v1639 = vlaneseq
      %v1640 = vshrl.u32 %v1639, 7
      %v1641 = vsub.s32 %v1638, %v1640
      %v1642 = vrot.slane %v1628, %v1641
      %v1643 = vcombine.high %v1635, %v1635
      %v1644 = vcombine.high %v1642, %v1642
      %v1645 = vcombine.high %v1444, %v1444
      %v1647 = vunpack.c.l.s4 1983009808
      %v1648 = vunpack.c.0.s8 %v1647
      %v1649 = vlaneseq
      %v1650 = vshrl.u32 %v1649, 7
      %v1651 = vsub.s32 %v1648, %v1650
      %v1652 = vrot.slane %v1444, %v1651
      %v1654 = vunpack.c.l.s4 1983009808
      %v1655 = vunpack.c.0.s8 %v1654
      %v1656 = vlaneseq
      %v1657 = vshrl.u32 %v1656, 7
      %v1658 = vsub.s32 %v1655, %v1657
      %v1659 = vrot.slane %v1645, %v1658
      %v1660 = vcombine.high %v1652, %v1652
      %v1661 = vcombine.high %v1659, %v1659
      %v1663 = vunpack.c.l.s4 1983009808
      %v1664 = vunpack.c.0.s8 %v1663
      %v1665 = vlaneseq
      %v1666 = vshrl.u32 %v1665, 7
      %v1667 = vsub.s32 %v1664, %v1666
      %v1668 = vrot.slane %v1445, %v1667
      %v1669 = vcombine.high %v1446, %v1446
      %v1671 = vunpack.c.l.s4 1983009808
      %v1672 = vunpack.c.0.s8 %v1671
      %v1673 = vlaneseq
      %v1674 = vshrl.u32 %v1673, 7
      %v1675 = vsub.s32 %v1672, %v1674
      %v1676 = vrot.slane %v1446, %v1675
      %v1678 = vunpack.c.l.s4 1983009808
      %v1679 = vunpack.c.0.s8 %v1678
      %v1680 = vlaneseq
      %v1681 = vshrl.u32 %v1680, 7
      %v1682 = vsub.s32 %v1679, %v1681
      %v1683 = vrot.slane %v1669, %v1682
      %v1684 = vcombine.high %v1676, %v1676
      %v1685 = vcombine.high %v1683, %v1683
      %v1686 = vcombine.high %v1447, %v1447
      %v1688 = vunpack.c.l.s4 1983009808
      %v1689 = vunpack.c.0.s8 %v1688
      %v1690 = vlaneseq
      %v1691 = vshrl.u32 %v1690, 7
      %v1692 = vsub.s32 %v1689, %v1691
      %v1693 = vrot.slane %v1447, %v1692
      %v1695 = vunpack.c.l.s4 1983009808
      %v1696 = vunpack.c.0.s8 %v1695
      %v1697 = vlaneseq
      %v1698 = vshrl.u32 %v1697, 7
      %v1699 = vsub.s32 %v1696, %v1698
      %v1700 = vrot.slane %v1686, %v1699
      %v1701 = vcombine.high %v1693, %v1693
      %v1702 = vcombine.high %v1700, %v1700
      %v1704 = vunpack.c.l.s4 1983009808
      %v1705 = vunpack.c.0.s8 %v1704
      %v1706 = vlaneseq
      %v1707 = vshrl.u32 %v1706, 7
      %v1708 = vsub.s32 %v1705, %v1707
      %v1709 = vrot.slane %v1448, %v1708
      %v1710 = vcombine.high %v1449, %v1449
      %v1712 = vunpack.c.l.s4 1983009808
      %v1713 = vunpack.c.0.s8 %v1712
      %v1714 = vlaneseq
      %v1715 = vshrl.u32 %v1714, 7
      %v1716 = vsub.s32 %v1713, %v1715
      %v1717 = vrot.slane %v1449, %v1716
      %v1719 = vunpack.c.l.s4 1983009808
      %v1720 = vunpack.c.0.s8 %v1719
      %v1721 = vlaneseq
      %v1722 = vshrl.u32 %v1721, 7
      %v1723 = vsub.s32 %v1720, %v1722
      %v1724 = vrot.slane %v1710, %v1723
      %v1725 = vcombine.high %v1717, %v1717
      %v1726 = vcombine.high %v1724, %v1724
      %v1727 = vcombine.high %v1450, %v1450
      %v1729 = vunpack.c.l.s4 1983009808
      %v1730 = vunpack.c.0.s8 %v1729
      %v1731 = vlaneseq
      %v1732 = vshrl.u32 %v1731, 7
      %v1733 = vsub.s32 %v1730, %v1732
      %v1734 = vrot.slane %v1450, %v1733
      %v1736 = vunpack.c.l.s4 1983009808
      %v1737 = vunpack.c.0.s8 %v1736
      %v1738 = vlaneseq
      %v1739 = vshrl.u32 %v1738, 7
      %v1740 = vsub.s32 %v1737, %v1739
      %v1741 = vrot.slane %v1727, %v1740
      %v1742 = vcombine.high %v1734, %v1734
      %v1743 = vcombine.high %v1741, %v1741
      %v1745 = vunpack.c.l.s4 1983009808
      %v1746 = vunpack.c.0.s8 %v1745
      %v1747 = vlaneseq
      %v1748 = vshrl.u32 %v1747, 7
      %v1749 = vsub.s32 %v1746, %v1748
      %v1750 = vrot.slane %v1451, %v1749
      %v1751 = vcombine.high %v1452, %v1452
      %v1753 = vunpack.c.l.s4 1983009808
      %v1754 = vunpack.c.0.s8 %v1753
      %v1755 = vlaneseq
      %v1756 = vshrl.u32 %v1755, 7
      %v1757 = vsub.s32 %v1754, %v1756
      %v1758 = vrot.slane %v1452, %v1757
      %v1760 = vunpack.c.l.s4 1983009808
      %v1761 = vunpack.c.0.s8 %v1760
      %v1762 = vlaneseq
      %v1763 = vshrl.u32 %v1762, 7
      %v1764 = vsub.s32 %v1761, %v1763
      %v1765 = vrot.slane %v1751, %v1764
      %v1766 = vcombine.high %v1758, %v1758
      %v1767 = vcombine.high %v1765, %v1765
      %v1768 = vcombine.high %v1453, %v1453
      %v1770 = vunpack.c.l.s4 1983009808
      %v1771 = vunpack.c.0.s8 %v1770
      %v1772 = vlaneseq
      %v1773 = vshrl.u32 %v1772, 7
      %v1774 = vsub.s32 %v1771, %v1773
      %v1775 = vrot.slane %v1453, %v1774
      %v1777 = vunpack.c.l.s4 1983009808
      %v1778 = vunpack.c.0.s8 %v1777
      %v1779 = vlaneseq
      %v1780 = vshrl.u32 %v1779, 7
      %v1781 = vsub.s32 %v1778, %v1780
      %v1782 = vrot.slane %v1768, %v1781
      %v1783 = vcombine.high %v1775, %v1775
      %v1784 = vcombine.high %v1782, %v1782
      %v1786 = vunpack.c.l.s4 1983009808
      %v1787 = vunpack.c.0.s8 %v1786
      %v1788 = vlaneseq
      %v1789 = vshrl.u32 %v1788, 7
      %v1790 = vsub.s32 %v1787, %v1789
      %v1791 = vrot.slane %v1454, %v1790
      %v1792 = vcombine.high %v1455, %v1455
      %v1794 = vunpack.c.l.s4 1983009808
      %v1795 = vunpack.c.0.s8 %v1794
      %v1796 = vlaneseq
      %v1797 = vshrl.u32 %v1796, 7
      %v1798 = vsub.s32 %v1795, %v1797
      %v1799 = vrot.slane %v1455, %v1798
      %v1801 = vunpack.c.l.s4 1983009808
      %v1802 = vunpack.c.0.s8 %v1801
      %v1803 = vlaneseq
      %v1804 = vshrl.u32 %v1803, 7
      %v1805 = vsub.s32 %v1802, %v1804
      %v1806 = vrot.slane %v1792, %v1805
      %v1807 = vcombine.high %v1799, %v1799
      %v1808 = vcombine.high %v1806, %v1806
      %v1809 = vcombine.high %v1456, %v1456
      %v1811 = vunpack.c.l.s4 1983009808
      %v1812 = vunpack.c.0.s8 %v1811
      %v1813 = vlaneseq
      %v1814 = vshrl.u32 %v1813, 7
      %v1815 = vsub.s32 %v1812, %v1814
      %v1816 = vrot.slane %v1456, %v1815
      %v1818 = vunpack.c.l.s4 1983009808
      %v1819 = vunpack.c.0.s8 %v1818
      %v1820 = vlaneseq
      %v1821 = vshrl.u32 %v1820, 7
      %v1822 = vsub.s32 %v1819, %v1821
      %v1823 = vrot.slane %v1809, %v1822
      %v1824 = vcombine.high %v1816, %v1816
      %v1825 = vcombine.high %v1823, %v1823
      %v1827 = vunpack.c.l.s4 1983009808
      %v1828 = vunpack.c.0.s8 %v1827
      %v1829 = vlaneseq
      %v1830 = vshrl.u32 %v1829, 7
      %v1831 = vsub.s32 %v1828, %v1830
      %v1832 = vrot.slane %v1457, %v1831
      %v1833 = vcombine.high %v1458, %v1458
      %v1835 = vunpack.c.l.s4 1983009808
      %v1836 = vunpack.c.0.s8 %v1835
      %v1837 = vlaneseq
      %v1838 = vshrl.u32 %v1837, 7
      %v1839 = vsub.s32 %v1836, %v1838
      %v1840 = vrot.slane %v1458, %v1839
      %v1842 = vunpack.c.l.s4 1983009808
      %v1843 = vunpack.c.0.s8 %v1842
      %v1844 = vlaneseq
      %v1845 = vshrl.u32 %v1844, 7
      %v1846 = vsub.s32 %v1843, %v1845
      %v1847 = vrot.slane %v1833, %v1846
      %v1848 = vcombine.high %v1840, %v1840
      %v1849 = vcombine.high %v1847, %v1847
      %v1850 = vcombine.high %v1459, %v1459
      %v1852 = vunpack.c.l.s4 1983009808
      %v1853 = vunpack.c.0.s8 %v1852
      %v1854 = vlaneseq
      %v1855 = vshrl.u32 %v1854, 7
      %v1856 = vsub.s32 %v1853, %v1855
      %v1857 = vrot.slane %v1459, %v1856
      %v1859 = vunpack.c.l.s4 1983009808
      %v1860 = vunpack.c.0.s8 %v1859
      %v1861 = vlaneseq
      %v1862 = vshrl.u32 %v1861, 7
      %v1863 = vsub.s32 %v1860, %v1862
      %v1864 = vrot.slane %v1850, %v1863
      %v1865 = vcombine.high %v1857, %v1857
      %v1866 = vcombine.high %v1864, %v1864
      %v1868 = vunpack.c.l.s4 1983009808
      %v1869 = vunpack.c.0.s8 %v1868
      %v1870 = vlaneseq
      %v1871 = vshrl.u32 %v1870, 7
      %v1872 = vsub.s32 %v1869, %v1871
      %v1873 = vrot.slane %v1460, %v1872
      %v1874 = vcombine.high %v1461, %v1461
      %v1876 = vunpack.c.l.s4 1983009808
      %v1877 = vunpack.c.0.s8 %v1876
      %v1878 = vlaneseq
      %v1879 = vshrl.u32 %v1878, 7
      %v1880 = vsub.s32 %v1877, %v1879
      %v1881 = vrot.slane %v1461, %v1880
      %v1883 = vunpack.c.l.s4 1983009808
      %v1884 = vunpack.c.0.s8 %v1883
      %v1885 = vlaneseq
      %v1886 = vshrl.u32 %v1885, 7
      %v1887 = vsub.s32 %v1884, %v1886
      %v1888 = vrot.slane %v1874, %v1887
      %v1889 = vcombine.high %v1881, %v1881
      %v1890 = vcombine.high %v1888, %v1888
      %v1891 = vcombine.high %v1462, %v1462
      %v1893 = vunpack.c.l.s4 1983009808
      %v1894 = vunpack.c.0.s8 %v1893
      %v1895 = vlaneseq
      %v1896 = vshrl.u32 %v1895, 7
      %v1897 = vsub.s32 %v1894, %v1896
      %v1898 = vrot.slane %v1462, %v1897
      %v1900 = vunpack.c.l.s4 1983009808
      %v1901 = vunpack.c.0.s8 %v1900
      %v1902 = vlaneseq
      %v1903 = vshrl.u32 %v1902, 7
      %v1904 = vsub.s32 %v1901, %v1903
      %v1905 = vrot.slane %v1891, %v1904
      %v1906 = vcombine.high %v1898, %v1898
      %v1907 = vcombine.high %v1905, %v1905
      %v1909 = vunpack.c.l.s4 1983009808
      %v1910 = vunpack.c.0.s8 %v1909
      %v1911 = vlaneseq
      %v1912 = vshrl.u32 %v1911, 7
      %v1913 = vsub.s32 %v1910, %v1912
      %v1914 = vrot.slane %v1463, %v1913
      %v1915 = vcombine.high %v1474, %v1474
      %v1917 = vunpack.c.l.s4 1983009808
      %v1918 = vunpack.c.0.s8 %v1917
      %v1919 = vlaneseq
      %v1920 = vshrl.u32 %v1919, 7
      %v1921 = vsub.s32 %v1918, %v1920
      %v1922 = vrot.slane %v1474, %v1921
      %v1924 = vunpack.c.l.s4 1983009808
      %v1925 = vunpack.c.0.s8 %v1924
      %v1926 = vlaneseq
      %v1927 = vshrl.u32 %v1926, 7
      %v1928 = vsub.s32 %v1925, %v1927
      %v1929 = vrot.slane %v1915, %v1928
      %v1930 = vcombine.high %v1922, %v1922
      %v1931 = vcombine.high %v1929, %v1929
      %v1932 = vcombine.low %v1512, %v1520
      %v1933 = vcombine.low %v1519, %v1521
      %v1935 = vunpack.c.l.s4 1983009808
      %v1936 = vunpack.c.0.s8 %v1935
      %v1937 = vlaneseq
      %v1938 = vshrl.u32 %v1937, 7
      %v1939 = vsub.s32 %v1936, %v1938
      %v1940 = vrot.slane %v1932, %v1939
      %v1942 = vunpack.c.l.s4 1983009808
      %v1943 = vunpack.c.0.s8 %v1942
      %v1944 = vlaneseq
      %v1945 = vshrl.u32 %v1944, 7
      %v1946 = vsub.s32 %v1943, %v1945
      %v1947 = vrot.slane %v1933, %v1946
      %v1948 = vcombine.low %v1940, %v1947
      %v1949 = vcombine.low %v1529, %v1537
      %v1950 = vcombine.low %v1536, %v1538
      %v1952 = vunpack.c.l.s4 1983009808
      %v1953 = vunpack.c.0.s8 %v1952
      %v1954 = vlaneseq
      %v1955 = vshrl.u32 %v1954, 7
      %v1956 = vsub.s32 %v1953, %v1955
      %v1957 = vrot.slane %v1949, %v1956
      %v1959 = vunpack.c.l.s4 1983009808
      %v1960 = vunpack.c.0.s8 %v1959
      %v1961 = vlaneseq
      %v1962 = vshrl.u32 %v1961, 7
      %v1963 = vsub.s32 %v1960, %v1962
      %v1964 = vrot.slane %v1950, %v1963
      %v1965 = vcombine.low %v1957, %v1964
      %v1966 = vcombine.low %v1545, %v1553
      %v1967 = vcombine.low %v1561, %v1560
      %v1969 = vunpack.c.l.s4 1983009808
      %v1970 = vunpack.c.0.s8 %v1969
      %v1971 = vlaneseq
      %v1972 = vshrl.u32 %v1971, 7
      %v1973 = vsub.s32 %v1970, %v1972
      %v1974 = vrot.slane %v1966, %v1973
      %v1976 = vunpack.c.l.s4 1983009808
      %v1977 = vunpack.c.0.s8 %v1976
      %v1978 = vlaneseq
      %v1979 = vshrl.u32 %v1978, 7
      %v1980 = vsub.s32 %v1977, %v1979
      %v1981 = vrot.slane %v1967, %v1980
      %v1982 = vcombine.low %v1974, %v1981
      %v1983 = vcombine.low %v1562, %v1570
      %v1984 = vcombine.low %v1578, %v1577
      %v1986 = vunpack.c.l.s4 1983009808
      %v1987 = vunpack.c.0.s8 %v1986
      %v1988 = vlaneseq
      %v1989 = vshrl.u32 %v1988, 7
      %v1990 = vsub.s32 %v1987, %v1989
      %v1991 = vrot.slane %v1983, %v1990
      %v1993 = vunpack.c.l.s4 1983009808
      %v1994 = vunpack.c.0.s8 %v1993
      %v1995 = vlaneseq
      %v1996 = vshrl.u32 %v1995, 7
      %v1997 = vsub.s32 %v1994, %v1996
      %v1998 = vrot.slane %v1984, %v1997
      %v1999 = vcombine.low %v1991, %v1998
      %v2000 = vcombine.low %v1579, %v1586
      %v2001 = vcombine.low %v1594, %v1602
      %v2003 = vunpack.c.l.s4 1983009808
      %v2004 = vunpack.c.0.s8 %v2003
      %v2005 = vlaneseq
      %v2006 = vshrl.u32 %v2005, 7
      %v2007 = vsub.s32 %v2004, %v2006
      %v2008 = vrot.slane %v2000, %v2007
      %v2010 = vunpack.c.l.s4 1983009808
      %v2011 = vunpack.c.0.s8 %v2010
      %v2012 = vlaneseq
      %v2013 = vshrl.u32 %v2012, 7
      %v2014 = vsub.s32 %v2011, %v2013
      %v2015 = vrot.slane %v2001, %v2014
      %v2016 = vcombine.low %v2008, %v2015
      %v2017 = vcombine.low %v1601, %v1603
      %v2018 = vcombine.low %v1611, %v1619
      %v2020 = vunpack.c.l.s4 1983009808
      %v2021 = vunpack.c.0.s8 %v2020
      %v2022 = vlaneseq
      %v2023 = vshrl.u32 %v2022, 7
      %v2024 = vsub.s32 %v2021, %v2023
      %v2025 = vrot.slane %v2017, %v2024
      %v2027 = vunpack.c.l.s4 1983009808
      %v2028 = vunpack.c.0.s8 %v2027
      %v2029 = vlaneseq
      %v2030 = vshrl.u32 %v2029, 7
      %v2031 = vsub.s32 %v2028, %v2030
      %v2032 = vrot.slane %v2018, %v2031
      %v2033 = vcombine.low %v2025, %v2032
      %v2034 = vcombine.low %v1618, %v1620
      %v2035 = vcombine.low %v1627, %v1635
      %v2037 = vunpack.c.l.s4 1983009808
      %v2038 = vunpack.c.0.s8 %v2037
      %v2039 = vlaneseq
      %v2040 = vshrl.u32 %v2039, 7
      %v2041 = vsub.s32 %v2038, %v2040
      %v2042 = vrot.slane %v2034, %v2041
      %v2044 = vunpack.c.l.s4 1983009808
      %v2045 = vunpack.c.0.s8 %v2044
      %v2046 = vlaneseq
      %v2047 = vshrl.u32 %v2046, 7
      %v2048 = vsub.s32 %v2045, %v2047
      %v2049 = vrot.slane %v2035, %v2048
      %v2050 = vcombine.low %v2042, %v2049
      %v2051 = vcombine.low %v1643, %v1642
      %v2052 = vcombine.low %v1644, %v1652
      %v2054 = vunpack.c.l.s4 1983009808
      %v2055 = vunpack.c.0.s8 %v2054
      %v2056 = vlaneseq
      %v2057 = vshrl.u32 %v2056, 7
      %v2058 = vsub.s32 %v2055, %v2057
      %v2059 = vrot.slane %v2051, %v2058
      %v2061 = vunpack.c.l.s4 1983009808
      %v2062 = vunpack.c.0.s8 %v2061
      %v2063 = vlaneseq
      %v2064 = vshrl.u32 %v2063, 7
      %v2065 = vsub.s32 %v2062, %v2064
      %v2066 = vrot.slane %v2052, %v2065
      %v2067 = vcombine.low %v2059, %v2066
      %v2068 = vcombine.low %v1660, %v1659
      %v2069 = vcombine.low %v1661, %v1668
      %v2071 = vunpack.c.l.s4 1983009808
      %v2072 = vunpack.c.0.s8 %v2071
      %v2073 = vlaneseq
      %v2074 = vshrl.u32 %v2073, 7
      %v2075 = vsub.s32 %v2072, %v2074
      %v2076 = vrot.slane %v2068, %v2075
      %v2078 = vunpack.c.l.s4 1983009808
      %v2079 = vunpack.c.0.s8 %v2078
      %v2080 = vlaneseq
      %v2081 = vshrl.u32 %v2080, 7
      %v2082 = vsub.s32 %v2079, %v2081
      %v2083 = vrot.slane %v2069, %v2082
      %v2084 = vcombine.low %v2076, %v2083
      %v2085 = vcombine.low %v1676, %v1684
      %v2086 = vcombine.low %v1683, %v1685
      %v2088 = vunpack.c.l.s4 1983009808
      %v2089 = vunpack.c.0.s8 %v2088
      %v2090 = vlaneseq
      %v2091 = vshrl.u32 %v2090, 7
      %v2092 = vsub.s32 %v2089, %v2091
      %v2093 = vrot.slane %v2085, %v2092
      %v2095 = vunpack.c.l.s4 1983009808
      %v2096 = vunpack.c.0.s8 %v2095
      %v2097 = vlaneseq
      %v2098 = vshrl.u32 %v2097, 7
      %v2099 = vsub.s32 %v2096, %v2098
      %v2100 = vrot.slane %v2086, %v2099
      %v2101 = vcombine.low %v2093, %v2100
      %v2102 = vcombine.low %v1693, %v1701
      %v2103 = vcombine.low %v1700, %v1702
      %v2105 = vunpack.c.l.s4 1983009808
      %v2106 = vunpack.c.0.s8 %v2105
      %v2107 = vlaneseq
      %v2108 = vshrl.u32 %v2107, 7
      %v2109 = vsub.s32 %v2106, %v2108
      %v2110 = vrot.slane %v2102, %v2109
      %v2112 = vunpack.c.l.s4 1983009808
      %v2113 = vunpack.c.0.s8 %v2112
      %v2114 = vlaneseq
      %v2115 = vshrl.u32 %v2114, 7
      %v2116 = vsub.s32 %v2113, %v2115
      %v2117 = vrot.slane %v2103, %v2116
      %v2118 = vcombine.low %v2110, %v2117
      %v2119 = vcombine.low %v1709, %v1717
      %v2120 = vcombine.low %v1725, %v1724
      %v2122 = vunpack.c.l.s4 1983009808
      %v2123 = vunpack.c.0.s8 %v2122
      %v2124 = vlaneseq
      %v2125 = vshrl.u32 %v2124, 7
      %v2126 = vsub.s32 %v2123, %v2125
      %v2127 = vrot.slane %v2119, %v2126
      %v2129 = vunpack.c.l.s4 1983009808
      %v2130 = vunpack.c.0.s8 %v2129
      %v2131 = vlaneseq
      %v2132 = vshrl.u32 %v2131, 7
      %v2133 = vsub.s32 %v2130, %v2132
      %v2134 = vrot.slane %v2120, %v2133
      %v2135 = vcombine.low %v2127, %v2134
      %v2136 = vcombine.low %v1726, %v1734
      %v2137 = vcombine.low %v1742, %v1741
      %v2139 = vunpack.c.l.s4 1983009808
      %v2140 = vunpack.c.0.s8 %v2139
      %v2141 = vlaneseq
      %v2142 = vshrl.u32 %v2141, 7
      %v2143 = vsub.s32 %v2140, %v2142
      %v2144 = vrot.slane %v2136, %v2143
      %v2146 = vunpack.c.l.s4 1983009808
      %v2147 = vunpack.c.0.s8 %v2146
      %v2148 = vlaneseq
      %v2149 = vshrl.u32 %v2148, 7
      %v2150 = vsub.s32 %v2147, %v2149
      %v2151 = vrot.slane %v2137, %v2150
      %v2152 = vcombine.low %v2144, %v2151
      %v2153 = vcombine.low %v1743, %v1750
      %v2154 = vcombine.low %v1758, %v1766
      %v2156 = vunpack.c.l.s4 1983009808
      %v2157 = vunpack.c.0.s8 %v2156
      %v2158 = vlaneseq
      %v2159 = vshrl.u32 %v2158, 7
      %v2160 = vsub.s32 %v2157, %v2159
      %v2161 = vrot.slane %v2153, %v2160
      %v2163 = vunpack.c.l.s4 1983009808
      %v2164 = vunpack.c.0.s8 %v2163
      %v2165 = vlaneseq
      %v2166 = vshrl.u32 %v2165, 7
      %v2167 = vsub.s32 %v2164, %v2166
      %v2168 = vrot.slane %v2154, %v2167
      %v2169 = vcombine.low %v2161, %v2168
      %v2170 = vcombine.low %v1765, %v1767
      %v2171 = vcombine.low %v1775, %v1783
      %v2173 = vunpack.c.l.s4 1983009808
      %v2174 = vunpack.c.0.s8 %v2173
      %v2175 = vlaneseq
      %v2176 = vshrl.u32 %v2175, 7
      %v2177 = vsub.s32 %v2174, %v2176
      %v2178 = vrot.slane %v2170, %v2177
      %v2180 = vunpack.c.l.s4 1983009808
      %v2181 = vunpack.c.0.s8 %v2180
      %v2182 = vlaneseq
      %v2183 = vshrl.u32 %v2182, 7
      %v2184 = vsub.s32 %v2181, %v2183
      %v2185 = vrot.slane %v2171, %v2184
      %v2186 = vcombine.low %v2178, %v2185
      %v2187 = vcombine.low %v1782, %v1784
      %v2188 = vcombine.low %v1791, %v1799
      %v2190 = vunpack.c.l.s4 1983009808
      %v2191 = vunpack.c.0.s8 %v2190
      %v2192 = vlaneseq
      %v2193 = vshrl.u32 %v2192, 7
      %v2194 = vsub.s32 %v2191, %v2193
      %v2195 = vrot.slane %v2187, %v2194
      %v2197 = vunpack.c.l.s4 1983009808
      %v2198 = vunpack.c.0.s8 %v2197
      %v2199 = vlaneseq
      %v2200 = vshrl.u32 %v2199, 7
      %v2201 = vsub.s32 %v2198, %v2200
      %v2202 = vrot.slane %v2188, %v2201
      %v2203 = vcombine.low %v2195, %v2202
      %v2204 = vcombine.low %v1807, %v1806
      %v2205 = vcombine.low %v1808, %v1816
      %v2207 = vunpack.c.l.s4 1983009808
      %v2208 = vunpack.c.0.s8 %v2207
      %v2209 = vlaneseq
      %v2210 = vshrl.u32 %v2209, 7
      %v2211 = vsub.s32 %v2208, %v2210
      %v2212 = vrot.slane %v2204, %v2211
      %v2214 = vunpack.c.l.s4 1983009808
      %v2215 = vunpack.c.0.s8 %v2214
      %v2216 = vlaneseq
      %v2217 = vshrl.u32 %v2216, 7
      %v2218 = vsub.s32 %v2215, %v2217
      %v2219 = vrot.slane %v2205, %v2218
      %v2220 = vcombine.low %v2212, %v2219
      %v2221 = vcombine.low %v1824, %v1823
      %v2222 = vcombine.low %v1825, %v1832
      %v2224 = vunpack.c.l.s4 1983009808
      %v2225 = vunpack.c.0.s8 %v2224
      %v2226 = vlaneseq
      %v2227 = vshrl.u32 %v2226, 7
      %v2228 = vsub.s32 %v2225, %v2227
      %v2229 = vrot.slane %v2221, %v2228
      %v2231 = vunpack.c.l.s4 1983009808
      %v2232 = vunpack.c.0.s8 %v2231
      %v2233 = vlaneseq
      %v2234 = vshrl.u32 %v2233, 7
      %v2235 = vsub.s32 %v2232, %v2234
      %v2236 = vrot.slane %v2222, %v2235
      %v2237 = vcombine.low %v2229, %v2236
      %v2238 = vcombine.low %v1840, %v1848
      %v2239 = vcombine.low %v1847, %v1849
      %v2241 = vunpack.c.l.s4 1983009808
      %v2242 = vunpack.c.0.s8 %v2241
      %v2243 = vlaneseq
      %v2244 = vshrl.u32 %v2243, 7
      %v2245 = vsub.s32 %v2242, %v2244
      %v2246 = vrot.slane %v2238, %v2245
      %v2248 = vunpack.c.l.s4 1983009808
      %v2249 = vunpack.c.0.s8 %v2248
      %v2250 = vlaneseq
      %v2251 = vshrl.u32 %v2250, 7
      %v2252 = vsub.s32 %v2249, %v2251
      %v2253 = vrot.slane %v2239, %v2252
      %v2254 = vcombine.low %v2246, %v2253
      %v2255 = vcombine.low %v1857, %v1865
      %v2256 = vcombine.low %v1864, %v1866
      %v2258 = vunpack.c.l.s4 1983009808
      %v2259 = vunpack.c.0.s8 %v2258
      %v2260 = vlaneseq
      %v2261 = vshrl.u32 %v2260, 7
      %v2262 = vsub.s32 %v2259, %v2261
      %v2263 = vrot.slane %v2255, %v2262
      %v2265 = vunpack.c.l.s4 1983009808
      %v2266 = vunpack.c.0.s8 %v2265
      %v2267 = vlaneseq
      %v2268 = vshrl.u32 %v2267, 7
      %v2269 = vsub.s32 %v2266, %v2268
      %v2270 = vrot.slane %v2256, %v2269
      %v2271 = vcombine.low %v2263, %v2270
      %v2272 = vcombine.low %v1873, %v1881
      %v2273 = vcombine.low %v1889, %v1888
      %v2275 = vunpack.c.l.s4 1983009808
      %v2276 = vunpack.c.0.s8 %v2275
      %v2277 = vlaneseq
      %v2278 = vshrl.u32 %v2277, 7
      %v2279 = vsub.s32 %v2276, %v2278
      %v2280 = vrot.slane %v2272, %v2279
      %v2282 = vunpack.c.l.s4 1983009808
      %v2283 = vunpack.c.0.s8 %v2282
      %v2284 = vlaneseq
      %v2285 = vshrl.u32 %v2284, 7
      %v2286 = vsub.s32 %v2283, %v2285
      %v2287 = vrot.slane %v2273, %v2286
      %v2288 = vcombine.low %v2280, %v2287
      %v2289 = vcombine.low %v1890, %v1898
      %v2290 = vcombine.low %v1906, %v1905
      %v2292 = vunpack.c.l.s4 1983009808
      %v2293 = vunpack.c.0.s8 %v2292
      %v2294 = vlaneseq
      %v2295 = vshrl.u32 %v2294, 7
      %v2296 = vsub.s32 %v2293, %v2295
      %v2297 = vrot.slane %v2289, %v2296
      %v2299 = vunpack.c.l.s4 1983009808
      %v2300 = vunpack.c.0.s8 %v2299
      %v2301 = vlaneseq
      %v2302 = vshrl.u32 %v2301, 7
      %v2303 = vsub.s32 %v2300, %v2302
      %v2304 = vrot.slane %v2290, %v2303
      %v2305 = vcombine.low %v2297, %v2304
      %v2306 = vcombine.low %v1907, %v1914
      %v2308 = vunpack.c.l.s4 1983009808
      %v2309 = vunpack.c.0.s8 %v2308
      %v2310 = vlaneseq
      %v2311 = vshrl.u32 %v2310, 7
      %v2312 = vsub.s32 %v2309, %v2311
      %v2313 = vrot.slane %v2306, %v2312
      %v2314 = vcombine.low %v1922, %v1930
      %v2315 = vcombine.low %v1929, %v1931
      %v2317 = vunpack.c.l.s4 1983009808
      %v2318 = vunpack.c.0.s8 %v2317
      %v2319 = vlaneseq
      %v2320 = vshrl.u32 %v2319, 7
      %v2321 = vsub.s32 %v2318, %v2320
      %v2322 = vrot.slane %v2314, %v2321
      %v2324 = vunpack.c.l.s4 1983009808
      %v2325 = vunpack.c.0.s8 %v2324
      %v2326 = vlaneseq
      %v2327 = vshrl.u32 %v2326, 7
      %v2328 = vsub.s32 %v2325, %v2327
      %v2329 = vrot.slane %v2315, %v2328
      %v2330 = vcombine.low %v2322, %v2329
      %v2331 = vcombine.low %v1922, %v1922
      %v2332 = vcombine.low %v1930, %v1929
      %v2334 = vunpack.c.l.s4 1983009808
      %v2335 = vunpack.c.0.s8 %v2334
      %v2336 = vlaneseq
      %v2337 = vshrl.u32 %v2336, 7
      %v2338 = vsub.s32 %v2335, %v2337
      %v2339 = vrot.slane %v2331, %v2338
      %v2341 = vunpack.c.l.s4 1983009808
      %v2342 = vunpack.c.0.s8 %v2341
      %v2343 = vlaneseq
      %v2344 = vshrl.u32 %v2343, 7
      %v2345 = vsub.s32 %v2342, %v2344
      %v2346 = vrot.slane %v2332, %v2345
      %v2347 = vcombine.low %v2339, %v2346
      %v2348 = vcombine.low %v1931, %v1922
      %v2350 = vunpack.c.l.s4 1983009808
      %v2351 = vunpack.c.0.s8 %v2350
      %v2352 = vlaneseq
      %v2353 = vshrl.u32 %v2352, 7
      %v2354 = vsub.s32 %v2351, %v2353
      %v2355 = vrot.slane %v2348, %v2354
      %v2356 = vcombine.low %v2355, %v2346
      %v2357 = vcombine.low %v2355, %v2322
      %v2358 = vcombine.low %v2329, %v2322
      %v2359 = vcombine.low %v2329, %v2339
      %v2360 = vcombine.low %v2346, %v2355
      %vm2369 = vcmask 293888
      %v2370 = vsel %vm2369, %v1948, 0
      %v2372 = vsel %vm2369, %v1965, 0
      %v2374 = vsel %vm2369, %v1982, 0
      %v2376 = vsel %vm2369, %v1999, 0
      %v2378 = vsel %vm2369, %v2016, 0
      %v2380 = vsel %vm2369, %v2033, 0
      %v2382 = vsel %vm2369, %v2050, 0
      %v2384 = vsel %vm2369, %v2067, 0
      %v2386 = vsel %vm2369, %v2084, 0
      %v2388 = vsel %vm2369, %v2101, 0
      %v2390 = vsel %vm2369, %v2118, 0
      %v2392 = vsel %vm2369, %v2135, 0
      %v2394 = vsel %vm2369, %v2152, 0
      %v2396 = vsel %vm2369, %v2169, 0
      %v2398 = vsel %vm2369, %v2186, 0
      %v2400 = vsel %vm2369, %v2203, 0
      %v2402 = vsel %vm2369, %v2220, 0
      %v2404 = vsel %vm2369, %v2237, 0
      %v2406 = vsel %vm2369, %v2254, 0
      %v2408 = vsel %vm2369, %v2271, 0
      %v2410 = vsel %vm2369, %v2288, 0
      %v2412 = vsel %vm2369, %v2305, 0
      %v2414 = vsel %vm2369, %v2313, 0
      %vm2416 = vcmask 1043456
      %v2418 = vsel %vm2416, %v1468, 0
      %2420 = vmatprep.subr.mxu0 0.0
      %2421 = vmatpush1.msra.mxu0 %v1464
      %2422 = vmatprep.subr.mxu0 0.0
      %2423 = vmatpush1.msra.mxu0 %v1465
      %2424 = vmatprep.subr.mxu0 0.0
      %2425 = vmatpush1.msra.mxu0 %v1466
      %2426 = vmatprep.subr.mxu0 0.0
      %2427 = vmatpush1.msra.mxu0 %v1467
      %2428 = vmatprep.subr.mxu0 0.0
      %2429 = vmatpush1.msra.mxu0 %v2418
      %2430 = vmatprep.subr.mxu0 0.0
      %2431 = vmatpush1.msra.mxu0 0.0
      %2432 = vmatprep.subr.mxu0 0.0
      %2433 = vmatpush1.msra.mxu0 0.0
      %2434 = vmatprep.subr.mxu0 0.0
      %2435 = vmatpush1.msra.mxu0 0.0
      %2436 = vmatprep.subr.mxu0 0.0
      %2437 = vmatpush1.msra.mxu0 0.0
      %2438 = vmatprep.subr.mxu0 0.0
      %2439 = vmatpush1.msra.mxu0 0.0
      %2440 = vmatprep.subr.mxu0 0.0
      %2441 = vmatpush1.msra.mxu0 0.0
      %2442 = vmatprep.subr.mxu0 0.0
      %2443 = vmatpush1.msra.mxu0 0.0
      %2444 = vmatprep.subr.mxu0 0.0
      %2445 = vmatpush1.msra.mxu0 0.0
      %2446 = vmatprep.subr.mxu0 0.0
      %2447 = vmatpush1.msra.mxu0 0.0
      %2448 = vmatprep.subr.mxu0 0.0
      %2449 = vmatpush1.msra.mxu0 0.0
      %2450 = vmatprep.subr.mxu0 0.0
      %2451 = vmatpush1.msra.mxu0 0.0
      %2452 = vmatprep.subr.mxu0 0.0
      %2453 = vmatpush1.msra.mxu0 0.0
      %2454 = vmatprep.subr.mxu0 0.0
      %2455 = vmatpush1.msra.mxu0 0.0
      %2456 = vmatprep.subr.mxu0 0.0
      %2457 = vmatpush1.msra.mxu0 0.0
      %2458 = vmatprep.subr.mxu0 0.0
      %2459 = vmatpush1.msra.mxu0 0.0
      %2460 = vmatprep.subr.mxu0 0.0
      %2461 = vmatpush1.msra.mxu0 0.0
      %2462 = vmatprep.subr.mxu0 0.0
      %2463 = vmatpush1.msra.mxu0 0.0
      %2464 = vmatprep.subr.mxu0 0.0
      %2465 = vmatpush1.msra.mxu0 0.0
      %2466 = vmatprep.subr.mxu0 0.0
      %2467 = vmatpush1.msra.mxu0 0.0
      %2468 = vmatprep.subr.mxu0 0.0
      %2469 = vmatpush1.msra.mxu0 0.0
      %2470 = vmatprep.subr.mxu0 0.0
      %2471 = vmatpush1.msra.mxu0 0.0
      %2472 = vmatprep.subr.mxu0 0.0
      %2473 = vmatpush1.msra.mxu0 0.0
      %2474 = vmatprep.subr.mxu0 0.0
      %2475 = vmatpush1.msra.mxu0 0.0
      %2476 = vmatprep.subr.mxu0 0.0
      %2477 = vmatpush1.msra.mxu0 0.0
      %2478 = vmatprep.subr.mxu0 0.0
      %2479 = vmatpush1.msra.mxu0 0.0
      %2480 = vmatprep.subr.mxu0 0.0
      %2481 = vmatpush1.msra.mxu0 0.0
      %2482 = vmatprep.subr.mxu0 0.0
      %2483 = vmatpush1.msra.mxu0 0.0
      %2484 = vmatprep.mubr.f32.mxu0 0.0
      %2485 = vmatmul.mubr.f32.gmra.mrb[0].mxu0 %v2370
      %v2486 = vpop.f32.mrb[0].mxu0
      %v2487 = vadd.f32 %v2330, %v2486
      %v2488 = vpop.f32.mrb[0].mxu0
      %2489 = vmatprep.mubr.f32.mxu0 0.0
      %2490 = vmatmul.mubr.f32.gmra.mrb[0].mxu0 %v2372
      %v2491 = vpop.f32.mrb[0].mxu0
      %v2492 = vadd.f32 %v2330, %v2491
      %v2493 = vpop.f32.mrb[0].mxu0
      %2494 = vmatprep.mubr.f32.mxu0 0.0
      %2495 = vmatmul.mubr.f32.gmra.mrb[0].mxu0 %v2374
      %v2496 = vpop.f32.mrb[0].mxu0
      %v2497 = vadd.f32 %v2347, %v2496
      %v2498 = vpop.f32.mrb[0].mxu0
      %2499 = vmatprep.mubr.f32.mxu0 0.0
      %2500 = vmatmul.mubr.f32.gmra.mrb[0].mxu0 %v2376
      %v2501 = vpop.f32.mrb[0].mxu0
      %v2502 = vadd.f32 %v2356, %v2501
      %v2503 = vpop.f32.mrb[0].mxu0
      %2504 = vmatprep.mubr.f32.mxu0 0.0
      %2505 = vmatmul.mubr.f32.gmra.mrb[0].mxu0 %v2378
      %v2506 = vpop.f32.mrb[0].mxu0
      %v2507 = vadd.f32 %v2357, %v2506
      %v2508 = vpop.f32.mrb[0].mxu0
      %2509 = vmatprep.mubr.f32.mxu0 0.0
      %2510 = vmatmul.mubr.f32.gmra.mrb[0].mxu0 %v2380
      %v2511 = vpop.f32.mrb[0].mxu0
      %v2512 = vadd.f32 %v2358, %v2511
      %v2513 = vpop.f32.mrb[0].mxu0
      %2514 = vmatprep.mubr.f32.mxu0 0.0
      %2515 = vmatmul.mubr.f32.gmra.mrb[0].mxu0 %v2382
      %v2516 = vpop.f32.mrb[0].mxu0
      %v2517 = vadd.f32 %v2359, %v2516
      %v2518 = vpop.f32.mrb[0].mxu0
      %2519 = vmatprep.mubr.f32.mxu0 0.0
      %2520 = vmatmul.mubr.f32.gmra.mrb[0].mxu0 %v2384
      %v2521 = vpop.f32.mrb[0].mxu0
      %v2522 = vadd.f32 %v2360, %v2521
      %v2523 = vpop.f32.mrb[0].mxu0
      %2524 = vmatprep.mubr.f32.mxu0 0.0
      %2525 = vmatmul.mubr.f32.gmra.mrb[0].mxu0 %v2386
      %v2526 = vpop.f32.mrb[0].mxu0
      %v2527 = vadd.f32 %v2360, %v2526
      %v2528 = vpop.f32.mrb[0].mxu0
      %2529 = vmatprep.mubr.f32.mxu0 0.0
      %2530 = vmatmul.mubr.f32.gmra.mrb[0].mxu0 %v2388
      %v2531 = vpop.f32.mrb[0].mxu0
      %v2532 = vadd.f32 %v2330, %v2531
      %v2533 = vpop.f32.mrb[0].mxu0
      %2534 = vmatprep.mubr.f32.mxu0 0.0
      %2535 = vmatmul.mubr.f32.gmra.mrb[0].mxu0 %v2390
      %v2536 = vpop.f32.mrb[0].mxu0
      %v2537 = vadd.f32 %v2330, %v2536
      %v2538 = vpop.f32.mrb[0].mxu0
      %2539 = vmatprep.mubr.f32.mxu0 0.0
      %2540 = vmatmul.mubr.f32.gmra.mrb[0].mxu0 %v2392
      %v2541 = vpop.f32.mrb[0].mxu0
      %v2542 = vadd.f32 %v2347, %v2541
      %v2543 = vpop.f32.mrb[0].mxu0
      %2544 = vmatprep.mubr.f32.mxu0 0.0
      %2545 = vmatmul.mubr.f32.gmra.mrb[0].mxu0 %v2394
      %v2546 = vpop.f32.mrb[0].mxu0
      %v2547 = vadd.f32 %v2356, %v2546
      %v2548 = vpop.f32.mrb[0].mxu0
      %2549 = vmatprep.mubr.f32.mxu0 0.0
      %2550 = vmatmul.mubr.f32.gmra.mrb[0].mxu0 %v2396
      %v2551 = vpop.f32.mrb[0].mxu0
      %v2552 = vadd.f32 %v2357, %v2551
      %v2553 = vpop.f32.mrb[0].mxu0
      %2554 = vmatprep.mubr.f32.mxu0 0.0
      %2555 = vmatmul.mubr.f32.gmra.mrb[0].mxu0 %v2398
      %v2556 = vpop.f32.mrb[0].mxu0
      %v2557 = vadd.f32 %v2358, %v2556
      %v2558 = vpop.f32.mrb[0].mxu0
      %2559 = vmatprep.mubr.f32.mxu0 0.0
      %2560 = vmatmul.mubr.f32.gmra.mrb[0].mxu0 %v2400
      %v2561 = vpop.f32.mrb[0].mxu0
      %v2562 = vadd.f32 %v2359, %v2561
      %v2563 = vpop.f32.mrb[0].mxu0
      %2564 = vmatprep.mubr.f32.mxu0 0.0
      %2565 = vmatmul.mubr.f32.gmra.mrb[0].mxu0 %v2402
      %v2566 = vpop.f32.mrb[0].mxu0
      %v2567 = vadd.f32 %v2360, %v2566
      %v2568 = vpop.f32.mrb[0].mxu0
      %2569 = vmatprep.mubr.f32.mxu0 0.0
      %2570 = vmatmul.mubr.f32.gmra.mrb[0].mxu0 %v2404
      %v2571 = vpop.f32.mrb[0].mxu0
      %v2572 = vadd.f32 %v2360, %v2571
      %v2573 = vpop.f32.mrb[0].mxu0
      %2574 = vmatprep.mubr.f32.mxu0 0.0
      %2575 = vmatmul.mubr.f32.gmra.mrb[0].mxu0 %v2406
      %v2576 = vpop.f32.mrb[0].mxu0
      %v2577 = vadd.f32 %v2330, %v2576
      %v2578 = vpop.f32.mrb[0].mxu0
      %2579 = vmatprep.mubr.f32.mxu0 0.0
      %2580 = vmatmul.mubr.f32.gmra.mrb[0].mxu0 %v2408
      %v2581 = vpop.f32.mrb[0].mxu0
      %v2582 = vadd.f32 %v2330, %v2581
      %v2583 = vpop.f32.mrb[0].mxu0
      %2584 = vmatprep.mubr.f32.mxu0 0.0
      %2585 = vmatmul.mubr.f32.gmra.mrb[0].mxu0 %v2410
      %v2586 = vpop.f32.mrb[0].mxu0
      %v2587 = vadd.f32 %v2347, %v2586
      %v2588 = vpop.f32.mrb[0].mxu0
      %2589 = vmatprep.mubr.f32.mxu0 0.0
      %2590 = vmatmul.mubr.f32.gmra.mrb[0].mxu0 %v2412
      %v2591 = vpop.f32.mrb[0].mxu0
      %v2592 = vadd.f32 %v2356, %v2591
      %v2593 = vpop.f32.mrb[0].mxu0
      %2594 = vmatprep.mubr.f32.mxu0 0.0
      %2595 = vmatmul.mubr.f32.gmra.mrb[0].mxu0 %v2414
      %v2596 = vpop.f32.mrb[0].mxu0
      %v2597 = vadd.f32 %v2355, %v2596
      %v2598 = vpop.f32.mrb[0].mxu0
      %2599 = vdwg.mxu0
      %v2623 = vcombine.high %v2487, %v2487
      %v2625 = vunpack.c.l.s4 1983009808
      %v2626 = vunpack.c.0.s8 %v2625
      %v2627 = vlaneseq
      %v2628 = vshrl.u32 %v2627, 7
      %v2629 = vsub.s32 %v2626, %v2628
      %v2630 = vrot.slane %v2487, %v2629
      %v2632 = vunpack.c.l.s4 1983009808
      %v2633 = vunpack.c.0.s8 %v2632
      %v2634 = vlaneseq
      %v2635 = vshrl.u32 %v2634, 7
      %v2636 = vsub.s32 %v2633, %v2635
      %v2637 = vrot.slane %v2623, %v2636
      %v2638 = vcombine.high %v2630, %v2630
      %v2639 = vcombine.high %v2637, %v2637
      %v2640 = vcombine.high %v2492, %v2492
      %v2642 = vunpack.c.l.s4 1983009808
      %v2643 = vunpack.c.0.s8 %v2642
      %v2644 = vlaneseq
      %v2645 = vshrl.u32 %v2644, 7
      %v2646 = vsub.s32 %v2643, %v2645
      %v2647 = vrot.slane %v2492, %v2646
      %v2649 = vunpack.c.l.s4 1983009808
      %v2650 = vunpack.c.0.s8 %v2649
      %v2651 = vlaneseq
      %v2652 = vshrl.u32 %v2651, 7
      %v2653 = vsub.s32 %v2650, %v2652
      %v2654 = vrot.slane %v2640, %v2653
      %v2655 = vcombine.high %v2647, %v2647
      %v2656 = vcombine.high %v2654, %v2654
      %v2657 = vcombine.high %v2497, %v2497
      %v2659 = vunpack.c.l.s4 1983009808
      %v2660 = vunpack.c.0.s8 %v2659
      %v2661 = vlaneseq
      %v2662 = vshrl.u32 %v2661, 7
      %v2663 = vsub.s32 %v2660, %v2662
      %v2664 = vrot.slane %v2497, %v2663
      %v2666 = vunpack.c.l.s4 1983009808
      %v2667 = vunpack.c.0.s8 %v2666
      %v2668 = vlaneseq
      %v2669 = vshrl.u32 %v2668, 7
      %v2670 = vsub.s32 %v2667, %v2669
      %v2671 = vrot.slane %v2657, %v2670
      %v2672 = vcombine.high %v2664, %v2664
      %v2673 = vcombine.high %v2671, %v2671
      %v2674 = vcombine.high %v2502, %v2502
      %v2676 = vunpack.c.l.s4 1983009808
      %v2677 = vunpack.c.0.s8 %v2676
      %v2678 = vlaneseq
      %v2679 = vshrl.u32 %v2678, 7
      %v2680 = vsub.s32 %v2677, %v2679
      %v2681 = vrot.slane %v2502, %v2680
      %v2683 = vunpack.c.l.s4 1983009808
      %v2684 = vunpack.c.0.s8 %v2683
      %v2685 = vlaneseq
      %v2686 = vshrl.u32 %v2685, 7
      %v2687 = vsub.s32 %v2684, %v2686
      %v2688 = vrot.slane %v2674, %v2687
      %v2689 = vcombine.high %v2681, %v2681
      %v2690 = vcombine.high %v2688, %v2688
      %v2691 = vcombine.high %v2507, %v2507
      %v2693 = vunpack.c.l.s4 1983009808
      %v2694 = vunpack.c.0.s8 %v2693
      %v2695 = vlaneseq
      %v2696 = vshrl.u32 %v2695, 7
      %v2697 = vsub.s32 %v2694, %v2696
      %v2698 = vrot.slane %v2507, %v2697
      %v2700 = vunpack.c.l.s4 1983009808
      %v2701 = vunpack.c.0.s8 %v2700
      %v2702 = vlaneseq
      %v2703 = vshrl.u32 %v2702, 7
      %v2704 = vsub.s32 %v2701, %v2703
      %v2705 = vrot.slane %v2691, %v2704
      %v2706 = vcombine.high %v2698, %v2698
      %v2707 = vcombine.high %v2705, %v2705
      %v2708 = vcombine.high %v2512, %v2512
      %v2710 = vunpack.c.l.s4 1983009808
      %v2711 = vunpack.c.0.s8 %v2710
      %v2712 = vlaneseq
      %v2713 = vshrl.u32 %v2712, 7
      %v2714 = vsub.s32 %v2711, %v2713
      %v2715 = vrot.slane %v2512, %v2714
      %v2717 = vunpack.c.l.s4 1983009808
      %v2718 = vunpack.c.0.s8 %v2717
      %v2719 = vlaneseq
      %v2720 = vshrl.u32 %v2719, 7
      %v2721 = vsub.s32 %v2718, %v2720
      %v2722 = vrot.slane %v2708, %v2721
      %v2723 = vcombine.high %v2715, %v2715
      %v2724 = vcombine.high %v2722, %v2722
      %v2725 = vcombine.high %v2517, %v2517
      %v2727 = vunpack.c.l.s4 1983009808
      %v2728 = vunpack.c.0.s8 %v2727
      %v2729 = vlaneseq
      %v2730 = vshrl.u32 %v2729, 7
      %v2731 = vsub.s32 %v2728, %v2730
      %v2732 = vrot.slane %v2517, %v2731
      %v2734 = vunpack.c.l.s4 1983009808
      %v2735 = vunpack.c.0.s8 %v2734
      %v2736 = vlaneseq
      %v2737 = vshrl.u32 %v2736, 7
      %v2738 = vsub.s32 %v2735, %v2737
      %v2739 = vrot.slane %v2725, %v2738
      %v2740 = vcombine.high %v2732, %v2732
      %v2741 = vcombine.high %v2739, %v2739
      %v2742 = vcombine.high %v2522, %v2522
      %v2744 = vunpack.c.l.s4 1983009808
      %v2745 = vunpack.c.0.s8 %v2744
      %v2746 = vlaneseq
      %v2747 = vshrl.u32 %v2746, 7
      %v2748 = vsub.s32 %v2745, %v2747
      %v2749 = vrot.slane %v2522, %v2748
      %v2751 = vunpack.c.l.s4 1983009808
      %v2752 = vunpack.c.0.s8 %v2751
      %v2753 = vlaneseq
      %v2754 = vshrl.u32 %v2753, 7
      %v2755 = vsub.s32 %v2752, %v2754
      %v2756 = vrot.slane %v2742, %v2755
      %v2757 = vcombine.high %v2749, %v2749
      %v2758 = vcombine.high %v2756, %v2756
      %v2759 = vcombine.high %v2527, %v2527
      %v2761 = vunpack.c.l.s4 1983009808
      %v2762 = vunpack.c.0.s8 %v2761
      %v2763 = vlaneseq
      %v2764 = vshrl.u32 %v2763, 7
      %v2765 = vsub.s32 %v2762, %v2764
      %v2766 = vrot.slane %v2527, %v2765
      %v2768 = vunpack.c.l.s4 1983009808
      %v2769 = vunpack.c.0.s8 %v2768
      %v2770 = vlaneseq
      %v2771 = vshrl.u32 %v2770, 7
      %v2772 = vsub.s32 %v2769, %v2771
      %v2773 = vrot.slane %v2759, %v2772
      %v2774 = vcombine.high %v2766, %v2766
      %v2775 = vcombine.high %v2773, %v2773
      %v2776 = vcombine.high %v2532, %v2532
      %v2778 = vunpack.c.l.s4 1983009808
      %v2779 = vunpack.c.0.s8 %v2778
      %v2780 = vlaneseq
      %v2781 = vshrl.u32 %v2780, 7
      %v2782 = vsub.s32 %v2779, %v2781
      %v2783 = vrot.slane %v2532, %v2782
      %v2785 = vunpack.c.l.s4 1983009808
      %v2786 = vunpack.c.0.s8 %v2785
      %v2787 = vlaneseq
      %v2788 = vshrl.u32 %v2787, 7
      %v2789 = vsub.s32 %v2786, %v2788
      %v2790 = vrot.slane %v2776, %v2789
      %v2791 = vcombine.high %v2783, %v2783
      %v2792 = vcombine.high %v2790, %v2790
      %v2793 = vcombine.high %v2537, %v2537
      %v2795 = vunpack.c.l.s4 1983009808
      %v2796 = vunpack.c.0.s8 %v2795
      %v2797 = vlaneseq
      %v2798 = vshrl.u32 %v2797, 7
      %v2799 = vsub.s32 %v2796, %v2798
      %v2800 = vrot.slane %v2537, %v2799
      %v2802 = vunpack.c.l.s4 1983009808
      %v2803 = vunpack.c.0.s8 %v2802
      %v2804 = vlaneseq
      %v2805 = vshrl.u32 %v2804, 7
      %v2806 = vsub.s32 %v2803, %v2805
      %v2807 = vrot.slane %v2793, %v2806
      %v2808 = vcombine.high %v2800, %v2800
      %v2809 = vcombine.high %v2807, %v2807
      %v2810 = vcombine.high %v2542, %v2542
      %v2812 = vunpack.c.l.s4 1983009808
      %v2813 = vunpack.c.0.s8 %v2812
      %v2814 = vlaneseq
      %v2815 = vshrl.u32 %v2814, 7
      %v2816 = vsub.s32 %v2813, %v2815
      %v2817 = vrot.slane %v2542, %v2816
      %v2819 = vunpack.c.l.s4 1983009808
      %v2820 = vunpack.c.0.s8 %v2819
      %v2821 = vlaneseq
      %v2822 = vshrl.u32 %v2821, 7
      %v2823 = vsub.s32 %v2820, %v2822
      %v2824 = vrot.slane %v2810, %v2823
      %v2825 = vcombine.high %v2817, %v2817
      %v2826 = vcombine.high %v2824, %v2824
      %v2827 = vcombine.high %v2547, %v2547
      %v2829 = vunpack.c.l.s4 1983009808
      %v2830 = vunpack.c.0.s8 %v2829
      %v2831 = vlaneseq
      %v2832 = vshrl.u32 %v2831, 7
      %v2833 = vsub.s32 %v2830, %v2832
      %v2834 = vrot.slane %v2547, %v2833
      %v2836 = vunpack.c.l.s4 1983009808
      %v2837 = vunpack.c.0.s8 %v2836
      %v2838 = vlaneseq
      %v2839 = vshrl.u32 %v2838, 7
      %v2840 = vsub.s32 %v2837, %v2839
      %v2841 = vrot.slane %v2827, %v2840
      %v2842 = vcombine.high %v2834, %v2834
      %v2843 = vcombine.high %v2841, %v2841
      %v2844 = vcombine.high %v2552, %v2552
      %v2846 = vunpack.c.l.s4 1983009808
      %v2847 = vunpack.c.0.s8 %v2846
      %v2848 = vlaneseq
      %v2849 = vshrl.u32 %v2848, 7
      %v2850 = vsub.s32 %v2847, %v2849
      %v2851 = vrot.slane %v2552, %v2850
      %v2853 = vunpack.c.l.s4 1983009808
      %v2854 = vunpack.c.0.s8 %v2853
      %v2855 = vlaneseq
      %v2856 = vshrl.u32 %v2855, 7
      %v2857 = vsub.s32 %v2854, %v2856
      %v2858 = vrot.slane %v2844, %v2857
      %v2859 = vcombine.high %v2851, %v2851
      %v2860 = vcombine.high %v2858, %v2858
      %v2861 = vcombine.high %v2557, %v2557
      %v2863 = vunpack.c.l.s4 1983009808
      %v2864 = vunpack.c.0.s8 %v2863
      %v2865 = vlaneseq
      %v2866 = vshrl.u32 %v2865, 7
      %v2867 = vsub.s32 %v2864, %v2866
      %v2868 = vrot.slane %v2557, %v2867
      %v2870 = vunpack.c.l.s4 1983009808
      %v2871 = vunpack.c.0.s8 %v2870
      %v2872 = vlaneseq
      %v2873 = vshrl.u32 %v2872, 7
      %v2874 = vsub.s32 %v2871, %v2873
      %v2875 = vrot.slane %v2861, %v2874
      %v2876 = vcombine.high %v2868, %v2868
      %v2877 = vcombine.high %v2875, %v2875
      %v2878 = vcombine.high %v2562, %v2562
      %v2880 = vunpack.c.l.s4 1983009808
      %v2881 = vunpack.c.0.s8 %v2880
      %v2882 = vlaneseq
      %v2883 = vshrl.u32 %v2882, 7
      %v2884 = vsub.s32 %v2881, %v2883
      %v2885 = vrot.slane %v2562, %v2884
      %v2887 = vunpack.c.l.s4 1983009808
      %v2888 = vunpack.c.0.s8 %v2887
      %v2889 = vlaneseq
      %v2890 = vshrl.u32 %v2889, 7
      %v2891 = vsub.s32 %v2888, %v2890
      %v2892 = vrot.slane %v2878, %v2891
      %v2893 = vcombine.high %v2885, %v2885
      %v2894 = vcombine.high %v2892, %v2892
      %v2895 = vcombine.high %v2567, %v2567
      %v2897 = vunpack.c.l.s4 1983009808
      %v2898 = vunpack.c.0.s8 %v2897
      %v2899 = vlaneseq
      %v2900 = vshrl.u32 %v2899, 7
      %v2901 = vsub.s32 %v2898, %v2900
      %v2902 = vrot.slane %v2567, %v2901
      %v2904 = vunpack.c.l.s4 1983009808
      %v2905 = vunpack.c.0.s8 %v2904
      %v2906 = vlaneseq
      %v2907 = vshrl.u32 %v2906, 7
      %v2908 = vsub.s32 %v2905, %v2907
      %v2909 = vrot.slane %v2895, %v2908
      %v2910 = vcombine.high %v2902, %v2902
      %v2911 = vcombine.high %v2909, %v2909
      %v2912 = vcombine.high %v2572, %v2572
      %v2914 = vunpack.c.l.s4 1983009808
      %v2915 = vunpack.c.0.s8 %v2914
      %v2916 = vlaneseq
      %v2917 = vshrl.u32 %v2916, 7
      %v2918 = vsub.s32 %v2915, %v2917
      %v2919 = vrot.slane %v2572, %v2918
      %v2921 = vunpack.c.l.s4 1983009808
      %v2922 = vunpack.c.0.s8 %v2921
      %v2923 = vlaneseq
      %v2924 = vshrl.u32 %v2923, 7
      %v2925 = vsub.s32 %v2922, %v2924
      %v2926 = vrot.slane %v2912, %v2925
      %v2927 = vcombine.high %v2919, %v2919
      %v2928 = vcombine.high %v2926, %v2926
      %v2929 = vcombine.high %v2577, %v2577
      %v2931 = vunpack.c.l.s4 1983009808
      %v2932 = vunpack.c.0.s8 %v2931
      %v2933 = vlaneseq
      %v2934 = vshrl.u32 %v2933, 7
      %v2935 = vsub.s32 %v2932, %v2934
      %v2936 = vrot.slane %v2577, %v2935
      %v2938 = vunpack.c.l.s4 1983009808
      %v2939 = vunpack.c.0.s8 %v2938
      %v2940 = vlaneseq
      %v2941 = vshrl.u32 %v2940, 7
      %v2942 = vsub.s32 %v2939, %v2941
      %v2943 = vrot.slane %v2929, %v2942
      %v2944 = vcombine.high %v2936, %v2936
      %v2945 = vcombine.high %v2943, %v2943
      %v2946 = vcombine.high %v2582, %v2582
      %v2948 = vunpack.c.l.s4 1983009808
      %v2949 = vunpack.c.0.s8 %v2948
      %v2950 = vlaneseq
      %v2951 = vshrl.u32 %v2950, 7
      %v2952 = vsub.s32 %v2949, %v2951
      %v2953 = vrot.slane %v2582, %v2952
      %v2955 = vunpack.c.l.s4 1983009808
      %v2956 = vunpack.c.0.s8 %v2955
      %v2957 = vlaneseq
      %v2958 = vshrl.u32 %v2957, 7
      %v2959 = vsub.s32 %v2956, %v2958
      %v2960 = vrot.slane %v2946, %v2959
      %v2961 = vcombine.high %v2953, %v2953
      %v2962 = vcombine.high %v2960, %v2960
      %v2963 = vcombine.high %v2587, %v2587
      %v2965 = vunpack.c.l.s4 1983009808
      %v2966 = vunpack.c.0.s8 %v2965
      %v2967 = vlaneseq
      %v2968 = vshrl.u32 %v2967, 7
      %v2969 = vsub.s32 %v2966, %v2968
      %v2970 = vrot.slane %v2587, %v2969
      %v2972 = vunpack.c.l.s4 1983009808
      %v2973 = vunpack.c.0.s8 %v2972
      %v2974 = vlaneseq
      %v2975 = vshrl.u32 %v2974, 7
      %v2976 = vsub.s32 %v2973, %v2975
      %v2977 = vrot.slane %v2963, %v2976
      %v2978 = vcombine.high %v2970, %v2970
      %v2979 = vcombine.high %v2977, %v2977
      %v2980 = vcombine.high %v2592, %v2592
      %v2982 = vunpack.c.l.s4 1983009808
      %v2983 = vunpack.c.0.s8 %v2982
      %v2984 = vlaneseq
      %v2985 = vshrl.u32 %v2984, 7
      %v2986 = vsub.s32 %v2983, %v2985
      %v2987 = vrot.slane %v2592, %v2986
      %v2989 = vunpack.c.l.s4 1983009808
      %v2990 = vunpack.c.0.s8 %v2989
      %v2991 = vlaneseq
      %v2992 = vshrl.u32 %v2991, 7
      %v2993 = vsub.s32 %v2990, %v2992
      %v2994 = vrot.slane %v2980, %v2993
      %v2995 = vcombine.high %v2987, %v2987
      %v2996 = vcombine.high %v2994, %v2994
      %v2998 = vunpack.c.l.s4 1983009808
      %v2999 = vunpack.c.0.s8 %v2998
      %v3000 = vlaneseq
      %v3001 = vshrl.u32 %v3000, 7
      %v3002 = vsub.s32 %v2999, %v3001
      %v3003 = vrot.slane %v2597, %v3002
      %v3004 = vcombine.high %v3003, %v3003
      %vm3095 = vcmp.gt.f32.partialorder %v2630, 0.0
      %vm3096 = vcmp.gt.f32.partialorder %v2638, 0.0
      %vm3097 = vcmp.gt.f32.partialorder %v2637, 0.0
      %vm3098 = vcmp.gt.f32.partialorder %v2639, 0.0
      %vm3099 = vcmp.gt.f32.partialorder %v2647, 0.0
      %vm3100 = vcmp.gt.f32.partialorder %v2655, 0.0
      %vm3101 = vcmp.gt.f32.partialorder %v2654, 0.0
      %vm3102 = vcmp.gt.f32.partialorder %v2656, 0.0
      %vm3103 = vcmp.gt.f32.partialorder %v2664, 0.0
      %vm3104 = vcmp.gt.f32.partialorder %v2672, 0.0
      %vm3105 = vcmp.gt.f32.partialorder %v2671, 0.0
      %vm3106 = vcmp.gt.f32.partialorder %v2673, 0.0
      %vm3107 = vcmp.gt.f32.partialorder %v2681, 0.0
      %vm3108 = vcmp.gt.f32.partialorder %v2689, 0.0
      %vm3109 = vcmp.gt.f32.partialorder %v2688, 0.0
      %vm3110 = vcmp.gt.f32.partialorder %v2690, 0.0
      %vm3111 = vcmp.gt.f32.partialorder %v2698, 0.0
      %vm3112 = vcmp.gt.f32.partialorder %v2706, 0.0
      %vm3113 = vcmp.gt.f32.partialorder %v2705, 0.0
      %vm3114 = vcmp.gt.f32.partialorder %v2707, 0.0
      %vm3115 = vcmp.gt.f32.partialorder %v2715, 0.0
      %vm3116 = vcmp.gt.f32.partialorder %v2723, 0.0
      %vm3117 = vcmp.gt.f32.partialorder %v2722, 0.0
      %vm3118 = vcmp.gt.f32.partialorder %v2724, 0.0
      %vm3119 = vcmp.gt.f32.partialorder %v2732, 0.0
      %vm3120 = vcmp.gt.f32.partialorder %v2740, 0.0
      %vm3121 = vcmp.gt.f32.partialorder %v2739, 0.0
      %vm3122 = vcmp.gt.f32.partialorder %v2741, 0.0
      %vm3123 = vcmp.gt.f32.partialorder %v2749, 0.0
      %vm3124 = vcmp.gt.f32.partialorder %v2757, 0.0
      %vm3125 = vcmp.gt.f32.partialorder %v2756, 0.0
      %vm3126 = vcmp.gt.f32.partialorder %v2758, 0.0
      %vm3127 = vcmp.gt.f32.partialorder %v2766, 0.0
      %vm3128 = vcmp.gt.f32.partialorder %v2774, 0.0
      %vm3129 = vcmp.gt.f32.partialorder %v2773, 0.0
      %vm3130 = vcmp.gt.f32.partialorder %v2775, 0.0
      %vm3131 = vcmp.gt.f32.partialorder %v2783, 0.0
      %vm3132 = vcmp.gt.f32.partialorder %v2791, 0.0
      %vm3133 = vcmp.gt.f32.partialorder %v2790, 0.0
      %vm3134 = vcmp.gt.f32.partialorder %v2792, 0.0
      %vm3135 = vcmp.gt.f32.partialorder %v2800, 0.0
      %vm3136 = vcmp.gt.f32.partialorder %v2808, 0.0
      %vm3137 = vcmp.gt.f32.partialorder %v2807, 0.0
      %vm3138 = vcmp.gt.f32.partialorder %v2809, 0.0
      %vm3139 = vcmp.gt.f32.partialorder %v2817, 0.0
      %vm3140 = vcmp.gt.f32.partialorder %v2825, 0.0
      %vm3141 = vcmp.gt.f32.partialorder %v2824, 0.0
      %vm3142 = vcmp.gt.f32.partialorder %v2826, 0.0
      %vm3143 = vcmp.gt.f32.partialorder %v2834, 0.0
      %vm3144 = vcmp.gt.f32.partialorder %v2842, 0.0
      %vm3145 = vcmp.gt.f32.partialorder %v2841, 0.0
      %vm3146 = vcmp.gt.f32.partialorder %v2843, 0.0
      %vm3147 = vcmp.gt.f32.partialorder %v2851, 0.0
      %vm3148 = vcmp.gt.f32.partialorder %v2859, 0.0
      %vm3149 = vcmp.gt.f32.partialorder %v2858, 0.0
      %vm3150 = vcmp.gt.f32.partialorder %v2860, 0.0
      %vm3151 = vcmp.gt.f32.partialorder %v2868, 0.0
      %vm3152 = vcmp.gt.f32.partialorder %v2876, 0.0
      %vm3153 = vcmp.gt.f32.partialorder %v2875, 0.0
      %vm3154 = vcmp.gt.f32.partialorder %v2877, 0.0
      %vm3155 = vcmp.gt.f32.partialorder %v2885, 0.0
      %vm3156 = vcmp.gt.f32.partialorder %v2893, 0.0
      %vm3157 = vcmp.gt.f32.partialorder %v2892, 0.0
      %vm3158 = vcmp.gt.f32.partialorder %v2894, 0.0
      %vm3159 = vcmp.gt.f32.partialorder %v2902, 0.0
      %vm3160 = vcmp.gt.f32.partialorder %v2910, 0.0
      %vm3161 = vcmp.gt.f32.partialorder %v2909, 0.0
      %vm3162 = vcmp.gt.f32.partialorder %v2911, 0.0
      %vm3163 = vcmp.gt.f32.partialorder %v2919, 0.0
      %vm3164 = vcmp.gt.f32.partialorder %v2927, 0.0
      %vm3165 = vcmp.gt.f32.partialorder %v2926, 0.0
      %vm3166 = vcmp.gt.f32.partialorder %v2928, 0.0
      %vm3167 = vcmp.gt.f32.partialorder %v2936, 0.0
      %vm3168 = vcmp.gt.f32.partialorder %v2944, 0.0
      %vm3169 = vcmp.gt.f32.partialorder %v2943, 0.0
      %vm3170 = vcmp.gt.f32.partialorder %v2945, 0.0
      %vm3171 = vcmp.gt.f32.partialorder %v2953, 0.0
      %vm3172 = vcmp.gt.f32.partialorder %v2961, 0.0
      %vm3173 = vcmp.gt.f32.partialorder %v2960, 0.0
      %vm3174 = vcmp.gt.f32.partialorder %v2962, 0.0
      %vm3175 = vcmp.gt.f32.partialorder %v2970, 0.0
      %vm3176 = vcmp.gt.f32.partialorder %v2978, 0.0
      %vm3177 = vcmp.gt.f32.partialorder %v2977, 0.0
      %vm3178 = vcmp.gt.f32.partialorder %v2979, 0.0
      %vm3179 = vcmp.gt.f32.partialorder %v2987, 0.0
      %vm3180 = vcmp.gt.f32.partialorder %v2995, 0.0
      %vm3181 = vcmp.gt.f32.partialorder %v2994, 0.0
      %vm3182 = vcmp.gt.f32.partialorder %v2996, 0.0
      %vm3183 = vcmp.gt.f32.partialorder %v3003, 0.0
      %vm3184 = vcmp.gt.f32.partialorder %v3004, 0.0
      %v3185 = vmul.f32 %v2630, 0.2
      %v3186 = vmul.f32 %v2638, 0.2
      %v3187 = vmul.f32 %v2637, 0.2
      %v3188 = vmul.f32 %v2639, 0.2
      %v3189 = vmul.f32 %v2647, 0.2
      %v3190 = vmul.f32 %v2655, 0.2
      %v3191 = vmul.f32 %v2654, 0.2
      %v3192 = vmul.f32 %v2656, 0.2
      %v3193 = vmul.f32 %v2664, 0.2
      %v3194 = vmul.f32 %v2672, 0.2
      %v3195 = vmul.f32 %v2671, 0.2
      %v3196 = vmul.f32 %v2673, 0.2
      %v3197 = vmul.f32 %v2681, 0.2
      %v3198 = vmul.f32 %v2689, 0.2
      %v3199 = vmul.f32 %v2688, 0.2
      %v3200 = vmul.f32 %v2690, 0.2
      %v3201 = vmul.f32 %v2698, 0.2
      %v3202 = vmul.f32 %v2706, 0.2
      %v3203 = vmul.f32 %v2705, 0.2
      %v3204 = vmul.f32 %v2707, 0.2
      %v3205 = vmul.f32 %v2715, 0.2
      %v3206 = vmul.f32 %v2723, 0.2
      %v3207 = vmul.f32 %v2722, 0.2
      %v3208 = vmul.f32 %v2724, 0.2
      %v3209 = vmul.f32 %v2732, 0.2
      %v3210 = vmul.f32 %v2740, 0.2
      %v3211 = vmul.f32 %v2739, 0.2
      %v3212 = vmul.f32 %v2741, 0.2
      %v3213 = vmul.f32 %v2749, 0.2
      %v3214 = vmul.f32 %v2757, 0.2
      %v3215 = vmul.f32 %v2756, 0.2
      %v3216 = vmul.f32 %v2758, 0.2
      %v3217 = vmul.f32 %v2766, 0.2
      %v3218 = vmul.f32 %v2774, 0.2
      %v3219 = vmul.f32 %v2773, 0.2
      %v3220 = vmul.f32 %v2775, 0.2
      %v3221 = vmul.f32 %v2783, 0.2
      %v3222 = vmul.f32 %v2791, 0.2
      %v3223 = vmul.f32 %v2790, 0.2
      %v3224 = vmul.f32 %v2792, 0.2
      %v3225 = vmul.f32 %v2800, 0.2
      %v3226 = vmul.f32 %v2808, 0.2
      %v3227 = vmul.f32 %v2807, 0.2
      %v3228 = vmul.f32 %v2809, 0.2
      %v3229 = vmul.f32 %v2817, 0.2
      %v3230 = vmul.f32 %v2825, 0.2
      %v3231 = vmul.f32 %v2824, 0.2
      %v3232 = vmul.f32 %v2826, 0.2
      %v3233 = vmul.f32 %v2834, 0.2
      %v3234 = vmul.f32 %v2842, 0.2
      %v3235 = vmul.f32 %v2841, 0.2
      %v3236 = vmul.f32 %v2843, 0.2
      %v3237 = vmul.f32 %v2851, 0.2
      %v3238 = vmul.f32 %v2859, 0.2
      %v3239 = vmul.f32 %v2858, 0.2
      %v3240 = vmul.f32 %v2860, 0.2
      %v3241 = vmul.f32 %v2868, 0.2
      %v3242 = vmul.f32 %v2876, 0.2
      %v3243 = vmul.f32 %v2875, 0.2
      %v3244 = vmul.f32 %v2877, 0.2
      %v3245 = vmul.f32 %v2885, 0.2
      %v3246 = vmul.f32 %v2893, 0.2
      %v3247 = vmul.f32 %v2892, 0.2
      %v3248 = vmul.f32 %v2894, 0.2
      %v3249 = vmul.f32 %v2902, 0.2
      %v3250 = vmul.f32 %v2910, 0.2
      %v3251 = vmul.f32 %v2909, 0.2
      %v3252 = vmul.f32 %v2911, 0.2
      %v3253 = vmul.f32 %v2919, 0.2
      %v3254 = vmul.f32 %v2927, 0.2
      %v3255 = vmul.f32 %v2926, 0.2
      %v3256 = vmul.f32 %v2928, 0.2
      %v3257 = vmul.f32 %v2936, 0.2
      %v3258 = vmul.f32 %v2944, 0.2
      %v3259 = vmul.f32 %v2943, 0.2
      %v3260 = vmul.f32 %v2945, 0.2
      %v3261 = vmul.f32 %v2953, 0.2
      %v3262 = vmul.f32 %v2961, 0.2
      %v3263 = vmul.f32 %v2960, 0.2
      %v3264 = vmul.f32 %v2962, 0.2
      %v3265 = vmul.f32 %v2970, 0.2
      %v3266 = vmul.f32 %v2978, 0.2
      %v3267 = vmul.f32 %v2977, 0.2
      %v3268 = vmul.f32 %v2979, 0.2
      %v3269 = vmul.f32 %v2987, 0.2
      %v3270 = vmul.f32 %v2995, 0.2
      %v3271 = vmul.f32 %v2994, 0.2
      %v3272 = vmul.f32 %v2996, 0.2
      %v3273 = vmul.f32 %v3003, 0.2
      %v3274 = vmul.f32 %v3004, 0.2
      %v3275 = vsel %vm3095, %v2630, %v3185
      %v3276 = vsel %vm3096, %v2638, %v3186
      %v3277 = vsel %vm3097, %v2637, %v3187
      %v3278 = vsel %vm3098, %v2639, %v3188
      %v3279 = vsel %vm3099, %v2647, %v3189
      %v3280 = vsel %vm3100, %v2655, %v3190
      %v3281 = vsel %vm3101, %v2654, %v3191
      %v3282 = vsel %vm3102, %v2656, %v3192
      %v3283 = vsel %vm3103, %v2664, %v3193
      %v3284 = vsel %vm3104, %v2672, %v3194
      %v3285 = vsel %vm3105, %v2671, %v3195
      %v3286 = vsel %vm3106, %v2673, %v3196
      %v3287 = vsel %vm3107, %v2681, %v3197
      %v3288 = vsel %vm3108, %v2689, %v3198
      %v3289 = vsel %vm3109, %v2688, %v3199
      %v3290 = vsel %vm3110, %v2690, %v3200
      %v3291 = vsel %vm3111, %v2698, %v3201
      %v3292 = vsel %vm3112, %v2706, %v3202
      %v3293 = vsel %vm3113, %v2705, %v3203
      %v3294 = vsel %vm3114, %v2707, %v3204
      %v3295 = vsel %vm3115, %v2715, %v3205
      %v3296 = vsel %vm3116, %v2723, %v3206
      %v3297 = vsel %vm3117, %v2722, %v3207
      %v3298 = vsel %vm3118, %v2724, %v3208
      %v3299 = vsel %vm3119, %v2732, %v3209
      %v3300 = vsel %vm3120, %v2740, %v3210
      %v3301 = vsel %vm3121, %v2739, %v3211
      %v3302 = vsel %vm3122, %v2741, %v3212
      %v3303 = vsel %vm3123, %v2749, %v3213
      %v3304 = vsel %vm3124, %v2757, %v3214
      %v3305 = vsel %vm3125, %v2756, %v3215
      %v3306 = vsel %vm3126, %v2758, %v3216
      %v3307 = vsel %vm3127, %v2766, %v3217
      %v3308 = vsel %vm3128, %v2774, %v3218
      %v3309 = vsel %vm3129, %v2773, %v3219
      %v3310 = vsel %vm3130, %v2775, %v3220
      %v3311 = vsel %vm3131, %v2783, %v3221
      %v3312 = vsel %vm3132, %v2791, %v3222
      %v3313 = vsel %vm3133, %v2790, %v3223
      %v3314 = vsel %vm3134, %v2792, %v3224
      %v3315 = vsel %vm3135, %v2800, %v3225
      %v3316 = vsel %vm3136, %v2808, %v3226
      %v3317 = vsel %vm3137, %v2807, %v3227
      %v3318 = vsel %vm3138, %v2809, %v3228
      %v3319 = vsel %vm3139, %v2817, %v3229
      %v3320 = vsel %vm3140, %v2825, %v3230
      %v3321 = vsel %vm3141, %v2824, %v3231
      %v3322 = vsel %vm3142, %v2826, %v3232
      %v3323 = vsel %vm3143, %v2834, %v3233
      %v3324 = vsel %vm3144, %v2842, %v3234
      %v3325 = vsel %vm3145, %v2841, %v3235
      %v3326 = vsel %vm3146, %v2843, %v3236
      %v3327 = vsel %vm3147, %v2851, %v3237
      %v3328 = vsel %vm3148, %v2859, %v3238
      %v3329 = vsel %vm3149, %v2858, %v3239
      %v3330 = vsel %vm3150, %v2860, %v3240
      %v3331 = vsel %vm3151, %v2868, %v3241
      %v3332 = vsel %vm3152, %v2876, %v3242
      %v3333 = vsel %vm3153, %v2875, %v3243
      %v3334 = vsel %vm3154, %v2877, %v3244
      %v3335 = vsel %vm3155, %v2885, %v3245
      %v3336 = vsel %vm3156, %v2893, %v3246
      %v3337 = vsel %vm3157, %v2892, %v3247
      %v3338 = vsel %vm3158, %v2894, %v3248
      %v3339 = vsel %vm3159, %v2902, %v3249
      %v3340 = vsel %vm3160, %v2910, %v3250
      %v3341 = vsel %vm3161, %v2909, %v3251
      %v3342 = vsel %vm3162, %v2911, %v3252
      %v3343 = vsel %vm3163, %v2919, %v3253
      %v3344 = vsel %vm3164, %v2927, %v3254
      %v3345 = vsel %vm3165, %v2926, %v3255
      %v3346 = vsel %vm3166, %v2928, %v3256
      %v3347 = vsel %vm3167, %v2936, %v3257
      %v3348 = vsel %vm3168, %v2944, %v3258
      %v3349 = vsel %vm3169, %v2943, %v3259
      %v3350 = vsel %vm3170, %v2945, %v3260
      %v3351 = vsel %vm3171, %v2953, %v3261
      %v3352 = vsel %vm3172, %v2961, %v3262
      %v3353 = vsel %vm3173, %v2960, %v3263
      %v3354 = vsel %vm3174, %v2962, %v3264
      %v3355 = vsel %vm3175, %v2970, %v3265
      %v3356 = vsel %vm3176, %v2978, %v3266
      %v3357 = vsel %vm3177, %v2977, %v3267
      %v3358 = vsel %vm3178, %v2979, %v3268
      %v3359 = vsel %vm3179, %v2987, %v3269
      %v3360 = vsel %vm3180, %v2995, %v3270
      %v3361 = vsel %vm3181, %v2994, %v3271
      %v3362 = vsel %vm3182, %v2996, %v3272
      %v3363 = vsel %vm3183, %v3003, %v3273
      %v3364 = vsel %vm3184, %v3004, %v3274
      %v3365 = vstv %s299
      %v3366 = vadd.s32 %v3365, 1
      %v3367 = vadd.s32 %v3365, 2
      %v3368 = vadd.s32 %v3365, 3
      %v3369 = vadd.s32 %v3365, 4
      %v3370 = vadd.s32 %v3365, 5
      %v3371 = vadd.s32 %v3365, 6
      %v3372 = vadd.s32 %v3365, 7
      %v3373 = vadd.s32 %v3365, 8
      %v3374 = vadd.s32 %v3365, 9
      %v3375 = vlaneseq
      %v3376 = vshrl.u32 %v3375, 7
      %v3377 = vadd.s32 %v3376, 8
      %v3378 = vadd.s32 %v3376, 16
      %vm3379 = vcmp.ge.s32.totalorder %v3365, 1
      %vm3380 = vcmp.ge.s32.totalorder %v3366, 1
      %vm3381 = vcmp.ge.s32.totalorder %v3367, 1
      %vm3382 = vcmp.ge.s32.totalorder %v3368, 1
      %vm3383 = vcmp.ge.s32.totalorder %v3369, 1
      %vm3384 = vcmp.ge.s32.totalorder %v3370, 1
      %vm3385 = vcmp.ge.s32.totalorder %v3371, 1
      %vm3386 = vcmp.ge.s32.totalorder %v3372, 1
      %vm3387 = vcmp.ge.s32.totalorder %v3373, 1
      %vm3388 = vcmp.ge.s32.totalorder %v3374, 1
      %vm3389 = vcmp.le.s32.totalorder %v3365, 16
      %vm3390 = vcmp.le.s32.totalorder %v3366, 16
      %vm3391 = vcmp.le.s32.totalorder %v3367, 16
      %vm3392 = vcmp.le.s32.totalorder %v3368, 16
      %vm3393 = vcmp.le.s32.totalorder %v3369, 16
      %vm3394 = vcmp.le.s32.totalorder %v3370, 16
      %vm3395 = vcmp.le.s32.totalorder %v3371, 16
      %vm3396 = vcmp.le.s32.totalorder %v3372, 16
      %vm3397 = vcmp.le.s32.totalorder %v3373, 16
      %vm3398 = vcmp.le.s32.totalorder %v3374, 16
      %vm3399 = vmand %vm3379, %vm3389
      %vm3400 = vmand %vm3380, %vm3390
      %vm3401 = vmand %vm3381, %vm3391
      %vm3402 = vmand %vm3382, %vm3392
      %vm3403 = vmand %vm3383, %vm3393
      %vm3404 = vmand %vm3384, %vm3394
      %vm3405 = vmand %vm3385, %vm3395
      %vm3406 = vmand %vm3386, %vm3396
      %vm3407 = vmand %vm3387, %vm3397
      %vm3408 = vmand %vm3388, %vm3398
      %vm3409 = vcmp.ge.s32.totalorder %v3376, 1
      %vm3410 = vcmp.ge.s32.totalorder %v3377, 1
      %vm3411 = vcmp.ge.s32.totalorder %v3378, 1
      %vm3412 = vmand %vm3399, %vm3409
      %vm3413 = vmand %vm3399, %vm3410
      %vm3414 = vmand %vm3399, %vm3411
      %vm3415 = vmand %vm3400, %vm3409
      %vm3416 = vmand %vm3400, %vm3410
      %vm3417 = vmand %vm3400, %vm3411
      %vm3418 = vmand %vm3401, %vm3409
      %vm3419 = vmand %vm3401, %vm3410
      %vm3420 = vmand %vm3401, %vm3411
      %vm3421 = vmand %vm3402, %vm3409
      %vm3422 = vmand %vm3402, %vm3410
      %vm3423 = vmand %vm3402, %vm3411
      %vm3424 = vmand %vm3403, %vm3409
      %vm3425 = vmand %vm3403, %vm3410
      %vm3426 = vmand %vm3403, %vm3411
      %vm3427 = vmand %vm3404, %vm3409
      %vm3428 = vmand %vm3404, %vm3410
      %vm3429 = vmand %vm3404, %vm3411
      %vm3430 = vmand %vm3405, %vm3409
      %vm3431 = vmand %vm3405, %vm3410
      %vm3432 = vmand %vm3405, %vm3411
      %vm3433 = vmand %vm3406, %vm3409
      %vm3434 = vmand %vm3406, %vm3410
      %vm3435 = vmand %vm3406, %vm3411
      %vm3436 = vmand %vm3407, %vm3409
      %vm3437 = vmand %vm3407, %vm3410
      %vm3438 = vmand %vm3407, %vm3411
      %vm3439 = vmand %vm3408, %vm3409
      %vm3440 = vmand %vm3408, %vm3410
      %vm3441 = vmand %vm3408, %vm3411
      %vm3442 = vcmp.le.s32.totalorder %v3376, 16
      %vm3443 = vcmp.le.s32.totalorder %v3377, 16
      %vm3444 = vcmp.le.s32.totalorder %v3378, 16
      %vm3445 = vmand %vm3412, %vm3442
      %vm3446 = vmand %vm3413, %vm3443
      %vm3447 = vmand %vm3414, %vm3444
      %vm3448 = vmand %vm3415, %vm3442
      %vm3449 = vmand %vm3416, %vm3443
      %vm3450 = vmand %vm3417, %vm3444
      %vm3451 = vmand %vm3418, %vm3442
      %vm3452 = vmand %vm3419, %vm3443
      %vm3453 = vmand %vm3420, %vm3444
      %vm3454 = vmand %vm3421, %vm3442
      %vm3455 = vmand %vm3422, %vm3443
      %vm3456 = vmand %vm3423, %vm3444
      %vm3457 = vmand %vm3424, %vm3442
      %vm3458 = vmand %vm3425, %vm3443
      %vm3459 = vmand %vm3426, %vm3444
      %vm3460 = vmand %vm3427, %vm3442
      %vm3461 = vmand %vm3428, %vm3443
      %vm3462 = vmand %vm3429, %vm3444
      %vm3463 = vmand %vm3430, %vm3442
      %vm3464 = vmand %vm3431, %vm3443
      %vm3465 = vmand %vm3432, %vm3444
      %vm3466 = vmand %vm3433, %vm3442
      %vm3467 = vmand %vm3434, %vm3443
      %vm3468 = vmand %vm3435, %vm3444
      %vm3469 = vmand %vm3436, %vm3442
      %vm3470 = vmand %vm3437, %vm3443
      %vm3471 = vmand %vm3438, %vm3444
      %vm3472 = vmand %vm3439, %vm3442
      %vm3473 = vmand %vm3440, %vm3443
      %vm3474 = vmand %vm3441, %vm3444
      %v3475 = vsel %vm3445, 1, 0
      %v3476 = vsel %vm3446, 1, 0
      %v3477 = vsel %vm3447, 1, 0
      %v3478 = vsel %vm3448, 1, 0
      %v3479 = vsel %vm3449, 1, 0
      %v3480 = vsel %vm3450, 1, 0
      %v3481 = vsel %vm3451, 1, 0
      %v3482 = vsel %vm3452, 1, 0
      %v3483 = vsel %vm3453, 1, 0
      %v3484 = vsel %vm3454, 1, 0
      %v3485 = vsel %vm3455, 1, 0
      %v3486 = vsel %vm3456, 1, 0
      %v3487 = vsel %vm3457, 1, 0
      %v3488 = vsel %vm3458, 1, 0
      %v3489 = vsel %vm3459, 1, 0
      %v3490 = vsel %vm3460, 1, 0
      %v3491 = vsel %vm3461, 1, 0
      %v3492 = vsel %vm3462, 1, 0
      %v3493 = vsel %vm3463, 1, 0
      %v3494 = vsel %vm3464, 1, 0
      %v3495 = vsel %vm3465, 1, 0
      %v3496 = vsel %vm3466, 1, 0
      %v3497 = vsel %vm3467, 1, 0
      %v3498 = vsel %vm3468, 1, 0
      %v3499 = vsel %vm3469, 1, 0
      %v3500 = vsel %vm3470, 1, 0
      %v3501 = vsel %vm3471, 1, 0
      %v3502 = vsel %vm3472, 1, 0
      %v3503 = vsel %vm3473, 1, 0
      %v3504 = vsel %vm3474, 1, 0
      %vm3505 = vcmp.eq.s32.totalorder %v3475, 1
      %vm3506 = vcmp.eq.s32.totalorder %v3476, 1
      %vm3507 = vcmp.eq.s32.totalorder %v3477, 1
      %vm3508 = vcmp.eq.s32.totalorder %v3478, 1
      %vm3509 = vcmp.eq.s32.totalorder %v3479, 1
      %vm3510 = vcmp.eq.s32.totalorder %v3480, 1
      %vm3511 = vcmp.eq.s32.totalorder %v3481, 1
      %vm3512 = vcmp.eq.s32.totalorder %v3482, 1
      %vm3513 = vcmp.eq.s32.totalorder %v3483, 1
      %vm3514 = vcmp.eq.s32.totalorder %v3484, 1
      %vm3515 = vcmp.eq.s32.totalorder %v3485, 1
      %vm3516 = vcmp.eq.s32.totalorder %v3486, 1
      %vm3517 = vcmp.eq.s32.totalorder %v3487, 1
      %vm3518 = vcmp.eq.s32.totalorder %v3488, 1
      %vm3519 = vcmp.eq.s32.totalorder %v3489, 1
      %vm3520 = vcmp.eq.s32.totalorder %v3490, 1
      %vm3521 = vcmp.eq.s32.totalorder %v3491, 1
      %vm3522 = vcmp.eq.s32.totalorder %v3492, 1
      %vm3523 = vcmp.eq.s32.totalorder %v3493, 1
      %vm3524 = vcmp.eq.s32.totalorder %v3494, 1
      %vm3525 = vcmp.eq.s32.totalorder %v3495, 1
      %vm3526 = vcmp.eq.s32.totalorder %v3496, 1
      %vm3527 = vcmp.eq.s32.totalorder %v3497, 1
      %vm3528 = vcmp.eq.s32.totalorder %v3498, 1
      %vm3529 = vcmp.eq.s32.totalorder %v3499, 1
      %vm3530 = vcmp.eq.s32.totalorder %v3500, 1
      %vm3531 = vcmp.eq.s32.totalorder %v3501, 1
      %vm3532 = vcmp.eq.s32.totalorder %v3502, 1
      %vm3533 = vcmp.eq.s32.totalorder %v3503, 1
      %vm3534 = vcmp.eq.s32.totalorder %v3504, 1
      %v3625 = vcombine.low %v3275, %v3276
      %v3626 = vcombine.low %v3277, %v3278
      %v3628 = vunpack.c.l.s4 1983009808
      %v3629 = vunpack.c.0.s8 %v3628
      %v3630 = vlaneseq
      %v3631 = vshrl.u32 %v3630, 7
      %v3632 = vsub.s32 %v3629, %v3631
      %v3633 = vrot.slane %v3625, %v3632
      %v3635 = vunpack.c.l.s4 1983009808
      %v3636 = vunpack.c.0.s8 %v3635
      %v3637 = vlaneseq
      %v3638 = vshrl.u32 %v3637, 7
      %v3639 = vsub.s32 %v3636, %v3638
      %v3640 = vrot.slane %v3626, %v3639
      %v3641 = vcombine.low %v3633, %v3640
      %v3642 = vcombine.low %v3279, %v3280
      %v3643 = vcombine.low %v3281, %v3282
      %v3645 = vunpack.c.l.s4 1983009808
      %v3646 = vunpack.c.0.s8 %v3645
      %v3647 = vlaneseq
      %v3648 = vshrl.u32 %v3647, 7
      %v3649 = vsub.s32 %v3646, %v3648
      %v3650 = vrot.slane %v3642, %v3649
      %v3652 = vunpack.c.l.s4 1983009808
      %v3653 = vunpack.c.0.s8 %v3652
      %v3654 = vlaneseq
      %v3655 = vshrl.u32 %v3654, 7
      %v3656 = vsub.s32 %v3653, %v3655
      %v3657 = vrot.slane %v3643, %v3656
      %v3658 = vcombine.low %v3650, %v3657
      %v3660 = vunpack.c.l.s4 1983009808
      %v3661 = vunpack.c.0.s8 %v3660
      %v3662 = vlaneseq
      %v3663 = vshrl.u32 %v3662, 7
      %v3664 = vsub.s32 %v3661, %v3663
      %v3665 = vrot.slane %v3283, %v3664
      %v3666 = vcombine.low %v3284, %v3285
      %v3667 = vcombine.low %v3286, %v3287
      %v3669 = vunpack.c.l.s4 1983009808
      %v3670 = vunpack.c.0.s8 %v3669
      %v3671 = vlaneseq
      %v3672 = vshrl.u32 %v3671, 7
      %v3673 = vsub.s32 %v3670, %v3672
      %v3674 = vrot.slane %v3666, %v3673
      %v3676 = vunpack.c.l.s4 1983009808
      %v3677 = vunpack.c.0.s8 %v3676
      %v3678 = vlaneseq
      %v3679 = vshrl.u32 %v3678, 7
      %v3680 = vsub.s32 %v3677, %v3679
      %v3681 = vrot.slane %v3667, %v3680
      %v3682 = vcombine.low %v3674, %v3681
      %v3683 = vcombine.low %v3288, %v3289
      %v3684 = vcombine.low %v3290, %v3291
      %v3686 = vunpack.c.l.s4 1983009808
      %v3687 = vunpack.c.0.s8 %v3686
      %v3688 = vlaneseq
      %v3689 = vshrl.u32 %v3688, 7
      %v3690 = vsub.s32 %v3687, %v3689
      %v3691 = vrot.slane %v3683, %v3690
      %v3693 = vunpack.c.l.s4 1983009808
      %v3694 = vunpack.c.0.s8 %v3693
      %v3695 = vlaneseq
      %v3696 = vshrl.u32 %v3695, 7
      %v3697 = vsub.s32 %v3694, %v3696
      %v3698 = vrot.slane %v3684, %v3697
      %v3699 = vcombine.low %v3691, %v3698
      %v3701 = vunpack.c.l.s4 1983009808
      %v3702 = vunpack.c.0.s8 %v3701
      %v3703 = vlaneseq
      %v3704 = vshrl.u32 %v3703, 7
      %v3705 = vsub.s32 %v3702, %v3704
      %v3706 = vrot.slane %v3292, %v3705
      %v3707 = vcombine.low %v3293, %v3294
      %v3708 = vcombine.low %v3295, %v3296
      %v3710 = vunpack.c.l.s4 1983009808
      %v3711 = vunpack.c.0.s8 %v3710
      %v3712 = vlaneseq
      %v3713 = vshrl.u32 %v3712, 7
      %v3714 = vsub.s32 %v3711, %v3713
      %v3715 = vrot.slane %v3707, %v3714
      %v3717 = vunpack.c.l.s4 1983009808
      %v3718 = vunpack.c.0.s8 %v3717
      %v3719 = vlaneseq
      %v3720 = vshrl.u32 %v3719, 7
      %v3721 = vsub.s32 %v3718, %v3720
      %v3722 = vrot.slane %v3708, %v3721
      %v3723 = vcombine.low %v3715, %v3722
      %v3724 = vcombine.low %v3297, %v3298
      %v3725 = vcombine.low %v3299, %v3300
      %v3727 = vunpack.c.l.s4 1983009808
      %v3728 = vunpack.c.0.s8 %v3727
      %v3729 = vlaneseq
      %v3730 = vshrl.u32 %v3729, 7
      %v3731 = vsub.s32 %v3728, %v3730
      %v3732 = vrot.slane %v3724, %v3731
      %v3734 = vunpack.c.l.s4 1983009808
      %v3735 = vunpack.c.0.s8 %v3734
      %v3736 = vlaneseq
      %v3737 = vshrl.u32 %v3736, 7
      %v3738 = vsub.s32 %v3735, %v3737
      %v3739 = vrot.slane %v3725, %v3738
      %v3740 = vcombine.low %v3732, %v3739
      %v3742 = vunpack.c.l.s4 1983009808
      %v3743 = vunpack.c.0.s8 %v3742
      %v3744 = vlaneseq
      %v3745 = vshrl.u32 %v3744, 7
      %v3746 = vsub.s32 %v3743, %v3745
      %v3747 = vrot.slane %v3301, %v3746
      %v3748 = vcombine.low %v3302, %v3303
      %v3749 = vcombine.low %v3304, %v3305
      %v3751 = vunpack.c.l.s4 1983009808
      %v3752 = vunpack.c.0.s8 %v3751
      %v3753 = vlaneseq
      %v3754 = vshrl.u32 %v3753, 7
      %v3755 = vsub.s32 %v3752, %v3754
      %v3756 = vrot.slane %v3748, %v3755
      %v3758 = vunpack.c.l.s4 1983009808
      %v3759 = vunpack.c.0.s8 %v3758
      %v3760 = vlaneseq
      %v3761 = vshrl.u32 %v3760, 7
      %v3762 = vsub.s32 %v3759, %v3761
      %v3763 = vrot.slane %v3749, %v3762
      %v3764 = vcombine.low %v3756, %v3763
      %v3765 = vcombine.low %v3306, %v3307
      %v3766 = vcombine.low %v3308, %v3309
      %v3768 = vunpack.c.l.s4 1983009808
      %v3769 = vunpack.c.0.s8 %v3768
      %v3770 = vlaneseq
      %v3771 = vshrl.u32 %v3770, 7
      %v3772 = vsub.s32 %v3769, %v3771
      %v3773 = vrot.slane %v3765, %v3772
      %v3775 = vunpack.c.l.s4 1983009808
      %v3776 = vunpack.c.0.s8 %v3775
      %v3777 = vlaneseq
      %v3778 = vshrl.u32 %v3777, 7
      %v3779 = vsub.s32 %v3776, %v3778
      %v3780 = vrot.slane %v3766, %v3779
      %v3781 = vcombine.low %v3773, %v3780
      %v3783 = vunpack.c.l.s4 1983009808
      %v3784 = vunpack.c.0.s8 %v3783
      %v3785 = vlaneseq
      %v3786 = vshrl.u32 %v3785, 7
      %v3787 = vsub.s32 %v3784, %v3786
      %v3788 = vrot.slane %v3310, %v3787
      %v3789 = vcombine.low %v3311, %v3312
      %v3790 = vcombine.low %v3313, %v3314
      %v3792 = vunpack.c.l.s4 1983009808
      %v3793 = vunpack.c.0.s8 %v3792
      %v3794 = vlaneseq
      %v3795 = vshrl.u32 %v3794, 7
      %v3796 = vsub.s32 %v3793, %v3795
      %v3797 = vrot.slane %v3789, %v3796
      %v3799 = vunpack.c.l.s4 1983009808
      %v3800 = vunpack.c.0.s8 %v3799
      %v3801 = vlaneseq
      %v3802 = vshrl.u32 %v3801, 7
      %v3803 = vsub.s32 %v3800, %v3802
      %v3804 = vrot.slane %v3790, %v3803
      %v3805 = vcombine.low %v3797, %v3804
      %v3806 = vcombine.low %v3315, %v3316
      %v3807 = vcombine.low %v3317, %v3318
      %v3809 = vunpack.c.l.s4 1983009808
      %v3810 = vunpack.c.0.s8 %v3809
      %v3811 = vlaneseq
      %v3812 = vshrl.u32 %v3811, 7
      %v3813 = vsub.s32 %v3810, %v3812
      %v3814 = vrot.slane %v3806, %v3813
      %v3816 = vunpack.c.l.s4 1983009808
      %v3817 = vunpack.c.0.s8 %v3816
      %v3818 = vlaneseq
      %v3819 = vshrl.u32 %v3818, 7
      %v3820 = vsub.s32 %v3817, %v3819
      %v3821 = vrot.slane %v3807, %v3820
      %v3822 = vcombine.low %v3814, %v3821
      %v3824 = vunpack.c.l.s4 1983009808
      %v3825 = vunpack.c.0.s8 %v3824
      %v3826 = vlaneseq
      %v3827 = vshrl.u32 %v3826, 7
      %v3828 = vsub.s32 %v3825, %v3827
      %v3829 = vrot.slane %v3319, %v3828
      %v3830 = vcombine.low %v3320, %v3321
      %v3831 = vcombine.low %v3322, %v3323
      %v3833 = vunpack.c.l.s4 1983009808
      %v3834 = vunpack.c.0.s8 %v3833
      %v3835 = vlaneseq
      %v3836 = vshrl.u32 %v3835, 7
      %v3837 = vsub.s32 %v3834, %v3836
      %v3838 = vrot.slane %v3830, %v3837
      %v3840 = vunpack.c.l.s4 1983009808
      %v3841 = vunpack.c.0.s8 %v3840
      %v3842 = vlaneseq
      %v3843 = vshrl.u32 %v3842, 7
      %v3844 = vsub.s32 %v3841, %v3843
      %v3845 = vrot.slane %v3831, %v3844
      %v3846 = vcombine.low %v3838, %v3845
      %v3847 = vcombine.low %v3324, %v3325
      %v3848 = vcombine.low %v3326, %v3327
      %v3850 = vunpack.c.l.s4 1983009808
      %v3851 = vunpack.c.0.s8 %v3850
      %v3852 = vlaneseq
      %v3853 = vshrl.u32 %v3852, 7
      %v3854 = vsub.s32 %v3851, %v3853
      %v3855 = vrot.slane %v3847, %v3854
      %v3857 = vunpack.c.l.s4 1983009808
      %v3858 = vunpack.c.0.s8 %v3857
      %v3859 = vlaneseq
      %v3860 = vshrl.u32 %v3859, 7
      %v3861 = vsub.s32 %v3858, %v3860
      %v3862 = vrot.slane %v3848, %v3861
      %v3863 = vcombine.low %v3855, %v3862
      %v3865 = vunpack.c.l.s4 1983009808
      %v3866 = vunpack.c.0.s8 %v3865
      %v3867 = vlaneseq
      %v3868 = vshrl.u32 %v3867, 7
      %v3869 = vsub.s32 %v3866, %v3868
      %v3870 = vrot.slane %v3328, %v3869
      %v3871 = vcombine.low %v3329, %v3330
      %v3872 = vcombine.low %v3331, %v3332
      %v3874 = vunpack.c.l.s4 1983009808
      %v3875 = vunpack.c.0.s8 %v3874
      %v3876 = vlaneseq
      %v3877 = vshrl.u32 %v3876, 7
      %v3878 = vsub.s32 %v3875, %v3877
      %v3879 = vrot.slane %v3871, %v3878
      %v3881 = vunpack.c.l.s4 1983009808
      %v3882 = vunpack.c.0.s8 %v3881
      %v3883 = vlaneseq
      %v3884 = vshrl.u32 %v3883, 7
      %v3885 = vsub.s32 %v3882, %v3884
      %v3886 = vrot.slane %v3872, %v3885
      %v3887 = vcombine.low %v3879, %v3886
      %v3888 = vcombine.low %v3333, %v3334
      %v3889 = vcombine.low %v3335, %v3336
      %v3891 = vunpack.c.l.s4 1983009808
      %v3892 = vunpack.c.0.s8 %v3891
      %v3893 = vlaneseq
      %v3894 = vshrl.u32 %v3893, 7
      %v3895 = vsub.s32 %v3892, %v3894
      %v3896 = vrot.slane %v3888, %v3895
      %v3898 = vunpack.c.l.s4 1983009808
      %v3899 = vunpack.c.0.s8 %v3898
      %v3900 = vlaneseq
      %v3901 = vshrl.u32 %v3900, 7
      %v3902 = vsub.s32 %v3899, %v3901
      %v3903 = vrot.slane %v3889, %v3902
      %v3904 = vcombine.low %v3896, %v3903
      %v3906 = vunpack.c.l.s4 1983009808
      %v3907 = vunpack.c.0.s8 %v3906
      %v3908 = vlaneseq
      %v3909 = vshrl.u32 %v3908, 7
      %v3910 = vsub.s32 %v3907, %v3909
      %v3911 = vrot.slane %v3337, %v3910
      %v3912 = vcombine.low %v3338, %v3339
      %v3913 = vcombine.low %v3340, %v3341
      %v3915 = vunpack.c.l.s4 1983009808
      %v3916 = vunpack.c.0.s8 %v3915
      %v3917 = vlaneseq
      %v3918 = vshrl.u32 %v3917, 7
      %v3919 = vsub.s32 %v3916, %v3918
      %v3920 = vrot.slane %v3912, %v3919
      %v3922 = vunpack.c.l.s4 1983009808
      %v3923 = vunpack.c.0.s8 %v3922
      %v3924 = vlaneseq
      %v3925 = vshrl.u32 %v3924, 7
      %v3926 = vsub.s32 %v3923, %v3925
      %v3927 = vrot.slane %v3913, %v3926
      %v3928 = vcombine.low %v3920, %v3927
      %v3929 = vcombine.low %v3342, %v3343
      %v3930 = vcombine.low %v3344, %v3345
      %v3932 = vunpack.c.l.s4 1983009808
      %v3933 = vunpack.c.0.s8 %v3932
      %v3934 = vlaneseq
      %v3935 = vshrl.u32 %v3934, 7
      %v3936 = vsub.s32 %v3933, %v3935
      %v3937 = vrot.slane %v3929, %v3936
      %v3939 = vunpack.c.l.s4 1983009808
      %v3940 = vunpack.c.0.s8 %v3939
      %v3941 = vlaneseq
      %v3942 = vshrl.u32 %v3941, 7
      %v3943 = vsub.s32 %v3940, %v3942
      %v3944 = vrot.slane %v3930, %v3943
      %v3945 = vcombine.low %v3937, %v3944
      %v3947 = vunpack.c.l.s4 1983009808
      %v3948 = vunpack.c.0.s8 %v3947
      %v3949 = vlaneseq
      %v3950 = vshrl.u32 %v3949, 7
      %v3951 = vsub.s32 %v3948, %v3950
      %v3952 = vrot.slane %v3346, %v3951
      %v3953 = vcombine.low %v3347, %v3348
      %v3954 = vcombine.low %v3349, %v3350
      %v3956 = vunpack.c.l.s4 1983009808
      %v3957 = vunpack.c.0.s8 %v3956
      %v3958 = vlaneseq
      %v3959 = vshrl.u32 %v3958, 7
      %v3960 = vsub.s32 %v3957, %v3959
      %v3961 = vrot.slane %v3953, %v3960
      %v3963 = vunpack.c.l.s4 1983009808
      %v3964 = vunpack.c.0.s8 %v3963
      %v3965 = vlaneseq
      %v3966 = vshrl.u32 %v3965, 7
      %v3967 = vsub.s32 %v3964, %v3966
      %v3968 = vrot.slane %v3954, %v3967
      %v3969 = vcombine.low %v3961, %v3968
      %v3970 = vcombine.low %v3351, %v3352
      %v3971 = vcombine.low %v3353, %v3354
      %v3973 = vunpack.c.l.s4 1983009808
      %v3974 = vunpack.c.0.s8 %v3973
      %v3975 = vlaneseq
      %v3976 = vshrl.u32 %v3975, 7
      %v3977 = vsub.s32 %v3974, %v3976
      %v3978 = vrot.slane %v3970, %v3977
      %v3980 = vunpack.c.l.s4 1983009808
      %v3981 = vunpack.c.0.s8 %v3980
      %v3982 = vlaneseq
      %v3983 = vshrl.u32 %v3982, 7
      %v3984 = vsub.s32 %v3981, %v3983
      %v3985 = vrot.slane %v3971, %v3984
      %v3986 = vcombine.low %v3978, %v3985
      %v3988 = vunpack.c.l.s4 1983009808
      %v3989 = vunpack.c.0.s8 %v3988
      %v3990 = vlaneseq
      %v3991 = vshrl.u32 %v3990, 7
      %v3992 = vsub.s32 %v3989, %v3991
      %v3993 = vrot.slane %v3355, %v3992
      %v3994 = vcombine.low %v3356, %v3357
      %v3995 = vcombine.low %v3358, %v3359
      %v3997 = vunpack.c.l.s4 1983009808
      %v3998 = vunpack.c.0.s8 %v3997
      %v3999 = vlaneseq
      %v4000 = vshrl.u32 %v3999, 7
      %v4001 = vsub.s32 %v3998, %v4000
      %v4002 = vrot.slane %v3994, %v4001
      %v4004 = vunpack.c.l.s4 1983009808
      %v4005 = vunpack.c.0.s8 %v4004
      %v4006 = vlaneseq
      %v4007 = vshrl.u32 %v4006, 7
      %v4008 = vsub.s32 %v4005, %v4007
      %v4009 = vrot.slane %v3995, %v4008
      %v4010 = vcombine.low %v4002, %v4009
      %v4011 = vcombine.low %v3360, %v3361
      %v4012 = vcombine.low %v3362, %v3363
      %v4014 = vunpack.c.l.s4 1983009808
      %v4015 = vunpack.c.0.s8 %v4014
      %v4016 = vlaneseq
      %v4017 = vshrl.u32 %v4016, 7
      %v4018 = vsub.s32 %v4015, %v4017
      %v4019 = vrot.slane %v4011, %v4018
      %v4021 = vunpack.c.l.s4 1983009808
      %v4022 = vunpack.c.0.s8 %v4021
      %v4023 = vlaneseq
      %v4024 = vshrl.u32 %v4023, 7
      %v4025 = vsub.s32 %v4022, %v4024
      %v4026 = vrot.slane %v4012, %v4025
      %v4027 = vcombine.low %v4019, %v4026
      %v4029 = vunpack.c.l.s4 1983009808
      %v4030 = vunpack.c.0.s8 %v4029
      %v4031 = vlaneseq
      %v4032 = vshrl.u32 %v4031, 7
      %v4033 = vsub.s32 %v4030, %v4032
      %v4034 = vrot.slane %v3364, %v4033
      %v4065 = vsel %vm3505, %v3641, 0.0
      %v4066 = vsel %vm3506, %v3658, 0.0
      %v4067 = vsel %vm3507, %v3665, 0.0
      %v4068 = vsel %vm3508, %v3682, 0.0
      %v4069 = vsel %vm3509, %v3699, 0.0
      %v4070 = vsel %vm3510, %v3706, 0.0
      %v4071 = vsel %vm3511, %v3723, 0.0
      %v4072 = vsel %vm3512, %v3740, 0.0
      %v4073 = vsel %vm3513, %v3747, 0.0
      %v4074 = vsel %vm3514, %v3764, 0.0
      %v4075 = vsel %vm3515, %v3781, 0.0
      %v4076 = vsel %vm3516, %v3788, 0.0
      %v4077 = vsel %vm3517, %v3805, 0.0
      %v4078 = vsel %vm3518, %v3822, 0.0
      %v4079 = vsel %vm3519, %v3829, 0.0
      %v4080 = vsel %vm3520, %v3846, 0.0
      %v4081 = vsel %vm3521, %v3863, 0.0
      %v4082 = vsel %vm3522, %v3870, 0.0
      %v4083 = vsel %vm3523, %v3887, 0.0
      %v4084 = vsel %vm3524, %v3904, 0.0
      %v4085 = vsel %vm3525, %v3911, 0.0
      %v4086 = vsel %vm3526, %v3928, 0.0
      %v4087 = vsel %vm3527, %v3945, 0.0
      %v4088 = vsel %vm3528, %v3952, 0.0
      %v4089 = vsel %vm3529, %v3969, 0.0
      %v4090 = vsel %vm3530, %v3986, 0.0
      %v4091 = vsel %vm3531, %v3993, 0.0
      %v4092 = vsel %vm3532, %v4010, 0.0
      %v4093 = vsel %vm3533, %v4027, 0.0
      %v4094 = vsel %vm3534, %v4034, 0.0
      %v4119 = vrot.slane %v4065, 1
      %v4120 = vrot.slane %v4066, 1
      %v4121 = vsel %vm368, %v4119, %v4120
      %v4122 = vrot.slane %v4067, 1
      %v4123 = vsel %vm368, %v4120, %v4122
      %v4124 = vrot.slane %v4068, 1
      %v4125 = vrot.slane %v4069, 1
      %v4126 = vsel %vm368, %v4124, %v4125
      %v4127 = vrot.slane %v4070, 1
      %v4128 = vsel %vm368, %v4125, %v4127
      %v4129 = vrot.slane %v4071, 1
      %v4130 = vrot.slane %v4072, 1
      %v4131 = vsel %vm368, %v4129, %v4130
      %v4132 = vrot.slane %v4073, 1
      %v4133 = vsel %vm368, %v4130, %v4132
      %v4134 = vrot.slane %v4074, 1
      %v4135 = vrot.slane %v4075, 1
      %v4136 = vsel %vm368, %v4134, %v4135
      %v4137 = vrot.slane %v4076, 1
      %v4138 = vsel %vm368, %v4135, %v4137
      %v4139 = vrot.slane %v4077, 1
      %v4140 = vrot.slane %v4078, 1
      %v4141 = vsel %vm368, %v4139, %v4140
      %v4142 = vrot.slane %v4079, 1
      %v4143 = vsel %vm368, %v4140, %v4142
      %v4144 = vrot.slane %v4080, 1
      %v4145 = vrot.slane %v4081, 1
      %v4146 = vsel %vm368, %v4144, %v4145
      %v4147 = vrot.slane %v4082, 1
      %v4148 = vsel %vm368, %v4145, %v4147
      %v4149 = vrot.slane %v4083, 1
      %v4150 = vrot.slane %v4084, 1
      %v4151 = vsel %vm368, %v4149, %v4150
      %v4152 = vrot.slane %v4085, 1
      %v4153 = vsel %vm368, %v4150, %v4152
      %v4154 = vrot.slane %v4086, 1
      %v4155 = vrot.slane %v4087, 1
      %v4156 = vsel %vm368, %v4154, %v4155
      %v4157 = vrot.slane %v4088, 1
      %v4158 = vsel %vm368, %v4155, %v4157
      %4159 = vrot.lane.b32.xlu0 %v4121, 48
      %v4160 = vpop.permute.xlu0 %4159
      %4161 = vrot.lane.b32.xlu0 %v4123, 48
      %v4162 = vpop.permute.xlu0 %4161
      %4163 = vrot.lane.b32.xlu0 %v4126, 48
      %v4164 = vpop.permute.xlu0 %4163
      %4165 = vrot.lane.b32.xlu0 %v4128, 48
      %v4166 = vpop.permute.xlu0 %4165
      %4167 = vrot.lane.b32.xlu0 %v4131, 48
      %v4168 = vpop.permute.xlu0 %4167
      %4169 = vrot.lane.b32.xlu0 %v4133, 48
      %v4170 = vpop.permute.xlu0 %4169
      %4171 = vrot.lane.b32.xlu0 %v4136, 48
      %v4172 = vpop.permute.xlu0 %4171
      %4173 = vrot.lane.b32.xlu0 %v4138, 48
      %v4174 = vpop.permute.xlu0 %4173
      %4175 = vrot.lane.b32.xlu0 %v4141, 48
      %v4176 = vpop.permute.xlu0 %4175
      %4177 = vrot.lane.b32.xlu0 %v4143, 48
      %v4178 = vpop.permute.xlu0 %4177
      %4179 = vrot.lane.b32.xlu0 %v4146, 48
      %v4180 = vpop.permute.xlu0 %4179
      %4181 = vrot.lane.b32.xlu0 %v4148, 48
      %v4182 = vpop.permute.xlu0 %4181
      %4183 = vrot.lane.b32.xlu0 %v4151, 48
      %v4184 = vpop.permute.xlu0 %4183
      %4185 = vrot.lane.b32.xlu0 %v4153, 48
      %v4186 = vpop.permute.xlu0 %4185
      %4187 = vrot.lane.b32.xlu0 %v4156, 48
      %v4188 = vpop.permute.xlu0 %4187
      %4189 = vrot.lane.b32.xlu0 %v4158, 48
      %v4190 = vpop.permute.xlu0 %4189
      %v4207 = vrot.slane %v4065, 2
      %v4208 = vrot.slane %v4066, 2
      %v4209 = vsel %vm509, %v4207, %v4208
      %v4210 = vrot.slane %v4067, 2
      %v4211 = vsel %vm509, %v4208, %v4210
      %v4212 = vrot.slane %v4068, 2
      %v4213 = vrot.slane %v4069, 2
      %v4214 = vsel %vm509, %v4212, %v4213
      %v4215 = vrot.slane %v4070, 2
      %v4216 = vsel %vm509, %v4213, %v4215
      %v4217 = vrot.slane %v4071, 2
      %v4218 = vrot.slane %v4072, 2
      %v4219 = vsel %vm509, %v4217, %v4218
      %v4220 = vrot.slane %v4073, 2
      %v4221 = vsel %vm509, %v4218, %v4220
      %v4222 = vrot.slane %v4074, 2
      %v4223 = vrot.slane %v4075, 2
      %v4224 = vsel %vm509, %v4222, %v4223
      %v4225 = vrot.slane %v4076, 2
      %v4226 = vsel %vm509, %v4223, %v4225
      %v4227 = vrot.slane %v4077, 2
      %v4228 = vrot.slane %v4078, 2
      %v4229 = vsel %vm509, %v4227, %v4228
      %v4230 = vrot.slane %v4079, 2
      %v4231 = vsel %vm509, %v4228, %v4230
      %v4232 = vrot.slane %v4080, 2
      %v4233 = vrot.slane %v4081, 2
      %v4234 = vsel %vm509, %v4232, %v4233
      %v4235 = vrot.slane %v4082, 2
      %v4236 = vsel %vm509, %v4233, %v4235
      %v4237 = vrot.slane %v4083, 2
      %v4238 = vrot.slane %v4084, 2
      %v4239 = vsel %vm509, %v4237, %v4238
      %v4240 = vrot.slane %v4085, 2
      %v4241 = vsel %vm509, %v4238, %v4240
      %v4242 = vrot.slane %v4086, 2
      %v4243 = vrot.slane %v4087, 2
      %v4244 = vsel %vm509, %v4242, %v4243
      %v4245 = vrot.slane %v4088, 2
      %v4246 = vsel %vm509, %v4243, %v4245
      %4247 = vrot.lane.b32.xlu0 %v4209, 96
      %v4248 = vpop.permute.xlu0 %4247
      %4249 = vrot.lane.b32.xlu0 %v4211, 96
      %v4250 = vpop.permute.xlu0 %4249
      %4251 = vrot.lane.b32.xlu0 %v4214, 96
      %v4252 = vpop.permute.xlu0 %4251
      %4253 = vrot.lane.b32.xlu0 %v4216, 96
      %v4254 = vpop.permute.xlu0 %4253
      %4255 = vrot.lane.b32.xlu0 %v4219, 96
      %v4256 = vpop.permute.xlu0 %4255
      %4257 = vrot.lane.b32.xlu0 %v4221, 96
      %v4258 = vpop.permute.xlu0 %4257
      %4259 = vrot.lane.b32.xlu0 %v4224, 96
      %v4260 = vpop.permute.xlu0 %4259
      %4261 = vrot.lane.b32.xlu0 %v4226, 96
      %v4262 = vpop.permute.xlu0 %4261
      %4263 = vrot.lane.b32.xlu0 %v4229, 96
      %v4264 = vpop.permute.xlu0 %4263
      %4265 = vrot.lane.b32.xlu0 %v4231, 96
      %v4266 = vpop.permute.xlu0 %4265
      %4267 = vrot.lane.b32.xlu0 %v4234, 96
      %v4268 = vpop.permute.xlu0 %4267
      %4269 = vrot.lane.b32.xlu0 %v4236, 96
      %v4270 = vpop.permute.xlu0 %4269
      %4271 = vrot.lane.b32.xlu0 %v4239, 96
      %v4272 = vpop.permute.xlu0 %4271
      %4273 = vrot.lane.b32.xlu0 %v4241, 96
      %v4274 = vpop.permute.xlu0 %4273
      %4275 = vrot.lane.b32.xlu0 %v4244, 96
      %v4276 = vpop.permute.xlu0 %4275
      %4277 = vrot.lane.b32.xlu0 %v4246, 96
      %v4278 = vpop.permute.xlu0 %4277
      %4297 = vrot.lane.b32.xlu0 %v4068, 16
      %v4298 = vpop.permute.xlu0 %4297
      %4299 = vrot.lane.b32.xlu0 %v4069, 16
      %v4300 = vpop.permute.xlu0 %4299
      %4301 = vrot.lane.b32.xlu0 %v4071, 16
      %v4302 = vpop.permute.xlu0 %4301
      %4303 = vrot.lane.b32.xlu0 %v4072, 16
      %v4304 = vpop.permute.xlu0 %4303
      %4305 = vrot.lane.b32.xlu0 %v4074, 16
      %v4306 = vpop.permute.xlu0 %4305
      %4307 = vrot.lane.b32.xlu0 %v4075, 16
      %v4308 = vpop.permute.xlu0 %4307
      %4309 = vrot.lane.b32.xlu0 %v4077, 16
      %v4310 = vpop.permute.xlu0 %4309
      %4311 = vrot.lane.b32.xlu0 %v4078, 16
      %v4312 = vpop.permute.xlu0 %4311
      %4313 = vrot.lane.b32.xlu0 %v4080, 16
      %v4314 = vpop.permute.xlu0 %4313
      %4315 = vrot.lane.b32.xlu0 %v4081, 16
      %v4316 = vpop.permute.xlu0 %4315
      %4317 = vrot.lane.b32.xlu0 %v4083, 16
      %v4318 = vpop.permute.xlu0 %4317
      %4319 = vrot.lane.b32.xlu0 %v4084, 16
      %v4320 = vpop.permute.xlu0 %4319
      %4321 = vrot.lane.b32.xlu0 %v4086, 16
      %v4322 = vpop.permute.xlu0 %4321
      %4323 = vrot.lane.b32.xlu0 %v4087, 16
      %v4324 = vpop.permute.xlu0 %4323
      %4325 = vrot.lane.b32.xlu0 %v4089, 16
      %v4326 = vpop.permute.xlu0 %4325
      %4327 = vrot.lane.b32.xlu0 %v4090, 16
      %v4328 = vpop.permute.xlu0 %4327
      %v4346 = vrot.slane %v4089, 1
      %v4347 = vrot.slane %v4090, 1
      %v4348 = vsel %vm368, %v4346, %v4347
      %v4349 = vrot.slane %v4091, 1
      %v4350 = vsel %vm368, %v4347, %v4349
      %4351 = vrot.lane.b32.xlu0 %v4126, 64
      %v4352 = vpop.permute.xlu0 %4351
      %4353 = vrot.lane.b32.xlu0 %v4128, 64
      %v4354 = vpop.permute.xlu0 %4353
      %4355 = vrot.lane.b32.xlu0 %v4131, 64
      %v4356 = vpop.permute.xlu0 %4355
      %4357 = vrot.lane.b32.xlu0 %v4133, 64
      %v4358 = vpop.permute.xlu0 %4357
      %4359 = vrot.lane.b32.xlu0 %v4136, 64
      %v4360 = vpop.permute.xlu0 %4359
      %4361 = vrot.lane.b32.xlu0 %v4138, 64
      %v4362 = vpop.permute.xlu0 %4361
      %4363 = vrot.lane.b32.xlu0 %v4141, 64
      %v4364 = vpop.permute.xlu0 %4363
      %4365 = vrot.lane.b32.xlu0 %v4143, 64
      %v4366 = vpop.permute.xlu0 %4365
      %4367 = vrot.lane.b32.xlu0 %v4146, 64
      %v4368 = vpop.permute.xlu0 %4367
      %4369 = vrot.lane.b32.xlu0 %v4148, 64
      %v4370 = vpop.permute.xlu0 %4369
      %4371 = vrot.lane.b32.xlu0 %v4151, 64
      %v4372 = vpop.permute.xlu0 %4371
      %4373 = vrot.lane.b32.xlu0 %v4153, 64
      %v4374 = vpop.permute.xlu0 %4373
      %4375 = vrot.lane.b32.xlu0 %v4156, 64
      %v4376 = vpop.permute.xlu0 %4375
      %4377 = vrot.lane.b32.xlu0 %v4158, 64
      %v4378 = vpop.permute.xlu0 %4377
      %4379 = vrot.lane.b32.xlu0 %v4348, 64
      %v4380 = vpop.permute.xlu0 %4379
      %4381 = vrot.lane.b32.xlu0 %v4350, 64
      %v4382 = vpop.permute.xlu0 %4381
      %v4399 = vrot.slane %v4089, 2
      %v4400 = vrot.slane %v4090, 2
      %v4401 = vsel %vm509, %v4399, %v4400
      %v4402 = vrot.slane %v4091, 2
      %v4403 = vsel %vm509, %v4400, %v4402
      %4404 = vrot.lane.b32.xlu0 %v4214, 112
      %v4405 = vpop.permute.xlu0 %4404
      %4406 = vrot.lane.b32.xlu0 %v4216, 112
      %v4407 = vpop.permute.xlu0 %4406
      %4408 = vrot.lane.b32.xlu0 %v4219, 112
      %v4409 = vpop.permute.xlu0 %4408
      %4410 = vrot.lane.b32.xlu0 %v4221, 112
      %v4411 = vpop.permute.xlu0 %4410
      %4412 = vrot.lane.b32.xlu0 %v4224, 112
      %v4413 = vpop.permute.xlu0 %4412
      %4414 = vrot.lane.b32.xlu0 %v4226, 112
      %v4415 = vpop.permute.xlu0 %4414
      %4416 = vrot.lane.b32.xlu0 %v4229, 112
      %v4417 = vpop.permute.xlu0 %4416
      %4418 = vrot.lane.b32.xlu0 %v4231, 112
      %v4419 = vpop.permute.xlu0 %4418
      %4420 = vrot.lane.b32.xlu0 %v4234, 112
      %v4421 = vpop.permute.xlu0 %4420
      %4422 = vrot.lane.b32.xlu0 %v4236, 112
      %v4423 = vpop.permute.xlu0 %4422
      %4424 = vrot.lane.b32.xlu0 %v4239, 112
      %v4425 = vpop.permute.xlu0 %4424
      %4426 = vrot.lane.b32.xlu0 %v4241, 112
      %v4427 = vpop.permute.xlu0 %4426
      %4428 = vrot.lane.b32.xlu0 %v4244, 112
      %v4429 = vpop.permute.xlu0 %4428
      %4430 = vrot.lane.b32.xlu0 %v4246, 112
      %v4431 = vpop.permute.xlu0 %4430
      %4432 = vrot.lane.b32.xlu0 %v4401, 112
      %v4433 = vpop.permute.xlu0 %4432
      %4434 = vrot.lane.b32.xlu0 %v4403, 112
      %v4435 = vpop.permute.xlu0 %4434
      %4454 = vrot.lane.b32.xlu0 %v4071, 32
      %v4455 = vpop.permute.xlu0 %4454
      %4456 = vrot.lane.b32.xlu0 %v4072, 32
      %v4457 = vpop.permute.xlu0 %4456
      %4458 = vrot.lane.b32.xlu0 %v4074, 32
      %v4459 = vpop.permute.xlu0 %4458
      %4460 = vrot.lane.b32.xlu0 %v4075, 32
      %v4461 = vpop.permute.xlu0 %4460
      %4462 = vrot.lane.b32.xlu0 %v4077, 32
      %v4463 = vpop.permute.xlu0 %4462
      %4464 = vrot.lane.b32.xlu0 %v4078, 32
      %v4465 = vpop.permute.xlu0 %4464
      %4466 = vrot.lane.b32.xlu0 %v4080, 32
      %v4467 = vpop.permute.xlu0 %4466
      %4468 = vrot.lane.b32.xlu0 %v4081, 32
      %v4469 = vpop.permute.xlu0 %4468
      %4470 = vrot.lane.b32.xlu0 %v4083, 32
      %v4471 = vpop.permute.xlu0 %4470
      %4472 = vrot.lane.b32.xlu0 %v4084, 32
      %v4473 = vpop.permute.xlu0 %4472
      %4474 = vrot.lane.b32.xlu0 %v4086, 32
      %v4475 = vpop.permute.xlu0 %4474
      %4476 = vrot.lane.b32.xlu0 %v4087, 32
      %v4477 = vpop.permute.xlu0 %4476
      %4478 = vrot.lane.b32.xlu0 %v4089, 32
      %v4479 = vpop.permute.xlu0 %4478
      %4480 = vrot.lane.b32.xlu0 %v4090, 32
      %v4481 = vpop.permute.xlu0 %4480
      %4482 = vrot.lane.b32.xlu0 %v4092, 32
      %v4483 = vpop.permute.xlu0 %4482
      %4484 = vrot.lane.b32.xlu0 %v4093, 32
      %v4485 = vpop.permute.xlu0 %4484
      %v4503 = vrot.slane %v4092, 1
      %v4504 = vrot.slane %v4093, 1
      %v4505 = vsel %vm368, %v4503, %v4504
      %v4506 = vrot.slane %v4094, 1
      %v4507 = vsel %vm368, %v4504, %v4506
      %4508 = vrot.lane.b32.xlu0 %v4131, 80
      %v4509 = vpop.permute.xlu0 %4508
      %4510 = vrot.lane.b32.xlu0 %v4133, 80
      %v4511 = vpop.permute.xlu0 %4510
      %4512 = vrot.lane.b32.xlu0 %v4136, 80
      %v4513 = vpop.permute.xlu0 %4512
      %4514 = vrot.lane.b32.xlu0 %v4138, 80
      %v4515 = vpop.permute.xlu0 %4514
      %4516 = vrot.lane.b32.xlu0 %v4141, 80
      %v4517 = vpop.permute.xlu0 %4516
      %4518 = vrot.lane.b32.xlu0 %v4143, 80
      %v4519 = vpop.permute.xlu0 %4518
      %4520 = vrot.lane.b32.xlu0 %v4146, 80
      %v4521 = vpop.permute.xlu0 %4520
      %4522 = vrot.lane.b32.xlu0 %v4148, 80
      %v4523 = vpop.permute.xlu0 %4522
      %4524 = vrot.lane.b32.xlu0 %v4151, 80
      %v4525 = vpop.permute.xlu0 %4524
      %4526 = vrot.lane.b32.xlu0 %v4153, 80
      %v4527 = vpop.permute.xlu0 %4526
      %4528 = vrot.lane.b32.xlu0 %v4156, 80
      %v4529 = vpop.permute.xlu0 %4528
      %4530 = vrot.lane.b32.xlu0 %v4158, 80
      %v4531 = vpop.permute.xlu0 %4530
      %4532 = vrot.lane.b32.xlu0 %v4348, 80
      %v4533 = vpop.permute.xlu0 %4532
      %4534 = vrot.lane.b32.xlu0 %v4350, 80
      %v4535 = vpop.permute.xlu0 %4534
      %4536 = vrot.lane.b32.xlu0 %v4505, 80
      %v4537 = vpop.permute.xlu0 %4536
      %4538 = vrot.lane.b32.xlu0 %v4507, 80
      %v4539 = vpop.permute.xlu0 %4538
      %v4556 = vrot.slane %v4092, 2
      %v4557 = vrot.slane %v4093, 2
      %v4558 = vsel %vm509, %v4556, %v4557
      %v4559 = vrot.slane %v4094, 2
      %v4560 = vsel %vm509, %v4557, %v4559
      %vm4561 = vcmask 392192
      %v4562 = vsel %vm4561, %v4065, %v4160
      %v4563 = vsel %vm4561, %v4066, %v4162
      %v4564 = vsel %vm4561, %v4068, %v4164
      %v4565 = vsel %vm4561, %v4069, %v4166
      %v4566 = vsel %vm4561, %v4071, %v4168
      %v4567 = vsel %vm4561, %v4072, %v4170
      %v4568 = vsel %vm4561, %v4074, %v4172
      %v4569 = vsel %vm4561, %v4075, %v4174
      %v4570 = vsel %vm4561, %v4077, %v4176
      %v4571 = vsel %vm4561, %v4078, %v4178
      %v4572 = vsel %vm4561, %v4080, %v4180
      %v4573 = vsel %vm4561, %v4081, %v4182
      %v4574 = vsel %vm4561, %v4083, %v4184
      %v4575 = vsel %vm4561, %v4084, %v4186
      %v4576 = vsel %vm4561, %v4086, %v4188
      %v4577 = vsel %vm4561, %v4087, %v4190
      %vm4578 = vcmask 785408
      %v4579 = vsel %vm4578, %v4562, %v4248
      %v4580 = vsel %vm4578, %v4563, %v4250
      %v4581 = vsel %vm4578, %v4564, %v4252
      %v4582 = vsel %vm4578, %v4565, %v4254
      %v4583 = vsel %vm4578, %v4566, %v4256
      %v4584 = vsel %vm4578, %v4567, %v4258
      %v4585 = vsel %vm4578, %v4568, %v4260
      %v4586 = vsel %vm4578, %v4569, %v4262
      %v4587 = vsel %vm4578, %v4570, %v4264
      %v4588 = vsel %vm4578, %v4571, %v4266
      %v4589 = vsel %vm4578, %v4572, %v4268
      %v4590 = vsel %vm4578, %v4573, %v4270
      %v4591 = vsel %vm4578, %v4574, %v4272
      %v4592 = vsel %vm4578, %v4575, %v4274
      %v4593 = vsel %vm4578, %v4576, %v4276
      %v4594 = vsel %vm4578, %v4577, %v4278
      %v4595 = vsel %vm1309, %v4248, %v4298
      %v4596 = vsel %vm1309, %v4250, %v4300
      %v4597 = vsel %vm1309, %v4252, %v4302
      %v4598 = vsel %vm1309, %v4254, %v4304
      %v4599 = vsel %vm1309, %v4256, %v4306
      %v4600 = vsel %vm1309, %v4258, %v4308
      %v4601 = vsel %vm1309, %v4260, %v4310
      %v4602 = vsel %vm1309, %v4262, %v4312
      %v4603 = vsel %vm1309, %v4264, %v4314
      %v4604 = vsel %vm1309, %v4266, %v4316
      %v4605 = vsel %vm1309, %v4268, %v4318
      %v4606 = vsel %vm1309, %v4270, %v4320
      %v4607 = vsel %vm1309, %v4272, %v4322
      %v4608 = vsel %vm1309, %v4274, %v4324
      %v4609 = vsel %vm1309, %v4276, %v4326
      %v4610 = vsel %vm1309, %v4278, %v4328
      %vm4611 = vcmask 523264
      %v4612 = vsel %vm4611, %v4595, %v4352
      %v4613 = vsel %vm4611, %v4596, %v4354
      %v4614 = vsel %vm4611, %v4597, %v4356
      %v4615 = vsel %vm4611, %v4598, %v4358
      %v4616 = vsel %vm4611, %v4599, %v4360
      %v4617 = vsel %vm4611, %v4600, %v4362
      %v4618 = vsel %vm4611, %v4601, %v4364
      %v4619 = vsel %vm4611, %v4602, %v4366
      %v4620 = vsel %vm4611, %v4603, %v4368
      %v4621 = vsel %vm4611, %v4604, %v4370
      %v4622 = vsel %vm4611, %v4605, %v4372
      %v4623 = vsel %vm4611, %v4606, %v4374
      %v4624 = vsel %vm4611, %v4607, %v4376
      %v4625 = vsel %vm4611, %v4608, %v4378
      %v4626 = vsel %vm4611, %v4609, %v4380
      %v4627 = vsel %vm4611, %v4610, %v4382
      %vm4628 = vcmask 916480
      %v4629 = vsel %vm4628, %v4612, %v4405
      %v4630 = vsel %vm4628, %v4613, %v4407
      %v4631 = vsel %vm4628, %v4614, %v4409
      %v4632 = vsel %vm4628, %v4615, %v4411
      %v4633 = vsel %vm4628, %v4616, %v4413
      %v4634 = vsel %vm4628, %v4617, %v4415
      %v4635 = vsel %vm4628, %v4618, %v4417
      %v4636 = vsel %vm4628, %v4619, %v4419
      %v4637 = vsel %vm4628, %v4620, %v4421
      %v4638 = vsel %vm4628, %v4621, %v4423
      %v4639 = vsel %vm4628, %v4622, %v4425
      %v4640 = vsel %vm4628, %v4623, %v4427
      %v4641 = vsel %vm4628, %v4624, %v4429
      %v4642 = vsel %vm4628, %v4625, %v4431
      %v4643 = vsel %vm4628, %v4626, %v4433
      %v4644 = vsel %vm4628, %v4627, %v4435
      %v4645 = vsel %vm1433, %v4405, %v4455
      %v4646 = vsel %vm1433, %v4407, %v4457
      %v4647 = vsel %vm1433, %v4409, %v4459
      %v4648 = vsel %vm1433, %v4411, %v4461
      %v4649 = vsel %vm1433, %v4413, %v4463
      %v4650 = vsel %vm1433, %v4415, %v4465
      %v4651 = vsel %vm1433, %v4417, %v4467
      %v4652 = vsel %vm1433, %v4419, %v4469
      %v4653 = vsel %vm1433, %v4421, %v4471
      %v4654 = vsel %vm1433, %v4423, %v4473
      %v4655 = vsel %vm1433, %v4425, %v4475
      %v4656 = vsel %vm1433, %v4427, %v4477
      %v4657 = vsel %vm1433, %v4429, %v4479
      %v4658 = vsel %vm1433, %v4431, %v4481
      %v4659 = vsel %vm1433, %v4433, %v4483
      %v4660 = vsel %vm1433, %v4435, %v4485
      %vm4661 = vcmask 654336
      %v4662 = vsel %vm4661, %v4645, %v4509
      %v4663 = vsel %vm4661, %v4646, %v4511
      %v4664 = vsel %vm4661, %v4647, %v4513
      %v4665 = vsel %vm4661, %v4648, %v4515
      %v4666 = vsel %vm4661, %v4649, %v4517
      %v4667 = vsel %vm4661, %v4650, %v4519
      %v4668 = vsel %vm4661, %v4651, %v4521
      %v4669 = vsel %vm4661, %v4652, %v4523
      %v4670 = vsel %vm4661, %v4653, %v4525
      %v4671 = vsel %vm4661, %v4654, %v4527
      %v4672 = vsel %vm4661, %v4655, %v4529
      %v4673 = vsel %vm4661, %v4656, %v4531
      %v4674 = vsel %vm4661, %v4657, %v4533
      %v4675 = vsel %vm4661, %v4658, %v4535
      %v4676 = vsel %vm4661, %v4659, %v4537
      %v4677 = vsel %vm4661, %v4660, %v4539
      %v4678 = vld [vmem:[%s3] sm:$0xff]
      %v4679 = vld [vmem:[%s3 + $0x8] sm:$0xff]
      %v4680 = vld [vmem:[%s3 + $0x10] sm:$0xff]
      %v4681 = vld [vmem:[%s3 + $0x18] sm:$0xff]
      %v4682 = vld [vmem:[%s3 + $0x20] sm:$0xff]
      %v4683 = vld [vmem:[%s3 + $0x28] sm:$0xff]
      %v4684 = vld [vmem:[%s3 + $0x30] sm:$0xff]
      %v4685 = vld [vmem:[%s3 + $0x38] sm:$0xff]
      %v4686 = vld [vmem:[%s3 + $0x40] sm:$0xff]
      %v4687 = vld [vmem:[%s3 + $0x48] sm:$0xff]
      %v4688 = vld [vmem:[%s3 + $0x50] sm:$0xff]
      %v4689 = vld [vmem:[%s3 + $0x58] sm:$0xff]
      %v4690 = vld [vmem:[%s3 + $0x60] sm:$0xff]
      %v4691 = vld [vmem:[%s3 + $0x68] sm:$0xff]
      %v4692 = vld [vmem:[%s3 + $0x70] sm:$0xff]
      %v4693 = vld [vmem:[%s3 + $0x78] sm:$0xff]
      %v4694 = vld [vmem:[%s3 + $0x80] sm:$0xff]
      %v4695 = vld [vmem:[%s3 + $0x88] sm:$0xff]
      %v4696 = vld [vmem:[%s3 + $0x90] sm:$0xff]
      %v4697 = vld [vmem:[%s3 + $0x98] sm:$0xff]
      %v4698 = vld [vmem:[%s3 + $0xa0] sm:$0xff]
      %v4699 = vld [vmem:[%s3 + $0xa8] sm:$0xff]
      %v4700 = vld [vmem:[%s3 + $0xb0] sm:$0xff]
      %v4701 = vld [vmem:[%s3 + $0xb8] sm:$0xff]
      %v4702 = vld [vmem:[%s3 + $0xc0] sm:$0xff]
      %v4703 = vld [vmem:[%s3 + $0xc8] sm:$0xff]
      %v4704 = vld [vmem:[%s3 + $0xd0] sm:$0xff]
      %v4705 = vld [vmem:[%s3 + $0xd8] sm:$0xff]
      %v4706 = vld [vmem:[%s3 + $0xe0] sm:$0xff]
      %v4707 = vld [vmem:[%s3 + $0xe8] sm:$0xff]
      %v4708 = vld [vmem:[%s3 + $0xf0] sm:$0xff]
      %v4709 = vld [vmem:[%s3 + $0xf8] sm:$0xff]
      %v4710 = vld [vmem:[%s3 + $0x100] sm:$0xff]
      %v4711 = vld [vmem:[%s3 + $0x108] sm:$0xff]
      %v4712 = vld [vmem:[%s3 + $0x110] sm:$0xff]
      %v4713 = vld [vmem:[%s3 + $0x118] sm:$0xff]
      %v4714 = vld [vmem:[%s3 + $0x120] sm:$0xff]
      %v4715 = vld [vmem:[%s3 + $0x128] sm:$0xff]
      %v4716 = vld [vmem:[%s3 + $0x130] sm:$0xff]
      %v4717 = vld [vmem:[%s3 + $0x138] sm:$0xff]
      %v4718 = vld [vmem:[%s3 + $0x140] sm:$0xff]
      %v4719 = vld [vmem:[%s3 + $0x148] sm:$0xff]
      %v4720 = vld [vmem:[%s3 + $0x150] sm:$0xff]
      %v4721 = vld [vmem:[%s3 + $0x158] sm:$0xff]
      %v4722 = vld [vmem:[%s3 + $0x160] sm:$0xff]
      %v4723 = vld [vmem:[%s3 + $0x168] sm:$0xff]
      %v4724 = vld [vmem:[%s3 + $0x170] sm:$0xff]
      %v4725 = vld [vmem:[%s3 + $0x178] sm:$0xff]
      %v4726 = vld [vmem:[%s3 + $0x180] sm:$0xff]
      %v4727 = vld [vmem:[%s3 + $0x188] sm:$0xff]
      %v4728 = vld [vmem:[%s3 + $0x190] sm:$0xff]
      %v4729 = vld [vmem:[%s3 + $0x198] sm:$0xff]
      %v4730 = vld [vmem:[%s3 + $0x1a0] sm:$0xff]
      %v4731 = vld [vmem:[%s3 + $0x1a8] sm:$0xff]
      %v4732 = vld [vmem:[%s4] sm:$0x1]
      %v4734 = vlaneseq
      %v4735 = vshrl.u32 %v4734, 7
      %v4736 = vsub.s32 0, %v4735
      %v4737 = vrot.slane %v4732, %v4736
      %v4739 = vsel %vm4561, %v4219, 0
      %v4741 = vsel %vm4561, %v4221, 0
      %v4743 = vsel %vm4561, %v4224, 0
      %v4745 = vsel %vm4561, %v4226, 0
      %v4747 = vsel %vm4561, %v4229, 0
      %v4749 = vsel %vm4561, %v4231, 0
      %v4751 = vsel %vm4561, %v4234, 0
      %v4753 = vsel %vm4561, %v4236, 0
      %v4755 = vsel %vm4561, %v4239, 0
      %v4757 = vsel %vm4561, %v4241, 0
      %v4759 = vsel %vm4561, %v4244, 0
      %v4761 = vsel %vm4561, %v4246, 0
      %v4763 = vsel %vm4561, %v4401, 0
      %v4765 = vsel %vm4561, %v4403, 0
      %v4767 = vsel %vm4561, %v4558, 0
      %v4769 = vsel %vm4561, %v4560, 0
      %4771 = vmatprep.subr.mxu0 0.0
      %4772 = vmatpush1.msra.mxu0 %v4678
      %4773 = vmatprep.subr.mxu0 0.0
      %4774 = vmatpush1.msra.mxu0 %v4679
      %4775 = vmatprep.subr.mxu0 0.0
      %4776 = vmatpush1.msra.mxu0 %v4680
      %4777 = vmatprep.subr.mxu0 0.0
      %4778 = vmatpush1.msra.mxu0 %v4681
      %4779 = vmatprep.subr.mxu0 0.0
      %4780 = vmatpush1.msra.mxu0 %v4682
      %4781 = vmatprep.subr.mxu0 0.0
      %4782 = vmatpush1.msra.mxu0 %v4683
      %4783 = vmatprep.subr.mxu0 0.0
      %4784 = vmatpush1.msra.mxu0 %v4684
      %4785 = vmatprep.subr.mxu0 0.0
      %4786 = vmatpush1.msra.mxu0 %v4685
      %4787 = vmatprep.subr.mxu0 0.0
      %4788 = vmatpush1.msra.mxu0 %v4686
      %4789 = vmatprep.subr.mxu0 0.0
      %4790 = vmatpush1.msra.mxu0 %v4687
      %4791 = vmatprep.subr.mxu0 0.0
      %4792 = vmatpush1.msra.mxu0 %v4688
      %4793 = vmatprep.subr.mxu0 0.0
      %4794 = vmatpush1.msra.mxu0 %v4689
      %4795 = vmatprep.subr.mxu0 0.0
      %4796 = vmatpush1.msra.mxu0 %v4690
      %4797 = vmatprep.subr.mxu0 0.0
      %4798 = vmatpush1.msra.mxu0 %v4691
      %4799 = vmatprep.subr.mxu0 0.0
      %4800 = vmatpush1.msra.mxu0 %v4692
      %4801 = vmatprep.subr.mxu0 0.0
      %4802 = vmatpush1.msra.mxu0 %v4693
      %4803 = vmatprep.subr.mxu0 0.0
      %4804 = vmatpush1.msra.mxu0 %v4694
      %4805 = vmatprep.subr.mxu0 0.0
      %4806 = vmatpush1.msra.mxu0 %v4695
      %4807 = vmatprep.subr.mxu0 0.0
      %4808 = vmatpush1.msra.mxu0 %v4696
      %4809 = vmatprep.subr.mxu0 0.0
      %4810 = vmatpush1.msra.mxu0 %v4697
      %4811 = vmatprep.subr.mxu0 0.0
      %4812 = vmatpush1.msra.mxu0 %v4698
      %4813 = vmatprep.subr.mxu0 0.0
      %4814 = vmatpush1.msra.mxu0 %v4699
      %4815 = vmatprep.subr.mxu0 0.0
      %4816 = vmatpush1.msra.mxu0 %v4700
      %4817 = vmatprep.subr.mxu0 0.0
      %4818 = vmatpush1.msra.mxu0 %v4701
      %4819 = vmatprep.subr.mxu0 0.0
      %4820 = vmatpush1.msra.mxu0 %v4702
      %4821 = vmatprep.subr.mxu0 0.0
      %4822 = vmatpush1.msra.mxu0 %v4703
      %4823 = vmatprep.subr.mxu0 0.0
      %4824 = vmatpush1.msra.mxu0 %v4704
      %4825 = vmatprep.subr.mxu0 0.0
      %4826 = vmatpush1.msra.mxu0 %v4705
      %4827 = vmatprep.subr.mxu0 0.0
      %4828 = vmatpush1.msra.mxu0 %v4706
      %4829 = vmatprep.subr.mxu0 0.0
      %4830 = vmatpush1.msra.mxu0 %v4707
      %4831 = vmatprep.subr.mxu0 0.0
      %4832 = vmatpush1.msra.mxu0 %v4708
      %4833 = vmatprep.subr.mxu0 0.0
      %4834 = vmatpush1.msra.mxu0 %v4709
      %4835 = vmatprep.mubr.f32.mxu0 %v4629
      %4836 = vmatmul.mubr.f32.gmra.mrb[0].mxu0 %v4579
      %v4837 = vpop.f32.mrb[0].mxu0
      %v4838 = vadd.f32 %v4737, %v4837
      %v4839 = vpop.f32.mrb[0].mxu0
      %4840 = vmatprep.mubr.f32.mxu0 %v4630
      %4841 = vmatmul.mubr.f32.gmra.mrb[0].mxu0 %v4580
      %v4842 = vpop.f32.mrb[0].mxu0
      %v4843 = vadd.f32 %v4737, %v4842
      %v4844 = vpop.f32.mrb[0].mxu0
      %4845 = vmatprep.mubr.f32.mxu0 %v4631
      %4846 = vmatmul.mubr.f32.gmra.mrb[0].mxu0 %v4581
      %v4847 = vpop.f32.mrb[0].mxu0
      %v4848 = vadd.f32 %v4737, %v4847
      %v4849 = vpop.f32.mrb[0].mxu0
      %4850 = vmatprep.mubr.f32.mxu0 %v4632
      %4851 = vmatmul.mubr.f32.gmra.mrb[0].mxu0 %v4582
      %v4852 = vpop.f32.mrb[0].mxu0
      %v4853 = vadd.f32 %v4737, %v4852
      %v4854 = vpop.f32.mrb[0].mxu0
      %4855 = vmatprep.mubr.f32.mxu0 %v4633
      %4856 = vmatmul.mubr.f32.gmra.mrb[0].mxu0 %v4583
      %v4857 = vpop.f32.mrb[0].mxu0
      %v4858 = vadd.f32 %v4737, %v4857
      %v4859 = vpop.f32.mrb[0].mxu0
      %4860 = vmatprep.mubr.f32.mxu0 %v4634
      %4861 = vmatmul.mubr.f32.gmra.mrb[0].mxu0 %v4584
      %v4862 = vpop.f32.mrb[0].mxu0
      %v4863 = vadd.f32 %v4737, %v4862
      %v4864 = vpop.f32.mrb[0].mxu0
      %4865 = vmatprep.mubr.f32.mxu0 %v4635
      %4866 = vmatmul.mubr.f32.gmra.mrb[0].mxu0 %v4585
      %v4867 = vpop.f32.mrb[0].mxu0
      %v4868 = vadd.f32 %v4737, %v4867
      %v4869 = vpop.f32.mrb[0].mxu0
      %4870 = vmatprep.mubr.f32.mxu0 %v4636
      %4871 = vmatmul.mubr.f32.gmra.mrb[0].mxu0 %v4586
      %v4872 = vpop.f32.mrb[0].mxu0
      %v4873 = vadd.f32 %v4737, %v4872
      %v4874 = vpop.f32.mrb[0].mxu0
      %4875 = vmatprep.mubr.f32.mxu0 %v4637
      %4876 = vmatmul.mubr.f32.gmra.mrb[0].mxu0 %v4587
      %v4877 = vpop.f32.mrb[0].mxu0
      %v4878 = vadd.f32 %v4737, %v4877
      %v4879 = vpop.f32.mrb[0].mxu0
      %4880 = vmatprep.mubr.f32.mxu0 %v4638
      %4881 = vmatmul.mubr.f32.gmra.mrb[0].mxu0 %v4588
      %v4882 = vpop.f32.mrb[0].mxu0
      %v4883 = vadd.f32 %v4737, %v4882
      %v4884 = vpop.f32.mrb[0].mxu0
      %4885 = vmatprep.mubr.f32.mxu0 %v4639
      %4886 = vmatmul.mubr.f32.gmra.mrb[0].mxu0 %v4589
      %v4887 = vpop.f32.mrb[0].mxu0
      %v4888 = vadd.f32 %v4737, %v4887
      %v4889 = vpop.f32.mrb[0].mxu0
      %4890 = vmatprep.mubr.f32.mxu0 %v4640
      %4891 = vmatmul.mubr.f32.gmra.mrb[0].mxu0 %v4590
      %v4892 = vpop.f32.mrb[0].mxu0
      %v4893 = vadd.f32 %v4737, %v4892
      %v4894 = vpop.f32.mrb[0].mxu0
      %4895 = vmatprep.mubr.f32.mxu0 %v4641
      %4896 = vmatmul.mubr.f32.gmra.mrb[0].mxu0 %v4591
      %v4897 = vpop.f32.mrb[0].mxu0
      %v4898 = vadd.f32 %v4737, %v4897
      %v4899 = vpop.f32.mrb[0].mxu0
      %4900 = vmatprep.mubr.f32.mxu0 %v4642
      %4901 = vmatmul.mubr.f32.gmra.mrb[0].mxu0 %v4592
      %v4902 = vpop.f32.mrb[0].mxu0
      %v4903 = vadd.f32 %v4737, %v4902
      %v4904 = vpop.f32.mrb[0].mxu0
      %4905 = vmatprep.mubr.f32.mxu0 %v4643
      %4906 = vmatmul.mubr.f32.gmra.mrb[0].mxu0 %v4593
      %v4907 = vpop.f32.mrb[0].mxu0
      %v4908 = vadd.f32 %v4737, %v4907
      %v4909 = vpop.f32.mrb[0].mxu0
      %4910 = vmatprep.mubr.f32.mxu0 %v4644
      %4911 = vmatmul.mubr.f32.gmra.mrb[0].mxu0 %v4594
      %v4912 = vpop.f32.mrb[0].mxu0
      %v4913 = vadd.f32 %v4737, %v4912
      %v4914 = vpop.f32.mrb[0].mxu0
      %4915 = vdwg.mxu0
      %4916 = vmatprep.subr.mxu0 0.0
      %4917 = vmatpush1.msra.mxu0 %v4710
      %4918 = vmatprep.subr.mxu0 0.0
      %4919 = vmatpush1.msra.mxu0 %v4711
      %4920 = vmatprep.subr.mxu0 0.0
      %4921 = vmatpush1.msra.mxu0 %v4712
      %4922 = vmatprep.subr.mxu0 0.0
      %4923 = vmatpush1.msra.mxu0 %v4713
      %4924 = vmatprep.subr.mxu0 0.0
      %4925 = vmatpush1.msra.mxu0 %v4714
      %4926 = vmatprep.subr.mxu0 0.0
      %4927 = vmatpush1.msra.mxu0 %v4715
      %4928 = vmatprep.subr.mxu0 0.0
      %4929 = vmatpush1.msra.mxu0 %v4716
      %4930 = vmatprep.subr.mxu0 0.0
      %4931 = vmatpush1.msra.mxu0 %v4717
      %4932 = vmatprep.subr.mxu0 0.0
      %4933 = vmatpush1.msra.mxu0 %v4718
      %4934 = vmatprep.subr.mxu0 0.0
      %4935 = vmatpush1.msra.mxu0 %v4719
      %4936 = vmatprep.subr.mxu0 0.0
      %4937 = vmatpush1.msra.mxu0 %v4720
      %4938 = vmatprep.subr.mxu0 0.0
      %4939 = vmatpush1.msra.mxu0 %v4721
      %4940 = vmatprep.subr.mxu0 0.0
      %4941 = vmatpush1.msra.mxu0 %v4722
      %4942 = vmatprep.subr.mxu0 0.0
      %4943 = vmatpush1.msra.mxu0 %v4723
      %4944 = vmatprep.subr.mxu0 0.0
      %4945 = vmatpush1.msra.mxu0 %v4724
      %4946 = vmatprep.subr.mxu0 0.0
      %4947 = vmatpush1.msra.mxu0 %v4725
      %4948 = vmatprep.subr.mxu0 0.0
      %4949 = vmatpush1.msra.mxu0 %v4726
      %4950 = vmatprep.subr.mxu0 0.0
      %4951 = vmatpush1.msra.mxu0 %v4727
      %4952 = vmatprep.subr.mxu0 0.0
      %4953 = vmatpush1.msra.mxu0 %v4728
      %4954 = vmatprep.subr.mxu0 0.0
      %4955 = vmatpush1.msra.mxu0 %v4729
      %4956 = vmatprep.subr.mxu0 0.0
      %4957 = vmatpush1.msra.mxu0 %v4730
      %4958 = vmatprep.subr.mxu0 0.0
      %4959 = vmatpush1.msra.mxu0 %v4731
      %4960 = vmatprep.subr.mxu0 0.0
      %4961 = vmatpush1.msra.mxu0 0.0
      %4962 = vmatprep.subr.mxu0 0.0
      %4963 = vmatpush1.msra.mxu0 0.0
      %4964 = vmatprep.subr.mxu0 0.0
      %4965 = vmatpush1.msra.mxu0 0.0
      %4966 = vmatprep.subr.mxu0 0.0
      %4967 = vmatpush1.msra.mxu0 0.0
      %4968 = vmatprep.subr.mxu0 0.0
      %4969 = vmatpush1.msra.mxu0 0.0
      %4970 = vmatprep.subr.mxu0 0.0
      %4971 = vmatpush1.msra.mxu0 0.0
      %4972 = vmatprep.subr.mxu0 0.0
      %4973 = vmatpush1.msra.mxu0 0.0
      %4974 = vmatprep.subr.mxu0 0.0
      %4975 = vmatpush1.msra.mxu0 0.0
      %4976 = vmatprep.subr.mxu0 0.0
      %4977 = vmatpush1.msra.mxu0 0.0
      %4978 = vmatprep.subr.mxu0 0.0
      %4979 = vmatpush1.msra.mxu0 0.0
      %4980 = vmatprep.mubr.f32.mxu0 %v4739
      %4981 = vmatmul.mubr.f32.gmra.mrb[0].mxu0 %v4662
      %v4982 = vpop.f32.mrb[0].mxu0
      %v4983 = vadd.f32 %v4838, %v4982
      %v4984 = vpop.f32.mrb[0].mxu0
      %4985 = vmatprep.mubr.f32.mxu0 %v4741
      %4986 = vmatmul.mubr.f32.gmra.mrb[0].mxu0 %v4663
      %v4987 = vpop.f32.mrb[0].mxu0
      %v4988 = vadd.f32 %v4843, %v4987
      %v4989 = vpop.f32.mrb[0].mxu0
      %4990 = vmatprep.mubr.f32.mxu0 %v4743
      %4991 = vmatmul.mubr.f32.gmra.mrb[0].mxu0 %v4664
      %v4992 = vpop.f32.mrb[0].mxu0
      %v4993 = vadd.f32 %v4848, %v4992
      %v4994 = vpop.f32.mrb[0].mxu0
      %4995 = vmatprep.mubr.f32.mxu0 %v4745
      %4996 = vmatmul.mubr.f32.gmra.mrb[0].mxu0 %v4665
      %v4997 = vpop.f32.mrb[0].mxu0
      %v4998 = vadd.f32 %v4853, %v4997
      %v4999 = vpop.f32.mrb[0].mxu0
      %5000 = vmatprep.mubr.f32.mxu0 %v4747
      %5001 = vmatmul.mubr.f32.gmra.mrb[0].mxu0 %v4666
      %v5002 = vpop.f32.mrb[0].mxu0
      %v5003 = vadd.f32 %v4858, %v5002
      %v5004 = vpop.f32.mrb[0].mxu0
      %5005 = vmatprep.mubr.f32.mxu0 %v4749
      %5006 = vmatmul.mubr.f32.gmra.mrb[0].mxu0 %v4667
      %v5007 = vpop.f32.mrb[0].mxu0
      %v5008 = vadd.f32 %v4863, %v5007
      %v5009 = vpop.f32.mrb[0].mxu0
      %5010 = vmatprep.mubr.f32.mxu0 %v4751
      %5011 = vmatmul.mubr.f32.gmra.mrb[0].mxu0 %v4668
      %v5012 = vpop.f32.mrb[0].mxu0
      %v5013 = vadd.f32 %v4868, %v5012
      %v5014 = vpop.f32.mrb[0].mxu0
      %5015 = vmatprep.mubr.f32.mxu0 %v4753
      %5016 = vmatmul.mubr.f32.gmra.mrb[0].mxu0 %v4669
      %v5017 = vpop.f32.mrb[0].mxu0
      %v5018 = vadd.f32 %v4873, %v5017
      %v5019 = vpop.f32.mrb[0].mxu0
      %5020 = vmatprep.mubr.f32.mxu0 %v4755
      %5021 = vmatmul.mubr.f32.gmra.mrb[0].mxu0 %v4670
      %v5022 = vpop.f32.mrb[0].mxu0
      %v5023 = vadd.f32 %v4878, %v5022
      %v5024 = vpop.f32.mrb[0].mxu0
      %5025 = vmatprep.mubr.f32.mxu0 %v4757
      %5026 = vmatmul.mubr.f32.gmra.mrb[0].mxu0 %v4671
      %v5027 = vpop.f32.mrb[0].mxu0
      %v5028 = vadd.f32 %v4883, %v5027
      %v5029 = vpop.f32.mrb[0].mxu0
      %5030 = vmatprep.mubr.f32.mxu0 %v4759
      %5031 = vmatmul.mubr.f32.gmra.mrb[0].mxu0 %v4672
      %v5032 = vpop.f32.mrb[0].mxu0
      %v5033 = vadd.f32 %v4888, %v5032
      %v5034 = vpop.f32.mrb[0].mxu0
      %5035 = vmatprep.mubr.f32.mxu0 %v4761
      %5036 = vmatmul.mubr.f32.gmra.mrb[0].mxu0 %v4673
      %v5037 = vpop.f32.mrb[0].mxu0
      %v5038 = vadd.f32 %v4893, %v5037
      %v5039 = vpop.f32.mrb[0].mxu0
      %5040 = vmatprep.mubr.f32.mxu0 %v4763
      %5041 = vmatmul.mubr.f32.gmra.mrb[0].mxu0 %v4674
      %v5042 = vpop.f32.mrb[0].mxu0
      %v5043 = vadd.f32 %v4898, %v5042
      %v5044 = vpop.f32.mrb[0].mxu0
      %5045 = vmatprep.mubr.f32.mxu0 %v4765
      %5046 = vmatmul.mubr.f32.gmra.mrb[0].mxu0 %v4675
      %v5047 = vpop.f32.mrb[0].mxu0
      %v5048 = vadd.f32 %v4903, %v5047
      %v5049 = vpop.f32.mrb[0].mxu0
      %5050 = vmatprep.mubr.f32.mxu0 %v4767
      %5051 = vmatmul.mubr.f32.gmra.mrb[0].mxu0 %v4676
      %v5052 = vpop.f32.mrb[0].mxu0
      %v5053 = vadd.f32 %v4908, %v5052
      %v5054 = vpop.f32.mrb[0].mxu0
      %5055 = vmatprep.mubr.f32.mxu0 %v4769
      %5056 = vmatmul.mubr.f32.gmra.mrb[0].mxu0 %v4677
      %v5057 = vpop.f32.mrb[0].mxu0
      %v5058 = vadd.f32 %v4913, %v5057
      %v5059 = vpop.f32.mrb[0].mxu0
      %5060 = vdwg.mxu0
      %vm5061 = vcmp.gt.f32.partialorder %v4983, 0.0
      %vm5062 = vcmp.gt.f32.partialorder %v4988, 0.0
      %vm5063 = vcmp.gt.f32.partialorder %v4993, 0.0
      %vm5064 = vcmp.gt.f32.partialorder %v4998, 0.0
      %vm5065 = vcmp.gt.f32.partialorder %v5003, 0.0
      %vm5066 = vcmp.gt.f32.partialorder %v5008, 0.0
      %vm5067 = vcmp.gt.f32.partialorder %v5013, 0.0
      %vm5068 = vcmp.gt.f32.partialorder %v5018, 0.0
      %vm5069 = vcmp.gt.f32.partialorder %v5023, 0.0
      %vm5070 = vcmp.gt.f32.partialorder %v5028, 0.0
      %vm5071 = vcmp.gt.f32.partialorder %v5033, 0.0
      %vm5072 = vcmp.gt.f32.partialorder %v5038, 0.0
      %vm5073 = vcmp.gt.f32.partialorder %v5043, 0.0
      %vm5074 = vcmp.gt.f32.partialorder %v5048, 0.0
      %vm5075 = vcmp.gt.f32.partialorder %v5053, 0.0
      %vm5076 = vcmp.gt.f32.partialorder %v5058, 0.0
      %v5077 = vmul.f32 %v4983, 0.2
      %v5078 = vmul.f32 %v4988, 0.2
      %v5079 = vmul.f32 %v4993, 0.2
      %v5080 = vmul.f32 %v4998, 0.2
      %v5081 = vmul.f32 %v5003, 0.2
      %v5082 = vmul.f32 %v5008, 0.2
      %v5083 = vmul.f32 %v5013, 0.2
      %v5084 = vmul.f32 %v5018, 0.2
      %v5085 = vmul.f32 %v5023, 0.2
      %v5086 = vmul.f32 %v5028, 0.2
      %v5087 = vmul.f32 %v5033, 0.2
      %v5088 = vmul.f32 %v5038, 0.2
      %v5089 = vmul.f32 %v5043, 0.2
      %v5090 = vmul.f32 %v5048, 0.2
      %v5091 = vmul.f32 %v5053, 0.2
      %v5092 = vmul.f32 %v5058, 0.2
      %v5093 = vsel %vm5061, %v4983, %v5077
      %v5094 = vsel %vm5062, %v4988, %v5078
      %v5095 = vsel %vm5063, %v4993, %v5079
      %v5096 = vsel %vm5064, %v4998, %v5080
      %v5097 = vsel %vm5065, %v5003, %v5081
      %v5098 = vsel %vm5066, %v5008, %v5082
      %v5099 = vsel %vm5067, %v5013, %v5083
      %v5100 = vsel %vm5068, %v5018, %v5084
      %v5101 = vsel %vm5069, %v5023, %v5085
      %v5102 = vsel %vm5070, %v5028, %v5086
      %v5103 = vsel %vm5071, %v5033, %v5087
      %v5104 = vsel %vm5072, %v5038, %v5088
      %v5105 = vsel %vm5073, %v5043, %v5089
      %v5106 = vsel %vm5074, %v5048, %v5090
      %v5107 = vsel %vm5075, %v5053, %v5091
      %v5108 = vsel %vm5076, %v5058, %v5092
      %v5109 = vld [vmem:[%s5] sm:$0xf]
      %v5110 = vld [vmem:[%s6] sm:$0xf]
      %5112 = vset.pattern.permute.xlu0 0
      %5113 = vperm.xlu0 %5112, %v5110
      %v5114 = vpop.permute.xlu0 %5113
      %v5117 = vsel %vm4561, %v5109, 0
      %v5120 = vsel %vm4561, %v5093, 0
      %v5123 = vsel %vm4561, %v5094, 0
      %v5126 = vsel %vm4561, %v5095, 0
      %v5129 = vsel %vm4561, %v5096, 0
      %v5132 = vsel %vm4561, %v5097, 0
      %v5135 = vsel %vm4561, %v5098, 0
      %v5138 = vsel %vm4561, %v5099, 0
      %v5141 = vsel %vm4561, %v5100, 0
      %v5144 = vsel %vm4561, %v5101, 0
      %v5147 = vsel %vm4561, %v5102, 0
      %v5150 = vsel %vm4561, %v5103, 0
      %v5153 = vsel %vm4561, %v5104, 0
      %v5156 = vsel %vm4561, %v5105, 0
      %v5159 = vsel %vm4561, %v5106, 0
      %v5162 = vsel %vm4561, %v5107, 0
      %v5165 = vsel %vm4561, %v5108, 0
      %5167 = vmatprep.subr.mxu0 0.0
      %5168 = vmatpush1.xpose.msra.mxu0 %v5120
      %5169 = vmatprep.subr.mxu0 0.0
      %5170 = vmatpush1.xpose.msra.mxu0 %v5123
      %5171 = vmatprep.subr.mxu0 0.0
      %5172 = vmatpush1.xpose.msra.mxu0 %v5126
      %5173 = vmatprep.subr.mxu0 0.0
      %5174 = vmatpush1.xpose.msra.mxu0 %v5129
      %5175 = vmatprep.subr.mxu0 0.0
      %5176 = vmatpush1.xpose.msra.mxu0 %v5132
      %5177 = vmatprep.subr.mxu0 0.0
      %5178 = vmatpush1.xpose.msra.mxu0 %v5135
      %5179 = vmatprep.subr.mxu0 0.0
      %5180 = vmatpush1.xpose.msra.mxu0 %v5138
      %5181 = vmatprep.subr.mxu0 0.0
      %5182 = vmatpush1.xpose.msra.mxu0 %v5141
      %5183 = vmatprep.subr.mxu0 0.0
      %5184 = vmatpush1.xpose.msra.mxu0 %v5144
      %5185 = vmatprep.subr.mxu0 0.0
      %5186 = vmatpush1.xpose.msra.mxu0 %v5147
      %5187 = vmatprep.subr.mxu0 0.0
      %5188 = vmatpush1.xpose.msra.mxu0 %v5150
      %5189 = vmatprep.subr.mxu0 0.0
      %5190 = vmatpush1.xpose.msra.mxu0 %v5153
      %5191 = vmatprep.subr.mxu0 0.0
      %5192 = vmatpush1.xpose.msra.mxu0 %v5156
      %5193 = vmatprep.subr.mxu0 0.0
      %5194 = vmatpush1.xpose.msra.mxu0 %v5159
      %5195 = vmatprep.subr.mxu0 0.0
      %5196 = vmatpush1.xpose.msra.mxu0 %v5162
      %5197 = vmatprep.subr.mxu0 0.0
      %5198 = vmatpush1.xpose.msra.mxu0 %v5165
      %5199 = vmatprep.subr.mxu0 0.0
      %5200 = vmatpush1.xpose.msra.mxu0 0.0
      %5201 = vmatprep.subr.mxu0 0.0
      %5202 = vmatpush1.xpose.msra.mxu0 0.0
      %5203 = vmatprep.subr.mxu0 0.0
      %5204 = vmatpush1.xpose.msra.mxu0 0.0
      %5205 = vmatprep.subr.mxu0 0.0
      %5206 = vmatpush1.xpose.msra.mxu0 0.0
      %5207 = vmatprep.subr.mxu0 0.0
      %5208 = vmatpush1.xpose.msra.mxu0 0.0
      %5209 = vmatprep.subr.mxu0 0.0
      %5210 = vmatpush1.xpose.msra.mxu0 0.0
      %5211 = vmatprep.subr.mxu0 0.0
      %5212 = vmatpush1.xpose.msra.mxu0 0.0
      %5213 = vmatprep.subr.mxu0 0.0
      %5214 = vmatpush1.xpose.msra.mxu0 0.0
      %5215 = vmatprep.subr.mxu0 0.0
      %5216 = vmatpush1.xpose.msra.mxu0 0.0
      %5217 = vmatprep.subr.mxu0 0.0
      %5218 = vmatpush1.xpose.msra.mxu0 0.0
      %5219 = vmatprep.subr.mxu0 0.0
      %5220 = vmatpush1.xpose.msra.mxu0 0.0
      %5221 = vmatprep.subr.mxu0 0.0
      %5222 = vmatpush1.xpose.msra.mxu0 0.0
      %5223 = vmatprep.subr.mxu0 0.0
      %5224 = vmatpush1.xpose.msra.mxu0 0.0
      %5225 = vmatprep.subr.mxu0 0.0
      %5226 = vmatpush1.xpose.msra.mxu0 0.0
      %5227 = vmatprep.subr.mxu0 0.0
      %5228 = vmatpush1.xpose.msra.mxu0 0.0
      %5229 = vmatprep.subr.mxu0 0.0
      %5230 = vmatpush1.xpose.msra.mxu0 0.0
      %5231 = vmatprep.mubr.f32.mxu0 0.0
      %5232 = vmatmul.mubr.f32.gmra.mrb[0].mxu0 %v5117
      %v5233 = vpop.f32.mrb[0].mxu0
      %v5234 = vadd.f32 %v5114, %v5233
      %v5235 = vpop.f32.mrb[0].mxu0
      %5236 = vdwg.mxu0
      %5237 = vst [vmem:[%s298] sm:$0xf] %v5234
      %p5238 = scmp.lt.s32.totalorder %s22, 1
      %s5239 = scalar_select %p5238, %s22, 1
      %p5240 = scmp.lt.s32.totalorder %s23, 1
      %s5241 = scalar_select %p5240, %s23, 1
      %s5242 = smul.addr %s5239, 2
      %s5243 = sadd.s32 %s5241, %s5242
      %s5244 = smul.addr %s5243, 4
      %s5245 = scalar_lea.vmem %s7, %s5244
      // Predicated region
      $region49: #{network_forward.1} parent=47 // pred_check
        %p5246 = pneg %p202
      $region50: #{network_forward.1} parent=47 // pred_check_branch
        %5248 = sbr.rel (%p5246) target = $region52
      $region51: #{network_forward.1} parent=47 // pred_region
        _
      $region52: #{network_forward.1} parent=47 // pred_fallthru
        _
    $region48: #{network_forward.1} parent=5 // pred_fallthru
      _
    %p5249 = scmp.le.s32.totalorder 2, %s13
    // Predicated region
    $region53: #{network_forward.1} parent=5 // pred_check
      %p5250 = pneg %p5249
    $region54: #{network_forward.1} parent=5 // pred_check_branch
      %5252 = sbr.rel (%p5250) target = $region56
    $region55: #{network_forward.1} parent=5 // pred_region
      %s5253 = ssub.s32 %s13, 2
      // Predicated region
      $region57: #{network_forward.1} parent=55 // pred_check
        %p5254 = pneg %p208
      $region58: #{network_forward.1} parent=55 // pred_check_branch
        %5256 = sbr.rel (%p5254) target = $region60
      $region59: #{network_forward.1} parent=55 // pred_region
        %p5257 = scmp.lt.s32.totalorder %s24, 1
        %s5258 = scalar_select %p5257, %s24, 1
        %p5259 = scmp.lt.s32.totalorder %s25, 1
        %s5260 = scalar_select %p5259, %s25, 1
        %s5261 = smul.addr %s5258, 2
        %s5262 = sadd.s32 %s5260, %s5261
        %s5263 = smul.addr %s5262, 4
        %s5264 = scalar_lea.vmem %s7, %s5263
      $region60: #{network_forward.1} parent=55 // pred_fallthru
        _
    $region56: #{network_forward.1} parent=5 // pred_fallthru
      _
  $region6: #{network_forward.1} parent=0 // loop_footer
    %s17 = sadd.s32 1, %s13
  $region7: #{network_forward.1} parent=0 // loop_footer_branch
    %12 = sbr.rel target = $region3
  $region8: #{network_forward.1} parent=0 // loop_exit
    _

</llo_original>
